<compile_context>
chip_gen: v7x
topology: tpu7x:2x2x1
jax: 0.10.0
libtpu: 0.0.40
codegen_flags: <defaults>
</compile_context>

<pallas_src>
import jax
import jax.numpy as jnp
from jax.experimental import pallas as pl
from jax.experimental.pallas import tpu as pltpu


def _round_up(x: int, m: int) -> int:
    return ((x + m - 1) // m) * m


def prediction_head_kernel(h_ref, w_ref, o_ref):
    # h_ref: [TB, N, D] block of graphs; w_ref: [D, D]; o_ref: [TB, N].
    tb, n, d = h_ref.shape
    h = h_ref[...].astype(jnp.float32)                         # [TB, N, D]
    w = w_ref[...].astype(jnp.float32)                         # [D, D]

    # One big MXU matmul over all TB*N node rows (left-associated h @ W).
    hw = jnp.dot(h.reshape(tb * n, d), w,
                 preferred_element_type=jnp.float32)           # [TB*N, D]
    hw = hw.reshape(tb, n, d)                                  # [TB, N, D]

    # pooling: mean over nodes, once per block (XLU reduce, overlaps the MXU).
    x = jnp.mean(h, axis=1, keepdims=True)                     # [TB, 1, D]

    # Second contraction per graph on the VPU + lane reduce:
    #   y[b, n] = sum_d hw[b, n, d] * x[b, d]
    # Avoids TB tiny M=1 MXU pushes; lives in VALU/XLU slots that overlap MXU.
    y = jnp.sum(hw * x, axis=-1)                               # [TB, N]

    # act_fn: sigmoid, kept in f32 (EUP exp; v5e has no bf16 EUP).
    o_ref[...] = jax.nn.sigmoid(y).astype(o_ref.dtype)


def _prediction_head_xla(h, W):
    # Fused-XLA path for tiny batches where pallas_call dispatch would dominate.
    x = jnp.mean(h, axis=1)                                    # [B, D]
    hw = jnp.einsum("bnk,kd->bnd", h, W)                       # left-associated
    return jax.nn.sigmoid(jnp.einsum("bnd,bd->bn", hw, x))     # [B, N]


def prediction_head_batched(h, W, *, tb=128, min_graphs_for_kernel=64):
    """h: [B, N, D] float32, W: [D, D] float32 -> [B, N] float32.

    Applies PredictionHead (mean pooling, sigmoid) independently per graph.
    """
    B, N, D = h.shape
    assert W.shape == (D, D)

    if B < min_graphs_for_kernel:
        # Too little work to amortize a custom-call dispatch; let XLA fuse it.
        return _prediction_head_xla(h, W)

    # Graphs per grid step: multiple of 8 (sublane granularity for the (TB, N)
    # output block); force >=2 grid steps when B allows so both v7x TCs work.
    TB = min(_round_up(B, 8), _round_up(tb, 8))
    if B > 8 and _round_up(B, TB) // TB < 2:
        TB = _round_up(-(-B // 2), 8)
    Bp = _round_up(B, TB)
    num_blocks = Bp // TB

    if Bp != B:
        # Zero padding is harmless: padded rows produce sigmoid(0) and are
        # sliced off below.
        h = jnp.pad(h, ((0, Bp - B), (0, 0), (0, 0)))

    cost = pl.CostEstimate(
        flops=int(2 * Bp * N * D * D + 2 * Bp * N * D + Bp * N * D),
        transcendentals=int(Bp * N),
        bytes_accessed=int(4 * (Bp * N * D + D * D + Bp * N)),  # W counted once
    )

    out = pl.pallas_call(
        prediction_head_kernel,
        out_shape=jax.ShapeDtypeStruct((Bp, N), jnp.float32),
        grid=(num_blocks,),
        in_specs=[
            # TB graphs per step; last two dims equal full array dims.
            pl.BlockSpec((TB, N, D), lambda i: (i, 0, 0)),
            # Shared weight, resident across the grid.
            pl.BlockSpec((D, D), lambda i: (0, 0)),
        ],
        out_specs=pl.BlockSpec((TB, N), lambda i: (i, 0)),
        compiler_params=pltpu.CompilerParams(
            dimension_semantics=("parallel",),
        ),
        cost_estimate=cost,
    )(h, W)
    return out[:B]


def prediction_head(h, W):
    """Single-graph forward, exactly the PyTorch module: h [N, D] -> [N]."""
    return prediction_head_batched(h[None], W)[0]


def reference_single(h, W):
    x = jnp.mean(h, axis=0)                  # pooling
    return jax.nn.sigmoid(h @ W @ x)         # act_fn(h @ W @ x)


if __name__ == "__main__":
    key = jax.random.PRNGKey(0)
    k_h, k_w, k_h2 = jax.random.split(key, 3)

    N, D = 8, 32                             # 8 nodes per graph, hidden 32
    B = 256                                  # 2 grid steps of 128 graphs each

    h = jax.random.normal(k_h, (B, N, D), dtype=jnp.float32)
    # kaiming_normal_ on W[D, D]: std = sqrt(2 / fan_in) = sqrt(2 / D)
    W = jax.random.normal(k_w, (D, D), dtype=jnp.float32) * jnp.sqrt(2.0 / D)

    out = jax.block_until_ready(prediction_head_batched(h, W))
    ref = jax.vmap(lambda hi: reference_single(hi, W))(h)
    assert out.shape == (B, N)
    assert jnp.allclose(out, ref, atol=1e-5, rtol=1e-5)

    # Small batch forced through the kernel: exercises the padding path.
    h2 = jax.random.normal(k_h2, (2, N, D), dtype=jnp.float32)
    out2 = jax.block_until_ready(
        prediction_head_batched(h2, W, min_graphs_for_kernel=1))
    ref2 = jax.vmap(lambda hi: reference_single(hi, W))(h2)
    assert out2.shape == (2, N)
    assert jnp.allclose(out2, ref2, atol=1e-5, rtol=1e-5)

    # Single-graph module semantics; tiny call routes to the fused XLA path.
    single = jax.block_until_ready(prediction_head(h2[0], W))
    assert single.shape == (N,)
    assert jnp.allclose(single, ref2[0], atol=1e-5, rtol=1e-5)

    print("KERNEL_OK")
</pallas_src>

<mosaic_0001>
module attributes {stable_mosaic.version = 11 : i64} {
  func.func @prediction_head_kernel(%arg0: i32, %arg1: memref<128x8x32xf32, #tpu.memory_space<vmem>>, %arg2: memref<32x32xf32, #tpu.memory_space<vmem>>, %arg3: memref<128x8xf32, #tpu.memory_space<vmem>>) attributes {dimension_semantics = [#tpu.dimension_semantics<parallel>], iteration_bounds = array<i64: 2>, scalar_prefetch = 0 : i64, scratch_operands = 0 : i64, tpu.core_type = #tpu.core_type<tc>, window_params = [{transform_indices = @transform_0, window_bounds = array<i64: 128, 8, 32>}, {pipeline_mode = #tpu.pipeline_mode<synchronous>, transform_indices = @transform_1, window_bounds = array<i64: 32, 32>}, {transform_indices = @transform_2, window_bounds = array<i64: 128, 8>}]} {
    %c0 = arith.constant 0 : index
    %c0_0 = arith.constant 0 : index
    %c0_1 = arith.constant 0 : index
    %0 = vector.load %arg1[%c0, %c0_0, %c0_1] : memref<128x8x32xf32, #tpu.memory_space<vmem>>, vector<128x8x32xf32>
    %c0_2 = arith.constant 0 : index
    %c0_3 = arith.constant 0 : index
    %1 = vector.load %arg2[%c0_2, %c0_3] : memref<32x32xf32, #tpu.memory_space<vmem>>, vector<32x32xf32>
    %2 = vector.shape_cast %0 : vector<128x8x32xf32> to vector<1024x32xf32>
    %cst = arith.constant dense<0.000000e+00> : vector<1024x32xf32>
    %3 = tpu.matmul %2, %1, %cst {dimension_numbers = #tpu.dot_dimension_numbers<[1], [0], [0], [1], [0, 0, 1, 1], [], []>} : vector<1024x32xf32>, vector<32x32xf32>, vector<1024x32xf32> -> vector<1024x32xf32>
    %4 = vector.shape_cast %3 : vector<1024x32xf32> to vector<128x8x32xf32>
    %cst_4 = arith.constant dense<0.000000e+00> : vector<128x32xf32>
    %5 = vector.multi_reduction <add>, %0, %cst_4 [1] : vector<128x8x32xf32> to vector<128x32xf32>
    %6 = vector.shape_cast %5 : vector<128x32xf32> to vector<128x1x32xf32>
    %cst_5 = arith.constant 8.000000e+00 : f32
    %7 = vector.broadcast %cst_5 : f32 to vector<128x1x32xf32>
    %8 = arith.divf %6, %7 : vector<128x1x32xf32>
    %9 = vector.broadcast %8 : vector<128x1x32xf32> to vector<128x8x32xf32>
    %10 = arith.mulf %4, %9 : vector<128x8x32xf32>
    %cst_6 = arith.constant dense<0.000000e+00> : vector<128x8xf32>
    %11 = vector.multi_reduction <add>, %10, %cst_6 [2] : vector<128x8x32xf32> to vector<128x8xf32>
    %12 = arith.negf %11 : vector<128x8xf32>
    %13 = math.exp %12 : vector<128x8xf32>
    %cst_7 = arith.constant 1.000000e+00 : f32
    %14 = vector.broadcast %cst_7 : f32 to vector<128x8xf32>
    %15 = arith.addf %14, %13 : vector<128x8xf32>
    %16 = arith.divf %14, %15 : vector<128x8xf32>
    %c0_8 = arith.constant 0 : index
    %c0_9 = arith.constant 0 : index
    %17 = vector.load %arg3[%c0_8, %c0_9] : memref<128x8xf32, #tpu.memory_space<vmem>>, vector<128x8xf32>
    tpu.vector_store %arg3[%c0_8, %c0_9], %16 {strides = array<i32>} : memref<128x8xf32, #tpu.memory_space<vmem>>, vector<128x8xf32>,
    return
  }
  func.func @transform_0(%arg0: i32) -> (i32, i32, i32) {
    %c0_i32 = arith.constant 0 : i32
    %c0_i32_0 = arith.constant 0 : i32
    %c0_i32_1 = arith.constant 0 : i32
    return %arg0, %c0_i32, %c0_i32_0 : i32, i32, i32
  }
  func.func @transform_1(%arg0: i32) -> (i32, i32) {
    %c0_i32 = arith.constant 0 : i32
    %c0_i32_0 = arith.constant 0 : i32
    %c0_i32_1 = arith.constant 0 : i32
    return %c0_i32, %c0_i32_0 : i32, i32
  }
  func.func @transform_2(%arg0: i32) -> (i32, i32) {
    %c0_i32 = arith.constant 0 : i32
    %c0_i32_0 = arith.constant 0 : i32
    return %arg0, %c0_i32 : i32, i32
  }
}

</mosaic_0001>

<llo_original>
// kernel: tpu_custom_call.1
$region0: #{tpu_custom_call.1}
  #allocation0 [shape = 'u32[]', space=smem, size = 0x4, offset = 0x4, fixed_abs, tag = 'smem constant byte address 0x4 - core index']
  #allocation1 [shape = 'u32[144,128]{1,0:T(1,128)}', space=vmem, size = 0x12000, scoped, tag = 'internal scratch']
  %s0 = inlined_call_operand.vmem [shape: f32[256,8,32], index: 0, kind: input, shape index: {}]
  %s1 = inlined_call_operand.vmem [shape: f32[32,32], index: 1, kind: input, shape index: {}]
  %s2 = inlined_call_operand.vmem [shape: f32[256,8], index: 2, kind: output, shape index: {}]
  %s3 = sld [smem:[#allocation0]]
  $region41: #{tpu_custom_call.1} parent=0
    _
  %s5 = ssub.s32 1, %s3
  %s6 = scalar_select 0, %s5, %s3
  loop: start=0, step=1, limit=4
  $region2: #{tpu_custom_call.1} parent=0 // loop_pre_header
    _
  $region3: #{tpu_custom_call.1} parent=0 // loop_header
    %s8 = sphi 0, %s12
    %p9 = scmp.ge.s32.totalorder %s8, 4
    %s18 = sphi 0, %s20
    %s21 = sphi 0, %s18
    %s22 = sphi 0, %s21
    %s38 = sphi 0, %s22
    %s42 = sphi 0, %s42
    %s44 = sphi 0, %s42
    %s45 = sphi 0, %s44
    %s59 = sphi 0, %s45
    %s65 = sphi 0, %s67
    %s68 = sphi 0, %s65
    %s69 = sphi 0, %s68
    %s85 = sphi 0, %s69
  $region4: #{tpu_custom_call.1} parent=0 // loop_header_branch
    %11 = sbr.rel (%p9) target = $region8
  $region5: #{tpu_custom_call.1} parent=0 // loop_body
    %s13 = ssub.s32 %s8, 1
    %s14 = ssub.s32 %s8, 2
    %s15 = sadd.s32 %s8, 1
    %s16 = ssub.s32 %s8, %s15
    %p17 = scmp.eq.s32.totalorder %s16, 0
    %s19 = sadd.s32 %s18, 1
    %s20 = scalar_select %p17, %s18, %s19
    %p23 = pneg %p17
    %p24 = scmp.eq.s32.totalorder %s8, 1
    %p25 = por %p23, %p24
    %p26 = scmp.ne.s32.totalorder %s18, %s21
    %p27 = scmp.eq.s32.totalorder %s8, 0
    %p28 = por %p26, %p27
    %p29 = scmp.ne.s32.totalorder %s18, %s21
    %p30 = scmp.eq.s32.totalorder %s13, 1
    %p31 = por %p29, %p30
    %p32 = scmp.ne.s32.totalorder %s21, %s22
    %p33 = scmp.eq.s32.totalorder %s13, 0
    %p34 = por %p32, %p33
    %p35 = scmp.ne.s32.totalorder %s21, %s22
    %p36 = scmp.eq.s32.totalorder %s14, 1
    %p37 = por %p35, %p36
    %p39 = scmp.ne.s32.totalorder %s22, %s38
    %p40 = scmp.eq.s32.totalorder %s14, 0
    %p41 = por %p39, %p40
    %s43 = sadd.s32 %s42, 1
    %p46 = scmp.eq.s32.totalorder %s8, 1
    %p47 = scmp.ne.s32.totalorder %s42, %s44
    %p48 = scmp.eq.s32.totalorder %s8, 0
    %p49 = por %p47, %p48
    %p50 = scmp.ne.s32.totalorder %s42, %s44
    %p51 = scmp.eq.s32.totalorder %s13, 1
    %p52 = por %p50, %p51
    %p53 = scmp.ne.s32.totalorder %s44, %s45
    %p54 = scmp.eq.s32.totalorder %s13, 0
    %p55 = por %p53, %p54
    %p56 = scmp.ne.s32.totalorder %s44, %s45
    %p57 = scmp.eq.s32.totalorder %s14, 1
    %p58 = por %p56, %p57
    %p60 = scmp.ne.s32.totalorder %s45, %s59
    %p61 = scmp.eq.s32.totalorder %s14, 0
    %p62 = por %p60, %p61
    %s63 = ssub.s32 %s8, %s15
    %p64 = scmp.eq.s32.totalorder %s63, 0
    %s66 = sadd.s32 %s65, 1
    %s67 = scalar_select %p64, %s65, %s66
    %p70 = pneg %p64
    %p71 = scmp.eq.s32.totalorder %s8, 1
    %p72 = por %p70, %p71
    %p73 = scmp.ne.s32.totalorder %s65, %s68
    %p74 = scmp.eq.s32.totalorder %s8, 0
    %p75 = por %p73, %p74
    %p76 = scmp.ne.s32.totalorder %s65, %s68
    %p77 = scmp.eq.s32.totalorder %s13, 1
    %p78 = por %p76, %p77
    %p79 = scmp.ne.s32.totalorder %s68, %s69
    %p80 = scmp.eq.s32.totalorder %s13, 0
    %p81 = por %p79, %p80
    %p82 = scmp.ne.s32.totalorder %s68, %s69
    %p83 = scmp.eq.s32.totalorder %s14, 1
    %p84 = por %p82, %p83
    %p86 = scmp.ne.s32.totalorder %s69, %s85
    %p87 = scmp.eq.s32.totalorder %s14, 0
    %p88 = por %p86, %p87
    %p89 = scmp.le.s32.totalorder 1, %s8
    %p90 = scmp.lt.s32.totalorder %s8, 3
    %p91 = pnand %p89, %p90
    %p92 = pneg %p91
    // Predicated region
    $region9: #{tpu_custom_call.1} parent=5 // pred_check
      _
    $region10: #{tpu_custom_call.1} parent=5 // pred_check_branch
      %94 = sbr.rel (%p91) target = $region12
    $region11: #{tpu_custom_call.1} parent=5 // pred_region
      %s95 = ssub.s32 %s8, 1
      // Predicated region
      $region13: #{tpu_custom_call.1} parent=11 // pred_check
        %p96 = pneg %p55
      $region14: #{tpu_custom_call.1} parent=11 // pred_check_branch
        %98 = sbr.rel (%p96) target = $region16
      $region15: #{tpu_custom_call.1} parent=11 // pred_region
        _
      $region16: #{tpu_custom_call.1} parent=11 // pred_fallthru
        _
    $region12: #{tpu_custom_call.1} parent=5 // pred_fallthru
      _
    %p99 = scmp.lt.s32.totalorder %s8, 2
    // Predicated region
    $region17: #{tpu_custom_call.1} parent=5 // pred_check
      %p100 = pneg %p99
    $region18: #{tpu_custom_call.1} parent=5 // pred_check_branch
      %102 = sbr.rel (%p100) target = $region20
    $region19: #{tpu_custom_call.1} parent=5 // pred_region
      // Predicated region
      $region21: #{tpu_custom_call.1} parent=19 // pred_check
        %p103 = pneg %p28
      $region22: #{tpu_custom_call.1} parent=19 // pred_check_branch
        %105 = sbr.rel (%p103) target = $region24
      $region23: #{tpu_custom_call.1} parent=19 // pred_region
        %s106 = smul.u32 128, %s8
        %p107 = scmp.lt.s32.totalorder %s106, 255
        %s108 = scalar_select %p107, %s106, 255
        %s109 = smul.addr %s108, 8
        %s110 = scalar_lea.vmem %s0, %s109
        %s111 = smul.u32 128, %s8
      $region24: #{tpu_custom_call.1} parent=19 // pred_fallthru
        _
    $region20: #{tpu_custom_call.1} parent=5 // pred_fallthru
      _
    %p112 = scmp.le.s32.totalorder 1, %s8
    %p113 = scmp.lt.s32.totalorder %s8, 3
    %p114 = pnand %p112, %p113
    %p115 = pneg %p114
    // Predicated region
    $region25: #{tpu_custom_call.1} parent=5 // pred_check
      _
    $region26: #{tpu_custom_call.1} parent=5 // pred_check_branch
      %117 = sbr.rel (%p114) target = $region28
    $region27: #{tpu_custom_call.1} parent=5 // pred_region
      %s118 = ssub.s32 %s8, 1
      %s119 = smul.u32 128, %s13
      %p120 = scmp.lt.s32.totalorder %s119, 255
      %s121 = scalar_select %p120, %s119, 255
      %s122 = smul.addr %s121, 8
      %s123 = scalar_lea.vmem %s0, %s122
      %p124 = pneg %p34
      %p125 = pneg %p31
      %p126 = pneg %p55
      %p127 = pneg %p52
      %p128 = pneg %p81
      %p129 = pneg %p78
      %s130 = smul.u32 16, %s13
      %p131 = scmp.lt.s32.totalorder %s130, 31
      %s132 = scalar_select %p131, %s130, 31
      %s133 = smul.addr %s132, 8
      %s134 = scalar_lea.vmem %s2, %s133
      %s135 = smul.u32 128, %s13
      %p136 = scmp.lt.s32.totalorder %s135, 255
      %s137 = scalar_select %p136, %s135, 255
      %s138 = smul.addr %s137, 8
      %s139 = scalar_lea.vmem %s0, %s138
      %s140 = smul.u32 128, %s13
      %s141 = smul.u32 16, %s13
      %p142 = scmp.lt.s32.totalorder %s141, 31
      %s143 = scalar_select %p142, %s141, 31
      %s144 = smul.addr %s143, 8
      %s145 = scalar_lea.vmem %s2, %s144
      %s146 = smul.u32 16, %s13
      %v147 = vld [vmem:[%s139] sm:$0xff]
      %v148 = vld [vmem:[%s139 + $0x8] sm:$0xff]
      %v149 = vld [vmem:[%s139 + $0x10] sm:$0xff]
      %v150 = vld [vmem:[%s139 + $0x18] sm:$0xff]
      %v151 = vld [vmem:[%s139 + $0x20] sm:$0xff]
      %v152 = vld [vmem:[%s139 + $0x28] sm:$0xff]
      %v153 = vld [vmem:[%s139 + $0x30] sm:$0xff]
      %v154 = vld [vmem:[%s139 + $0x38] sm:$0xff]
      %v155 = vld [vmem:[%s139 + $0x40] sm:$0xff]
      %v156 = vld [vmem:[%s139 + $0x48] sm:$0xff]
      %v157 = vld [vmem:[%s139 + $0x50] sm:$0xff]
      %v158 = vld [vmem:[%s139 + $0x58] sm:$0xff]
      %v159 = vld [vmem:[%s139 + $0x60] sm:$0xff]
      %v160 = vld [vmem:[%s139 + $0x68] sm:$0xff]
      %v161 = vld [vmem:[%s139 + $0x70] sm:$0xff]
      %v162 = vld [vmem:[%s139 + $0x78] sm:$0xff]
      %v163 = vld [vmem:[%s139 + $0x80] sm:$0xff]
      %v164 = vld [vmem:[%s139 + $0x88] sm:$0xff]
      %v165 = vld [vmem:[%s139 + $0x90] sm:$0xff]
      %v166 = vld [vmem:[%s139 + $0x98] sm:$0xff]
      %v167 = vld [vmem:[%s139 + $0xa0] sm:$0xff]
      %v168 = vld [vmem:[%s139 + $0xa8] sm:$0xff]
      %v169 = vld [vmem:[%s139 + $0xb0] sm:$0xff]
      %v170 = vld [vmem:[%s139 + $0xb8] sm:$0xff]
      %v171 = vld [vmem:[%s139 + $0xc0] sm:$0xff]
      %v172 = vld [vmem:[%s139 + $0xc8] sm:$0xff]
      %v173 = vld [vmem:[%s139 + $0xd0] sm:$0xff]
      %v174 = vld [vmem:[%s139 + $0xd8] sm:$0xff]
      %v175 = vld [vmem:[%s139 + $0xe0] sm:$0xff]
      %v176 = vld [vmem:[%s139 + $0xe8] sm:$0xff]
      %v177 = vld [vmem:[%s139 + $0xf0] sm:$0xff]
      %v178 = vld [vmem:[%s139 + $0xf8] sm:$0xff]
      %v179 = vld [vmem:[%s139 + $0x100] sm:$0xff]
      %v180 = vld [vmem:[%s139 + $0x108] sm:$0xff]
      %v181 = vld [vmem:[%s139 + $0x110] sm:$0xff]
      %v182 = vld [vmem:[%s139 + $0x118] sm:$0xff]
      %v183 = vld [vmem:[%s139 + $0x120] sm:$0xff]
      %v184 = vld [vmem:[%s139 + $0x128] sm:$0xff]
      %v185 = vld [vmem:[%s139 + $0x130] sm:$0xff]
      %v186 = vld [vmem:[%s139 + $0x138] sm:$0xff]
      %v187 = vld [vmem:[%s139 + $0x140] sm:$0xff]
      %v188 = vld [vmem:[%s139 + $0x148] sm:$0xff]
      %v189 = vld [vmem:[%s139 + $0x150] sm:$0xff]
      %v190 = vld [vmem:[%s139 + $0x158] sm:$0xff]
      %v191 = vld [vmem:[%s139 + $0x160] sm:$0xff]
      %v192 = vld [vmem:[%s139 + $0x168] sm:$0xff]
      %v193 = vld [vmem:[%s139 + $0x170] sm:$0xff]
      %v194 = vld [vmem:[%s139 + $0x178] sm:$0xff]
      %v195 = vld [vmem:[%s139 + $0x180] sm:$0xff]
      %v196 = vld [vmem:[%s139 + $0x188] sm:$0xff]
      %v197 = vld [vmem:[%s139 + $0x190] sm:$0xff]
      %v198 = vld [vmem:[%s139 + $0x198] sm:$0xff]
      %v199 = vld [vmem:[%s139 + $0x1a0] sm:$0xff]
      %v200 = vld [vmem:[%s139 + $0x1a8] sm:$0xff]
      %v201 = vld [vmem:[%s139 + $0x1b0] sm:$0xff]
      %v202 = vld [vmem:[%s139 + $0x1b8] sm:$0xff]
      %v203 = vld [vmem:[%s139 + $0x1c0] sm:$0xff]
      %v204 = vld [vmem:[%s139 + $0x1c8] sm:$0xff]
      %v205 = vld [vmem:[%s139 + $0x1d0] sm:$0xff]
      %v206 = vld [vmem:[%s139 + $0x1d8] sm:$0xff]
      %v207 = vld [vmem:[%s139 + $0x1e0] sm:$0xff]
      %v208 = vld [vmem:[%s139 + $0x1e8] sm:$0xff]
      %v209 = vld [vmem:[%s139 + $0x1f0] sm:$0xff]
      %v210 = vld [vmem:[%s139 + $0x1f8] sm:$0xff]
      %v211 = vld [vmem:[%s139 + $0x200] sm:$0xff]
      %v212 = vld [vmem:[%s139 + $0x208] sm:$0xff]
      %v213 = vld [vmem:[%s139 + $0x210] sm:$0xff]
      %v214 = vld [vmem:[%s139 + $0x218] sm:$0xff]
      %v215 = vld [vmem:[%s139 + $0x220] sm:$0xff]
      %v216 = vld [vmem:[%s139 + $0x228] sm:$0xff]
      %v217 = vld [vmem:[%s139 + $0x230] sm:$0xff]
      %v218 = vld [vmem:[%s139 + $0x238] sm:$0xff]
      %v219 = vld [vmem:[%s139 + $0x240] sm:$0xff]
      %v220 = vld [vmem:[%s139 + $0x248] sm:$0xff]
      %v221 = vld [vmem:[%s139 + $0x250] sm:$0xff]
      %v222 = vld [vmem:[%s139 + $0x258] sm:$0xff]
      %v223 = vld [vmem:[%s139 + $0x260] sm:$0xff]
      %v224 = vld [vmem:[%s139 + $0x268] sm:$0xff]
      %v225 = vld [vmem:[%s139 + $0x270] sm:$0xff]
      %v226 = vld [vmem:[%s139 + $0x278] sm:$0xff]
      %v227 = vld [vmem:[%s139 + $0x280] sm:$0xff]
      %v228 = vld [vmem:[%s139 + $0x288] sm:$0xff]
      %v229 = vld [vmem:[%s139 + $0x290] sm:$0xff]
      %v230 = vld [vmem:[%s139 + $0x298] sm:$0xff]
      %v231 = vld [vmem:[%s139 + $0x2a0] sm:$0xff]
      %v232 = vld [vmem:[%s139 + $0x2a8] sm:$0xff]
      %v233 = vld [vmem:[%s139 + $0x2b0] sm:$0xff]
      %v234 = vld [vmem:[%s139 + $0x2b8] sm:$0xff]
      %v235 = vld [vmem:[%s139 + $0x2c0] sm:$0xff]
      %v236 = vld [vmem:[%s139 + $0x2c8] sm:$0xff]
      %v237 = vld [vmem:[%s139 + $0x2d0] sm:$0xff]
      %v238 = vld [vmem:[%s139 + $0x2d8] sm:$0xff]
      %v239 = vld [vmem:[%s139 + $0x2e0] sm:$0xff]
      %v240 = vld [vmem:[%s139 + $0x2e8] sm:$0xff]
      %v241 = vld [vmem:[%s139 + $0x2f0] sm:$0xff]
      %v242 = vld [vmem:[%s139 + $0x2f8] sm:$0xff]
      %v243 = vld [vmem:[%s139 + $0x300] sm:$0xff]
      %v244 = vld [vmem:[%s139 + $0x308] sm:$0xff]
      %v245 = vld [vmem:[%s139 + $0x310] sm:$0xff]
      %v246 = vld [vmem:[%s139 + $0x318] sm:$0xff]
      %v247 = vld [vmem:[%s139 + $0x320] sm:$0xff]
      %v248 = vld [vmem:[%s139 + $0x328] sm:$0xff]
      %v249 = vld [vmem:[%s139 + $0x330] sm:$0xff]
      %v250 = vld [vmem:[%s139 + $0x338] sm:$0xff]
      %v251 = vld [vmem:[%s139 + $0x340] sm:$0xff]
      %v252 = vld [vmem:[%s139 + $0x348] sm:$0xff]
      %v253 = vld [vmem:[%s139 + $0x350] sm:$0xff]
      %v254 = vld [vmem:[%s139 + $0x358] sm:$0xff]
      %v255 = vld [vmem:[%s139 + $0x360] sm:$0xff]
      %v256 = vld [vmem:[%s139 + $0x368] sm:$0xff]
      %v257 = vld [vmem:[%s139 + $0x370] sm:$0xff]
      %v258 = vld [vmem:[%s139 + $0x378] sm:$0xff]
      %v259 = vld [vmem:[%s139 + $0x380] sm:$0xff]
      %v260 = vld [vmem:[%s139 + $0x388] sm:$0xff]
      %v261 = vld [vmem:[%s139 + $0x390] sm:$0xff]
      %v262 = vld [vmem:[%s139 + $0x398] sm:$0xff]
      %v263 = vld [vmem:[%s139 + $0x3a0] sm:$0xff]
      %v264 = vld [vmem:[%s139 + $0x3a8] sm:$0xff]
      %v265 = vld [vmem:[%s139 + $0x3b0] sm:$0xff]
      %v266 = vld [vmem:[%s139 + $0x3b8] sm:$0xff]
      %v267 = vld [vmem:[%s139 + $0x3c0] sm:$0xff]
      %v268 = vld [vmem:[%s139 + $0x3c8] sm:$0xff]
      %v269 = vld [vmem:[%s139 + $0x3d0] sm:$0xff]
      %v270 = vld [vmem:[%s139 + $0x3d8] sm:$0xff]
      %v271 = vld [vmem:[%s139 + $0x3e0] sm:$0xff]
      %v272 = vld [vmem:[%s139 + $0x3e8] sm:$0xff]
      %v273 = vld [vmem:[%s139 + $0x3f0] sm:$0xff]
      %v274 = vld [vmem:[%s139 + $0x3f8] sm:$0xff]
      %v275 = vld [vmem:[%s1] sm:$0xff]
      %v276 = vld [vmem:[%s1 + $0x8] sm:$0xff]
      %v277 = vld [vmem:[%s1 + $0x10] sm:$0xff]
      %v278 = vld [vmem:[%s1 + $0x18] sm:$0xff]
      %vm279 = vcmask 261120
      %v281 = vsel %vm279, %v147, 0
      %v284 = vsel %vm279, %v148, 0
      %v287 = vsel %vm279, %v149, 0
      %v290 = vsel %vm279, %v150, 0
      %v293 = vsel %vm279, %v151, 0
      %v296 = vsel %vm279, %v152, 0
      %v299 = vsel %vm279, %v153, 0
      %v302 = vsel %vm279, %v154, 0
      %v305 = vsel %vm279, %v155, 0
      %v308 = vsel %vm279, %v156, 0
      %v311 = vsel %vm279, %v157, 0
      %v314 = vsel %vm279, %v158, 0
      %v317 = vsel %vm279, %v159, 0
      %v320 = vsel %vm279, %v160, 0
      %v323 = vsel %vm279, %v161, 0
      %v326 = vsel %vm279, %v162, 0
      %v329 = vsel %vm279, %v163, 0
      %v332 = vsel %vm279, %v164, 0
      %v335 = vsel %vm279, %v165, 0
      %v338 = vsel %vm279, %v166, 0
      %v341 = vsel %vm279, %v167, 0
      %v344 = vsel %vm279, %v168, 0
      %v347 = vsel %vm279, %v169, 0
      %v350 = vsel %vm279, %v170, 0
      %v353 = vsel %vm279, %v171, 0
      %v356 = vsel %vm279, %v172, 0
      %v359 = vsel %vm279, %v173, 0
      %v362 = vsel %vm279, %v174, 0
      %v365 = vsel %vm279, %v175, 0
      %v368 = vsel %vm279, %v176, 0
      %v371 = vsel %vm279, %v177, 0
      %v374 = vsel %vm279, %v178, 0
      %v377 = vsel %vm279, %v179, 0
      %v380 = vsel %vm279, %v180, 0
      %v383 = vsel %vm279, %v181, 0
      %v386 = vsel %vm279, %v182, 0
      %v389 = vsel %vm279, %v183, 0
      %v392 = vsel %vm279, %v184, 0
      %v395 = vsel %vm279, %v185, 0
      %v398 = vsel %vm279, %v186, 0
      %v401 = vsel %vm279, %v187, 0
      %v404 = vsel %vm279, %v188, 0
      %v407 = vsel %vm279, %v189, 0
      %v410 = vsel %vm279, %v190, 0
      %v413 = vsel %vm279, %v191, 0
      %v416 = vsel %vm279, %v192, 0
      %v419 = vsel %vm279, %v193, 0
      %v422 = vsel %vm279, %v194, 0
      %v425 = vsel %vm279, %v195, 0
      %v428 = vsel %vm279, %v196, 0
      %v431 = vsel %vm279, %v197, 0
      %v434 = vsel %vm279, %v198, 0
      %v437 = vsel %vm279, %v199, 0
      %v440 = vsel %vm279, %v200, 0
      %v443 = vsel %vm279, %v201, 0
      %v446 = vsel %vm279, %v202, 0
      %v449 = vsel %vm279, %v203, 0
      %v452 = vsel %vm279, %v204, 0
      %v455 = vsel %vm279, %v205, 0
      %v458 = vsel %vm279, %v206, 0
      %v461 = vsel %vm279, %v207, 0
      %v464 = vsel %vm279, %v208, 0
      %v467 = vsel %vm279, %v209, 0
      %v470 = vsel %vm279, %v210, 0
      %v473 = vsel %vm279, %v211, 0
      %v476 = vsel %vm279, %v212, 0
      %v479 = vsel %vm279, %v213, 0
      %v482 = vsel %vm279, %v214, 0
      %v485 = vsel %vm279, %v215, 0
      %v488 = vsel %vm279, %v216, 0
      %v491 = vsel %vm279, %v217, 0
      %v494 = vsel %vm279, %v218, 0
      %v497 = vsel %vm279, %v219, 0
      %v500 = vsel %vm279, %v220, 0
      %v503 = vsel %vm279, %v221, 0
      %v506 = vsel %vm279, %v222, 0
      %v509 = vsel %vm279, %v223, 0
      %v512 = vsel %vm279, %v224, 0
      %v515 = vsel %vm279, %v225, 0
      %v518 = vsel %vm279, %v226, 0
      %v521 = vsel %vm279, %v227, 0
      %v524 = vsel %vm279, %v228, 0
      %v527 = vsel %vm279, %v229, 0
      %v530 = vsel %vm279, %v230, 0
      %v533 = vsel %vm279, %v231, 0
      %v536 = vsel %vm279, %v232, 0
      %v539 = vsel %vm279, %v233, 0
      %v542 = vsel %vm279, %v234, 0
      %v545 = vsel %vm279, %v235, 0
      %v548 = vsel %vm279, %v236, 0
      %v551 = vsel %vm279, %v237, 0
      %v554 = vsel %vm279, %v238, 0
      %v557 = vsel %vm279, %v239, 0
      %v560 = vsel %vm279, %v240, 0
      %v563 = vsel %vm279, %v241, 0
      %v566 = vsel %vm279, %v242, 0
      %v569 = vsel %vm279, %v243, 0
      %v572 = vsel %vm279, %v244, 0
      %v575 = vsel %vm279, %v245, 0
      %v578 = vsel %vm279, %v246, 0
      %v581 = vsel %vm279, %v247, 0
      %v584 = vsel %vm279, %v248, 0
      %v587 = vsel %vm279, %v249, 0
      %v590 = vsel %vm279, %v250, 0
      %v593 = vsel %vm279, %v251, 0
      %v596 = vsel %vm279, %v252, 0
      %v599 = vsel %vm279, %v253, 0
      %v602 = vsel %vm279, %v254, 0
      %v605 = vsel %vm279, %v255, 0
      %v608 = vsel %vm279, %v256, 0
      %v611 = vsel %vm279, %v257, 0
      %v614 = vsel %vm279, %v258, 0
      %v617 = vsel %vm279, %v259, 0
      %v620 = vsel %vm279, %v260, 0
      %v623 = vsel %vm279, %v261, 0
      %v626 = vsel %vm279, %v262, 0
      %v629 = vsel %vm279, %v263, 0
      %v632 = vsel %vm279, %v264, 0
      %v635 = vsel %vm279, %v265, 0
      %v638 = vsel %vm279, %v266, 0
      %v641 = vsel %vm279, %v267, 0
      %v644 = vsel %vm279, %v268, 0
      %v647 = vsel %vm279, %v269, 0
      %v650 = vsel %vm279, %v270, 0
      %v653 = vsel %vm279, %v271, 0
      %v656 = vsel %vm279, %v272, 0
      %v659 = vsel %vm279, %v273, 0
      %v662 = vsel %vm279, %v274, 0
      %664 = vmatprep.subr.mxu0 0.0
      %665 = vmatpush1.msra.mxu0 %v275
      %666 = vmatprep.subr.mxu0 0.0
      %667 = vmatpush1.msra.mxu0 %v276
      %668 = vmatprep.subr.mxu0 0.0
      %669 = vmatpush1.msra.mxu0 %v277
      %670 = vmatprep.subr.mxu0 0.0
      %671 = vmatpush1.msra.mxu0 %v278
      %672 = vmatprep.subr.mxu0 0.0
      %673 = vmatpush1.msra.mxu0 0.0
      %674 = vmatprep.subr.mxu0 0.0
      %675 = vmatpush1.msra.mxu0 0.0
      %676 = vmatprep.subr.mxu0 0.0
      %677 = vmatpush1.msra.mxu0 0.0
      %678 = vmatprep.subr.mxu0 0.0
      %679 = vmatpush1.msra.mxu0 0.0
      %680 = vmatprep.subr.mxu0 0.0
      %681 = vmatpush1.msra.mxu0 0.0
      %682 = vmatprep.subr.mxu0 0.0
      %683 = vmatpush1.msra.mxu0 0.0
      %684 = vmatprep.subr.mxu0 0.0
      %685 = vmatpush1.msra.mxu0 0.0
      %686 = vmatprep.subr.mxu0 0.0
      %687 = vmatpush1.msra.mxu0 0.0
      %688 = vmatprep.subr.mxu0 0.0
      %689 = vmatpush1.msra.mxu0 0.0
      %690 = vmatprep.subr.mxu0 0.0
      %691 = vmatpush1.msra.mxu0 0.0
      %692 = vmatprep.subr.mxu0 0.0
      %693 = vmatpush1.msra.mxu0 0.0
      %694 = vmatprep.subr.mxu0 0.0
      %695 = vmatpush1.msra.mxu0 0.0
      %696 = vmatprep.subr.mxu0 0.0
      %697 = vmatpush1.msra.mxu0 0.0
      %698 = vmatprep.subr.mxu0 0.0
      %699 = vmatpush1.msra.mxu0 0.0
      %700 = vmatprep.subr.mxu0 0.0
      %701 = vmatpush1.msra.mxu0 0.0
      %702 = vmatprep.subr.mxu0 0.0
      %703 = vmatpush1.msra.mxu0 0.0
      %704 = vmatprep.subr.mxu0 0.0
      %705 = vmatpush1.msra.mxu0 0.0
      %706 = vmatprep.subr.mxu0 0.0
      %707 = vmatpush1.msra.mxu0 0.0
      %708 = vmatprep.subr.mxu0 0.0
      %709 = vmatpush1.msra.mxu0 0.0
      %710 = vmatprep.subr.mxu0 0.0
      %711 = vmatpush1.msra.mxu0 0.0
      %712 = vmatprep.subr.mxu0 0.0
      %713 = vmatpush1.msra.mxu0 0.0
      %714 = vmatprep.subr.mxu0 0.0
      %715 = vmatpush1.msra.mxu0 0.0
      %716 = vmatprep.subr.mxu0 0.0
      %717 = vmatpush1.msra.mxu0 0.0
      %718 = vmatprep.subr.mxu0 0.0
      %719 = vmatpush1.msra.mxu0 0.0
      %720 = vmatprep.subr.mxu0 0.0
      %721 = vmatpush1.msra.mxu0 0.0
      %722 = vmatprep.subr.mxu0 0.0
      %723 = vmatpush1.msra.mxu0 0.0
      %724 = vmatprep.subr.mxu0 0.0
      %725 = vmatpush1.msra.mxu0 0.0
      %726 = vmatprep.subr.mxu0 0.0
      %727 = vmatpush1.msra.mxu0 0.0
      %728 = vmatprep.mubr.f32.mxu0 0.0
      %729 = vmatmul.mubr.f32.gmra.mrb[0].mxu0 %v281
      %v730 = vpop.f32.mrb[0].mxu0
      %v731 = vadd.f32 0.0, %v730
      %v732 = vpop.f32.mrb[0].mxu0
      %733 = vmatprep.mubr.f32.mxu0 0.0
      %734 = vmatmul.mubr.f32.gmra.mrb[0].mxu0 %v284
      %v735 = vpop.f32.mrb[0].mxu0
      %v736 = vadd.f32 0.0, %v735
      %v737 = vpop.f32.mrb[0].mxu0
      %738 = vmatprep.mubr.f32.mxu0 0.0
      %739 = vmatmul.mubr.f32.gmra.mrb[0].mxu0 %v287
      %v740 = vpop.f32.mrb[0].mxu0
      %v741 = vadd.f32 0.0, %v740
      %v742 = vpop.f32.mrb[0].mxu0
      %743 = vmatprep.mubr.f32.mxu0 0.0
      %744 = vmatmul.mubr.f32.gmra.mrb[0].mxu0 %v290
      %v745 = vpop.f32.mrb[0].mxu0
      %v746 = vadd.f32 0.0, %v745
      %v747 = vpop.f32.mrb[0].mxu0
      %748 = vmatprep.mubr.f32.mxu0 0.0
      %749 = vmatmul.mubr.f32.gmra.mrb[0].mxu0 %v293
      %v750 = vpop.f32.mrb[0].mxu0
      %v751 = vadd.f32 0.0, %v750
      %v752 = vpop.f32.mrb[0].mxu0
      %753 = vmatprep.mubr.f32.mxu0 0.0
      %754 = vmatmul.mubr.f32.gmra.mrb[0].mxu0 %v296
      %v755 = vpop.f32.mrb[0].mxu0
      %v756 = vadd.f32 0.0, %v755
      %v757 = vpop.f32.mrb[0].mxu0
      %758 = vmatprep.mubr.f32.mxu0 0.0
      %759 = vmatmul.mubr.f32.gmra.mrb[0].mxu0 %v299
      %v760 = vpop.f32.mrb[0].mxu0
      %v761 = vadd.f32 0.0, %v760
      %v762 = vpop.f32.mrb[0].mxu0
      %763 = vmatprep.mubr.f32.mxu0 0.0
      %764 = vmatmul.mubr.f32.gmra.mrb[0].mxu0 %v302
      %v765 = vpop.f32.mrb[0].mxu0
      %v766 = vadd.f32 0.0, %v765
      %v767 = vpop.f32.mrb[0].mxu0
      %768 = vmatprep.mubr.f32.mxu0 0.0
      %769 = vmatmul.mubr.f32.gmra.mrb[0].mxu0 %v305
      %v770 = vpop.f32.mrb[0].mxu0
      %v771 = vadd.f32 0.0, %v770
      %v772 = vpop.f32.mrb[0].mxu0
      %773 = vmatprep.mubr.f32.mxu0 0.0
      %774 = vmatmul.mubr.f32.gmra.mrb[0].mxu0 %v308
      %v775 = vpop.f32.mrb[0].mxu0
      %v776 = vadd.f32 0.0, %v775
      %v777 = vpop.f32.mrb[0].mxu0
      %778 = vmatprep.mubr.f32.mxu0 0.0
      %779 = vmatmul.mubr.f32.gmra.mrb[0].mxu0 %v311
      %v780 = vpop.f32.mrb[0].mxu0
      %v781 = vadd.f32 0.0, %v780
      %v782 = vpop.f32.mrb[0].mxu0
      %783 = vmatprep.mubr.f32.mxu0 0.0
      %784 = vmatmul.mubr.f32.gmra.mrb[0].mxu0 %v314
      %v785 = vpop.f32.mrb[0].mxu0
      %v786 = vadd.f32 0.0, %v785
      %v787 = vpop.f32.mrb[0].mxu0
      %788 = vmatprep.mubr.f32.mxu0 0.0
      %789 = vmatmul.mubr.f32.gmra.mrb[0].mxu0 %v317
      %v790 = vpop.f32.mrb[0].mxu0
      %v791 = vadd.f32 0.0, %v790
      %v792 = vpop.f32.mrb[0].mxu0
      %793 = vmatprep.mubr.f32.mxu0 0.0
      %794 = vmatmul.mubr.f32.gmra.mrb[0].mxu0 %v320
      %v795 = vpop.f32.mrb[0].mxu0
      %v796 = vadd.f32 0.0, %v795
      %v797 = vpop.f32.mrb[0].mxu0
      %798 = vmatprep.mubr.f32.mxu0 0.0
      %799 = vmatmul.mubr.f32.gmra.mrb[0].mxu0 %v323
      %v800 = vpop.f32.mrb[0].mxu0
      %v801 = vadd.f32 0.0, %v800
      %v802 = vpop.f32.mrb[0].mxu0
      %803 = vmatprep.mubr.f32.mxu0 0.0
      %804 = vmatmul.mubr.f32.gmra.mrb[0].mxu0 %v326
      %v805 = vpop.f32.mrb[0].mxu0
      %v806 = vadd.f32 0.0, %v805
      %v807 = vpop.f32.mrb[0].mxu0
      %808 = vmatprep.mubr.f32.mxu0 0.0
      %809 = vmatmul.mubr.f32.gmra.mrb[0].mxu0 %v329
      %v810 = vpop.f32.mrb[0].mxu0
      %v811 = vadd.f32 0.0, %v810
      %v812 = vpop.f32.mrb[0].mxu0
      %813 = vmatprep.mubr.f32.mxu0 0.0
      %814 = vmatmul.mubr.f32.gmra.mrb[0].mxu0 %v332
      %v815 = vpop.f32.mrb[0].mxu0
      %v816 = vadd.f32 0.0, %v815
      %v817 = vpop.f32.mrb[0].mxu0
      %818 = vmatprep.mubr.f32.mxu0 0.0
      %819 = vmatmul.mubr.f32.gmra.mrb[0].mxu0 %v335
      %v820 = vpop.f32.mrb[0].mxu0
      %v821 = vadd.f32 0.0, %v820
      %v822 = vpop.f32.mrb[0].mxu0
      %823 = vmatprep.mubr.f32.mxu0 0.0
      %824 = vmatmul.mubr.f32.gmra.mrb[0].mxu0 %v338
      %v825 = vpop.f32.mrb[0].mxu0
      %v826 = vadd.f32 0.0, %v825
      %v827 = vpop.f32.mrb[0].mxu0
      %828 = vmatprep.mubr.f32.mxu0 0.0
      %829 = vmatmul.mubr.f32.gmra.mrb[0].mxu0 %v341
      %v830 = vpop.f32.mrb[0].mxu0
      %v831 = vadd.f32 0.0, %v830
      %v832 = vpop.f32.mrb[0].mxu0
      %833 = vmatprep.mubr.f32.mxu0 0.0
      %834 = vmatmul.mubr.f32.gmra.mrb[0].mxu0 %v344
      %v835 = vpop.f32.mrb[0].mxu0
      %v836 = vadd.f32 0.0, %v835
      %v837 = vpop.f32.mrb[0].mxu0
      %838 = vmatprep.mubr.f32.mxu0 0.0
      %839 = vmatmul.mubr.f32.gmra.mrb[0].mxu0 %v347
      %v840 = vpop.f32.mrb[0].mxu0
      %v841 = vadd.f32 0.0, %v840
      %v842 = vpop.f32.mrb[0].mxu0
      %843 = vmatprep.mubr.f32.mxu0 0.0
      %844 = vmatmul.mubr.f32.gmra.mrb[0].mxu0 %v350
      %v845 = vpop.f32.mrb[0].mxu0
      %v846 = vadd.f32 0.0, %v845
      %v847 = vpop.f32.mrb[0].mxu0
      %848 = vmatprep.mubr.f32.mxu0 0.0
      %849 = vmatmul.mubr.f32.gmra.mrb[0].mxu0 %v353
      %v850 = vpop.f32.mrb[0].mxu0
      %v851 = vadd.f32 0.0, %v850
      %v852 = vpop.f32.mrb[0].mxu0
      %853 = vmatprep.mubr.f32.mxu0 0.0
      %854 = vmatmul.mubr.f32.gmra.mrb[0].mxu0 %v356
      %v855 = vpop.f32.mrb[0].mxu0
      %v856 = vadd.f32 0.0, %v855
      %v857 = vpop.f32.mrb[0].mxu0
      %858 = vmatprep.mubr.f32.mxu0 0.0
      %859 = vmatmul.mubr.f32.gmra.mrb[0].mxu0 %v359
      %v860 = vpop.f32.mrb[0].mxu0
      %v861 = vadd.f32 0.0, %v860
      %v862 = vpop.f32.mrb[0].mxu0
      %863 = vmatprep.mubr.f32.mxu0 0.0
      %864 = vmatmul.mubr.f32.gmra.mrb[0].mxu0 %v362
      %v865 = vpop.f32.mrb[0].mxu0
      %v866 = vadd.f32 0.0, %v865
      %v867 = vpop.f32.mrb[0].mxu0
      %868 = vmatprep.mubr.f32.mxu0 0.0
      %869 = vmatmul.mubr.f32.gmra.mrb[0].mxu0 %v365
      %v870 = vpop.f32.mrb[0].mxu0
      %v871 = vadd.f32 0.0, %v870
      %v872 = vpop.f32.mrb[0].mxu0
      %873 = vmatprep.mubr.f32.mxu0 0.0
      %874 = vmatmul.mubr.f32.gmra.mrb[0].mxu0 %v368
      %v875 = vpop.f32.mrb[0].mxu0
      %v876 = vadd.f32 0.0, %v875
      %v877 = vpop.f32.mrb[0].mxu0
      %878 = vmatprep.mubr.f32.mxu0 0.0
      %879 = vmatmul.mubr.f32.gmra.mrb[0].mxu0 %v371
      %v880 = vpop.f32.mrb[0].mxu0
      %v881 = vadd.f32 0.0, %v880
      %v882 = vpop.f32.mrb[0].mxu0
      %883 = vmatprep.mubr.f32.mxu0 0.0
      %884 = vmatmul.mubr.f32.gmra.mrb[0].mxu0 %v374
      %v885 = vpop.f32.mrb[0].mxu0
      %v886 = vadd.f32 0.0, %v885
      %v887 = vpop.f32.mrb[0].mxu0
      %888 = vmatprep.mubr.f32.mxu0 0.0
      %889 = vmatmul.mubr.f32.gmra.mrb[0].mxu0 %v377
      %v890 = vpop.f32.mrb[0].mxu0
      %v891 = vadd.f32 0.0, %v890
      %v892 = vpop.f32.mrb[0].mxu0
      %893 = vmatprep.mubr.f32.mxu0 0.0
      %894 = vmatmul.mubr.f32.gmra.mrb[0].mxu0 %v380
      %v895 = vpop.f32.mrb[0].mxu0
      %v896 = vadd.f32 0.0, %v895
      %v897 = vpop.f32.mrb[0].mxu0
      %898 = vmatprep.mubr.f32.mxu0 0.0
      %899 = vmatmul.mubr.f32.gmra.mrb[0].mxu0 %v383
      %v900 = vpop.f32.mrb[0].mxu0
      %v901 = vadd.f32 0.0, %v900
      %v902 = vpop.f32.mrb[0].mxu0
      %903 = vmatprep.mubr.f32.mxu0 0.0
      %904 = vmatmul.mubr.f32.gmra.mrb[0].mxu0 %v386
      %v905 = vpop.f32.mrb[0].mxu0
      %v906 = vadd.f32 0.0, %v905
      %v907 = vpop.f32.mrb[0].mxu0
      %908 = vmatprep.mubr.f32.mxu0 0.0
      %909 = vmatmul.mubr.f32.gmra.mrb[0].mxu0 %v389
      %v910 = vpop.f32.mrb[0].mxu0
      %v911 = vadd.f32 0.0, %v910
      %v912 = vpop.f32.mrb[0].mxu0
      %913 = vmatprep.mubr.f32.mxu0 0.0
      %914 = vmatmul.mubr.f32.gmra.mrb[0].mxu0 %v392
      %v915 = vpop.f32.mrb[0].mxu0
      %v916 = vadd.f32 0.0, %v915
      %v917 = vpop.f32.mrb[0].mxu0
      %918 = vmatprep.mubr.f32.mxu0 0.0
      %919 = vmatmul.mubr.f32.gmra.mrb[0].mxu0 %v395
      %v920 = vpop.f32.mrb[0].mxu0
      %v921 = vadd.f32 0.0, %v920
      %v922 = vpop.f32.mrb[0].mxu0
      %923 = vmatprep.mubr.f32.mxu0 0.0
      %924 = vmatmul.mubr.f32.gmra.mrb[0].mxu0 %v398
      %v925 = vpop.f32.mrb[0].mxu0
      %v926 = vadd.f32 0.0, %v925
      %v927 = vpop.f32.mrb[0].mxu0
      %928 = vmatprep.mubr.f32.mxu0 0.0
      %929 = vmatmul.mubr.f32.gmra.mrb[0].mxu0 %v401
      %v930 = vpop.f32.mrb[0].mxu0
      %v931 = vadd.f32 0.0, %v930
      %v932 = vpop.f32.mrb[0].mxu0
      %933 = vmatprep.mubr.f32.mxu0 0.0
      %934 = vmatmul.mubr.f32.gmra.mrb[0].mxu0 %v404
      %v935 = vpop.f32.mrb[0].mxu0
      %v936 = vadd.f32 0.0, %v935
      %v937 = vpop.f32.mrb[0].mxu0
      %938 = vmatprep.mubr.f32.mxu0 0.0
      %939 = vmatmul.mubr.f32.gmra.mrb[0].mxu0 %v407
      %v940 = vpop.f32.mrb[0].mxu0
      %v941 = vadd.f32 0.0, %v940
      %v942 = vpop.f32.mrb[0].mxu0
      %943 = vmatprep.mubr.f32.mxu0 0.0
      %944 = vmatmul.mubr.f32.gmra.mrb[0].mxu0 %v410
      %v945 = vpop.f32.mrb[0].mxu0
      %v946 = vadd.f32 0.0, %v945
      %v947 = vpop.f32.mrb[0].mxu0
      %948 = vmatprep.mubr.f32.mxu0 0.0
      %949 = vmatmul.mubr.f32.gmra.mrb[0].mxu0 %v413
      %v950 = vpop.f32.mrb[0].mxu0
      %v951 = vadd.f32 0.0, %v950
      %v952 = vpop.f32.mrb[0].mxu0
      %953 = vmatprep.mubr.f32.mxu0 0.0
      %954 = vmatmul.mubr.f32.gmra.mrb[0].mxu0 %v416
      %v955 = vpop.f32.mrb[0].mxu0
      %v956 = vadd.f32 0.0, %v955
      %v957 = vpop.f32.mrb[0].mxu0
      %958 = vmatprep.mubr.f32.mxu0 0.0
      %959 = vmatmul.mubr.f32.gmra.mrb[0].mxu0 %v419
      %v960 = vpop.f32.mrb[0].mxu0
      %v961 = vadd.f32 0.0, %v960
      %v962 = vpop.f32.mrb[0].mxu0
      %963 = vmatprep.mubr.f32.mxu0 0.0
      %964 = vmatmul.mubr.f32.gmra.mrb[0].mxu0 %v422
      %v965 = vpop.f32.mrb[0].mxu0
      %v966 = vadd.f32 0.0, %v965
      %v967 = vpop.f32.mrb[0].mxu0
      %968 = vmatprep.mubr.f32.mxu0 0.0
      %969 = vmatmul.mubr.f32.gmra.mrb[0].mxu0 %v425
      %v970 = vpop.f32.mrb[0].mxu0
      %v971 = vadd.f32 0.0, %v970
      %v972 = vpop.f32.mrb[0].mxu0
      %973 = vmatprep.mubr.f32.mxu0 0.0
      %974 = vmatmul.mubr.f32.gmra.mrb[0].mxu0 %v428
      %v975 = vpop.f32.mrb[0].mxu0
      %v976 = vadd.f32 0.0, %v975
      %v977 = vpop.f32.mrb[0].mxu0
      %978 = vmatprep.mubr.f32.mxu0 0.0
      %979 = vmatmul.mubr.f32.gmra.mrb[0].mxu0 %v431
      %v980 = vpop.f32.mrb[0].mxu0
      %v981 = vadd.f32 0.0, %v980
      %v982 = vpop.f32.mrb[0].mxu0
      %983 = vmatprep.mubr.f32.mxu0 0.0
      %984 = vmatmul.mubr.f32.gmra.mrb[0].mxu0 %v434
      %v985 = vpop.f32.mrb[0].mxu0
      %v986 = vadd.f32 0.0, %v985
      %v987 = vpop.f32.mrb[0].mxu0
      %988 = vmatprep.mubr.f32.mxu0 0.0
      %989 = vmatmul.mubr.f32.gmra.mrb[0].mxu0 %v437
      %v990 = vpop.f32.mrb[0].mxu0
      %v991 = vadd.f32 0.0, %v990
      %v992 = vpop.f32.mrb[0].mxu0
      %993 = vmatprep.mubr.f32.mxu0 0.0
      %994 = vmatmul.mubr.f32.gmra.mrb[0].mxu0 %v440
      %v995 = vpop.f32.mrb[0].mxu0
      %v996 = vadd.f32 0.0, %v995
      %v997 = vpop.f32.mrb[0].mxu0
      %998 = vmatprep.mubr.f32.mxu0 0.0
      %999 = vmatmul.mubr.f32.gmra.mrb[0].mxu0 %v443
      %v1000 = vpop.f32.mrb[0].mxu0
      %v1001 = vadd.f32 0.0, %v1000
      %v1002 = vpop.f32.mrb[0].mxu0
      %1003 = vmatprep.mubr.f32.mxu0 0.0
      %1004 = vmatmul.mubr.f32.gmra.mrb[0].mxu0 %v446
      %v1005 = vpop.f32.mrb[0].mxu0
      %v1006 = vadd.f32 0.0, %v1005
      %v1007 = vpop.f32.mrb[0].mxu0
      %1008 = vmatprep.mubr.f32.mxu0 0.0
      %1009 = vmatmul.mubr.f32.gmra.mrb[0].mxu0 %v449
      %v1010 = vpop.f32.mrb[0].mxu0
      %v1011 = vadd.f32 0.0, %v1010
      %v1012 = vpop.f32.mrb[0].mxu0
      %1013 = vmatprep.mubr.f32.mxu0 0.0
      %1014 = vmatmul.mubr.f32.gmra.mrb[0].mxu0 %v452
      %v1015 = vpop.f32.mrb[0].mxu0
      %v1016 = vadd.f32 0.0, %v1015
      %v1017 = vpop.f32.mrb[0].mxu0
      %1018 = vmatprep.mubr.f32.mxu0 0.0
      %1019 = vmatmul.mubr.f32.gmra.mrb[0].mxu0 %v455
      %v1020 = vpop.f32.mrb[0].mxu0
      %v1021 = vadd.f32 0.0, %v1020
      %v1022 = vpop.f32.mrb[0].mxu0
      %1023 = vmatprep.mubr.f32.mxu0 0.0
      %1024 = vmatmul.mubr.f32.gmra.mrb[0].mxu0 %v458
      %v1025 = vpop.f32.mrb[0].mxu0
      %v1026 = vadd.f32 0.0, %v1025
      %v1027 = vpop.f32.mrb[0].mxu0
      %1028 = vmatprep.mubr.f32.mxu0 0.0
      %1029 = vmatmul.mubr.f32.gmra.mrb[0].mxu0 %v461
      %v1030 = vpop.f32.mrb[0].mxu0
      %v1031 = vadd.f32 0.0, %v1030
      %v1032 = vpop.f32.mrb[0].mxu0
      %1033 = vmatprep.mubr.f32.mxu0 0.0
      %1034 = vmatmul.mubr.f32.gmra.mrb[0].mxu0 %v464
      %v1035 = vpop.f32.mrb[0].mxu0
      %v1036 = vadd.f32 0.0, %v1035
      %v1037 = vpop.f32.mrb[0].mxu0
      %1038 = vmatprep.mubr.f32.mxu0 0.0
      %1039 = vmatmul.mubr.f32.gmra.mrb[0].mxu0 %v467
      %v1040 = vpop.f32.mrb[0].mxu0
      %v1041 = vadd.f32 0.0, %v1040
      %v1042 = vpop.f32.mrb[0].mxu0
      %1043 = vmatprep.mubr.f32.mxu0 0.0
      %1044 = vmatmul.mubr.f32.gmra.mrb[0].mxu0 %v470
      %v1045 = vpop.f32.mrb[0].mxu0
      %v1046 = vadd.f32 0.0, %v1045
      %v1047 = vpop.f32.mrb[0].mxu0
      %1048 = vmatprep.mubr.f32.mxu0 0.0
      %1049 = vmatmul.mubr.f32.gmra.mrb[0].mxu0 %v473
      %v1050 = vpop.f32.mrb[0].mxu0
      %v1051 = vadd.f32 0.0, %v1050
      %v1052 = vpop.f32.mrb[0].mxu0
      %1053 = vmatprep.mubr.f32.mxu0 0.0
      %1054 = vmatmul.mubr.f32.gmra.mrb[0].mxu0 %v476
      %v1055 = vpop.f32.mrb[0].mxu0
      %v1056 = vadd.f32 0.0, %v1055
      %v1057 = vpop.f32.mrb[0].mxu0
      %1058 = vmatprep.mubr.f32.mxu0 0.0
      %1059 = vmatmul.mubr.f32.gmra.mrb[0].mxu0 %v479
      %v1060 = vpop.f32.mrb[0].mxu0
      %v1061 = vadd.f32 0.0, %v1060
      %v1062 = vpop.f32.mrb[0].mxu0
      %1063 = vmatprep.mubr.f32.mxu0 0.0
      %1064 = vmatmul.mubr.f32.gmra.mrb[0].mxu0 %v482
      %v1065 = vpop.f32.mrb[0].mxu0
      %v1066 = vadd.f32 0.0, %v1065
      %v1067 = vpop.f32.mrb[0].mxu0
      %1068 = vmatprep.mubr.f32.mxu0 0.0
      %1069 = vmatmul.mubr.f32.gmra.mrb[0].mxu0 %v485
      %v1070 = vpop.f32.mrb[0].mxu0
      %v1071 = vadd.f32 0.0, %v1070
      %v1072 = vpop.f32.mrb[0].mxu0
      %1073 = vmatprep.mubr.f32.mxu0 0.0
      %1074 = vmatmul.mubr.f32.gmra.mrb[0].mxu0 %v488
      %v1075 = vpop.f32.mrb[0].mxu0
      %v1076 = vadd.f32 0.0, %v1075
      %v1077 = vpop.f32.mrb[0].mxu0
      %1078 = vmatprep.mubr.f32.mxu0 0.0
      %1079 = vmatmul.mubr.f32.gmra.mrb[0].mxu0 %v491
      %v1080 = vpop.f32.mrb[0].mxu0
      %v1081 = vadd.f32 0.0, %v1080
      %v1082 = vpop.f32.mrb[0].mxu0
      %1083 = vmatprep.mubr.f32.mxu0 0.0
      %1084 = vmatmul.mubr.f32.gmra.mrb[0].mxu0 %v494
      %v1085 = vpop.f32.mrb[0].mxu0
      %v1086 = vadd.f32 0.0, %v1085
      %v1087 = vpop.f32.mrb[0].mxu0
      %1088 = vmatprep.mubr.f32.mxu0 0.0
      %1089 = vmatmul.mubr.f32.gmra.mrb[0].mxu0 %v497
      %v1090 = vpop.f32.mrb[0].mxu0
      %v1091 = vadd.f32 0.0, %v1090
      %v1092 = vpop.f32.mrb[0].mxu0
      %1093 = vmatprep.mubr.f32.mxu0 0.0
      %1094 = vmatmul.mubr.f32.gmra.mrb[0].mxu0 %v500
      %v1095 = vpop.f32.mrb[0].mxu0
      %v1096 = vadd.f32 0.0, %v1095
      %v1097 = vpop.f32.mrb[0].mxu0
      %1098 = vmatprep.mubr.f32.mxu0 0.0
      %1099 = vmatmul.mubr.f32.gmra.mrb[0].mxu0 %v503
      %v1100 = vpop.f32.mrb[0].mxu0
      %v1101 = vadd.f32 0.0, %v1100
      %v1102 = vpop.f32.mrb[0].mxu0
      %1103 = vmatprep.mubr.f32.mxu0 0.0
      %1104 = vmatmul.mubr.f32.gmra.mrb[0].mxu0 %v506
      %v1105 = vpop.f32.mrb[0].mxu0
      %v1106 = vadd.f32 0.0, %v1105
      %v1107 = vpop.f32.mrb[0].mxu0
      %1108 = vmatprep.mubr.f32.mxu0 0.0
      %1109 = vmatmul.mubr.f32.gmra.mrb[0].mxu0 %v509
      %v1110 = vpop.f32.mrb[0].mxu0
      %v1111 = vadd.f32 0.0, %v1110
      %v1112 = vpop.f32.mrb[0].mxu0
      %1113 = vmatprep.mubr.f32.mxu0 0.0
      %1114 = vmatmul.mubr.f32.gmra.mrb[0].mxu0 %v512
      %v1115 = vpop.f32.mrb[0].mxu0
      %v1116 = vadd.f32 0.0, %v1115
      %v1117 = vpop.f32.mrb[0].mxu0
      %1118 = vmatprep.mubr.f32.mxu0 0.0
      %1119 = vmatmul.mubr.f32.gmra.mrb[0].mxu0 %v515
      %v1120 = vpop.f32.mrb[0].mxu0
      %v1121 = vadd.f32 0.0, %v1120
      %v1122 = vpop.f32.mrb[0].mxu0
      %1123 = vmatprep.mubr.f32.mxu0 0.0
      %1124 = vmatmul.mubr.f32.gmra.mrb[0].mxu0 %v518
      %v1125 = vpop.f32.mrb[0].mxu0
      %v1126 = vadd.f32 0.0, %v1125
      %v1127 = vpop.f32.mrb[0].mxu0
      %1128 = vmatprep.mubr.f32.mxu0 0.0
      %1129 = vmatmul.mubr.f32.gmra.mrb[0].mxu0 %v521
      %v1130 = vpop.f32.mrb[0].mxu0
      %v1131 = vadd.f32 0.0, %v1130
      %v1132 = vpop.f32.mrb[0].mxu0
      %1133 = vmatprep.mubr.f32.mxu0 0.0
      %1134 = vmatmul.mubr.f32.gmra.mrb[0].mxu0 %v524
      %v1135 = vpop.f32.mrb[0].mxu0
      %v1136 = vadd.f32 0.0, %v1135
      %v1137 = vpop.f32.mrb[0].mxu0
      %1138 = vmatprep.mubr.f32.mxu0 0.0
      %1139 = vmatmul.mubr.f32.gmra.mrb[0].mxu0 %v527
      %v1140 = vpop.f32.mrb[0].mxu0
      %v1141 = vadd.f32 0.0, %v1140
      %v1142 = vpop.f32.mrb[0].mxu0
      %1143 = vmatprep.mubr.f32.mxu0 0.0
      %1144 = vmatmul.mubr.f32.gmra.mrb[0].mxu0 %v530
      %v1145 = vpop.f32.mrb[0].mxu0
      %v1146 = vadd.f32 0.0, %v1145
      %v1147 = vpop.f32.mrb[0].mxu0
      %1148 = vmatprep.mubr.f32.mxu0 0.0
      %1149 = vmatmul.mubr.f32.gmra.mrb[0].mxu0 %v533
      %v1150 = vpop.f32.mrb[0].mxu0
      %v1151 = vadd.f32 0.0, %v1150
      %v1152 = vpop.f32.mrb[0].mxu0
      %1153 = vmatprep.mubr.f32.mxu0 0.0
      %1154 = vmatmul.mubr.f32.gmra.mrb[0].mxu0 %v536
      %v1155 = vpop.f32.mrb[0].mxu0
      %v1156 = vadd.f32 0.0, %v1155
      %v1157 = vpop.f32.mrb[0].mxu0
      %1158 = vmatprep.mubr.f32.mxu0 0.0
      %1159 = vmatmul.mubr.f32.gmra.mrb[0].mxu0 %v539
      %v1160 = vpop.f32.mrb[0].mxu0
      %v1161 = vadd.f32 0.0, %v1160
      %v1162 = vpop.f32.mrb[0].mxu0
      %1163 = vmatprep.mubr.f32.mxu0 0.0
      %1164 = vmatmul.mubr.f32.gmra.mrb[0].mxu0 %v542
      %v1165 = vpop.f32.mrb[0].mxu0
      %v1166 = vadd.f32 0.0, %v1165
      %v1167 = vpop.f32.mrb[0].mxu0
      %1168 = vmatprep.mubr.f32.mxu0 0.0
      %1169 = vmatmul.mubr.f32.gmra.mrb[0].mxu0 %v545
      %v1170 = vpop.f32.mrb[0].mxu0
      %v1171 = vadd.f32 0.0, %v1170
      %v1172 = vpop.f32.mrb[0].mxu0
      %1173 = vmatprep.mubr.f32.mxu0 0.0
      %1174 = vmatmul.mubr.f32.gmra.mrb[0].mxu0 %v548
      %v1175 = vpop.f32.mrb[0].mxu0
      %v1176 = vadd.f32 0.0, %v1175
      %v1177 = vpop.f32.mrb[0].mxu0
      %1178 = vmatprep.mubr.f32.mxu0 0.0
      %1179 = vmatmul.mubr.f32.gmra.mrb[0].mxu0 %v551
      %v1180 = vpop.f32.mrb[0].mxu0
      %v1181 = vadd.f32 0.0, %v1180
      %v1182 = vpop.f32.mrb[0].mxu0
      %1183 = vmatprep.mubr.f32.mxu0 0.0
      %1184 = vmatmul.mubr.f32.gmra.mrb[0].mxu0 %v554
      %v1185 = vpop.f32.mrb[0].mxu0
      %v1186 = vadd.f32 0.0, %v1185
      %v1187 = vpop.f32.mrb[0].mxu0
      %1188 = vmatprep.mubr.f32.mxu0 0.0
      %1189 = vmatmul.mubr.f32.gmra.mrb[0].mxu0 %v557
      %v1190 = vpop.f32.mrb[0].mxu0
      %v1191 = vadd.f32 0.0, %v1190
      %v1192 = vpop.f32.mrb[0].mxu0
      %1193 = vmatprep.mubr.f32.mxu0 0.0
      %1194 = vmatmul.mubr.f32.gmra.mrb[0].mxu0 %v560
      %v1195 = vpop.f32.mrb[0].mxu0
      %v1196 = vadd.f32 0.0, %v1195
      %v1197 = vpop.f32.mrb[0].mxu0
      %1198 = vmatprep.mubr.f32.mxu0 0.0
      %1199 = vmatmul.mubr.f32.gmra.mrb[0].mxu0 %v563
      %v1200 = vpop.f32.mrb[0].mxu0
      %v1201 = vadd.f32 0.0, %v1200
      %v1202 = vpop.f32.mrb[0].mxu0
      %1203 = vmatprep.mubr.f32.mxu0 0.0
      %1204 = vmatmul.mubr.f32.gmra.mrb[0].mxu0 %v566
      %v1205 = vpop.f32.mrb[0].mxu0
      %v1206 = vadd.f32 0.0, %v1205
      %v1207 = vpop.f32.mrb[0].mxu0
      %1208 = vmatprep.mubr.f32.mxu0 0.0
      %1209 = vmatmul.mubr.f32.gmra.mrb[0].mxu0 %v569
      %v1210 = vpop.f32.mrb[0].mxu0
      %v1211 = vadd.f32 0.0, %v1210
      %v1212 = vpop.f32.mrb[0].mxu0
      %1213 = vmatprep.mubr.f32.mxu0 0.0
      %1214 = vmatmul.mubr.f32.gmra.mrb[0].mxu0 %v572
      %v1215 = vpop.f32.mrb[0].mxu0
      %v1216 = vadd.f32 0.0, %v1215
      %v1217 = vpop.f32.mrb[0].mxu0
      %1218 = vmatprep.mubr.f32.mxu0 0.0
      %1219 = vmatmul.mubr.f32.gmra.mrb[0].mxu0 %v575
      %v1220 = vpop.f32.mrb[0].mxu0
      %v1221 = vadd.f32 0.0, %v1220
      %v1222 = vpop.f32.mrb[0].mxu0
      %1223 = vmatprep.mubr.f32.mxu0 0.0
      %1224 = vmatmul.mubr.f32.gmra.mrb[0].mxu0 %v578
      %v1225 = vpop.f32.mrb[0].mxu0
      %v1226 = vadd.f32 0.0, %v1225
      %v1227 = vpop.f32.mrb[0].mxu0
      %1228 = vmatprep.mubr.f32.mxu0 0.0
      %1229 = vmatmul.mubr.f32.gmra.mrb[0].mxu0 %v581
      %v1230 = vpop.f32.mrb[0].mxu0
      %v1231 = vadd.f32 0.0, %v1230
      %v1232 = vpop.f32.mrb[0].mxu0
      %1233 = vmatprep.mubr.f32.mxu0 0.0
      %1234 = vmatmul.mubr.f32.gmra.mrb[0].mxu0 %v584
      %v1235 = vpop.f32.mrb[0].mxu0
      %v1236 = vadd.f32 0.0, %v1235
      %v1237 = vpop.f32.mrb[0].mxu0
      %1238 = vmatprep.mubr.f32.mxu0 0.0
      %1239 = vmatmul.mubr.f32.gmra.mrb[0].mxu0 %v587
      %v1240 = vpop.f32.mrb[0].mxu0
      %v1241 = vadd.f32 0.0, %v1240
      %v1242 = vpop.f32.mrb[0].mxu0
      %1243 = vmatprep.mubr.f32.mxu0 0.0
      %1244 = vmatmul.mubr.f32.gmra.mrb[0].mxu0 %v590
      %v1245 = vpop.f32.mrb[0].mxu0
      %v1246 = vadd.f32 0.0, %v1245
      %v1247 = vpop.f32.mrb[0].mxu0
      %1248 = vmatprep.mubr.f32.mxu0 0.0
      %1249 = vmatmul.mubr.f32.gmra.mrb[0].mxu0 %v593
      %v1250 = vpop.f32.mrb[0].mxu0
      %v1251 = vadd.f32 0.0, %v1250
      %v1252 = vpop.f32.mrb[0].mxu0
      %1253 = vmatprep.mubr.f32.mxu0 0.0
      %1254 = vmatmul.mubr.f32.gmra.mrb[0].mxu0 %v596
      %v1255 = vpop.f32.mrb[0].mxu0
      %v1256 = vadd.f32 0.0, %v1255
      %v1257 = vpop.f32.mrb[0].mxu0
      %1258 = vmatprep.mubr.f32.mxu0 0.0
      %1259 = vmatmul.mubr.f32.gmra.mrb[0].mxu0 %v599
      %v1260 = vpop.f32.mrb[0].mxu0
      %v1261 = vadd.f32 0.0, %v1260
      %v1262 = vpop.f32.mrb[0].mxu0
      %1263 = vmatprep.mubr.f32.mxu0 0.0
      %1264 = vmatmul.mubr.f32.gmra.mrb[0].mxu0 %v602
      %v1265 = vpop.f32.mrb[0].mxu0
      %v1266 = vadd.f32 0.0, %v1265
      %v1267 = vpop.f32.mrb[0].mxu0
      %1268 = vmatprep.mubr.f32.mxu0 0.0
      %1269 = vmatmul.mubr.f32.gmra.mrb[0].mxu0 %v605
      %v1270 = vpop.f32.mrb[0].mxu0
      %v1271 = vadd.f32 0.0, %v1270
      %v1272 = vpop.f32.mrb[0].mxu0
      %1273 = vmatprep.mubr.f32.mxu0 0.0
      %1274 = vmatmul.mubr.f32.gmra.mrb[0].mxu0 %v608
      %v1275 = vpop.f32.mrb[0].mxu0
      %v1276 = vadd.f32 0.0, %v1275
      %v1277 = vpop.f32.mrb[0].mxu0
      %1278 = vmatprep.mubr.f32.mxu0 0.0
      %1279 = vmatmul.mubr.f32.gmra.mrb[0].mxu0 %v611
      %v1280 = vpop.f32.mrb[0].mxu0
      %v1281 = vadd.f32 0.0, %v1280
      %v1282 = vpop.f32.mrb[0].mxu0
      %1283 = vmatprep.mubr.f32.mxu0 0.0
      %1284 = vmatmul.mubr.f32.gmra.mrb[0].mxu0 %v614
      %v1285 = vpop.f32.mrb[0].mxu0
      %v1286 = vadd.f32 0.0, %v1285
      %v1287 = vpop.f32.mrb[0].mxu0
      %1288 = vmatprep.mubr.f32.mxu0 0.0
      %1289 = vmatmul.mubr.f32.gmra.mrb[0].mxu0 %v617
      %v1290 = vpop.f32.mrb[0].mxu0
      %v1291 = vadd.f32 0.0, %v1290
      %v1292 = vpop.f32.mrb[0].mxu0
      %1293 = vmatprep.mubr.f32.mxu0 0.0
      %1294 = vmatmul.mubr.f32.gmra.mrb[0].mxu0 %v620
      %v1295 = vpop.f32.mrb[0].mxu0
      %v1296 = vadd.f32 0.0, %v1295
      %v1297 = vpop.f32.mrb[0].mxu0
      %1298 = vmatprep.mubr.f32.mxu0 0.0
      %1299 = vmatmul.mubr.f32.gmra.mrb[0].mxu0 %v623
      %v1300 = vpop.f32.mrb[0].mxu0
      %v1301 = vadd.f32 0.0, %v1300
      %v1302 = vpop.f32.mrb[0].mxu0
      %1303 = vmatprep.mubr.f32.mxu0 0.0
      %1304 = vmatmul.mubr.f32.gmra.mrb[0].mxu0 %v626
      %v1305 = vpop.f32.mrb[0].mxu0
      %v1306 = vadd.f32 0.0, %v1305
      %v1307 = vpop.f32.mrb[0].mxu0
      %1308 = vmatprep.mubr.f32.mxu0 0.0
      %1309 = vmatmul.mubr.f32.gmra.mrb[0].mxu0 %v629
      %v1310 = vpop.f32.mrb[0].mxu0
      %v1311 = vadd.f32 0.0, %v1310
      %v1312 = vpop.f32.mrb[0].mxu0
      %1313 = vmatprep.mubr.f32.mxu0 0.0
      %1314 = vmatmul.mubr.f32.gmra.mrb[0].mxu0 %v632
      %v1315 = vpop.f32.mrb[0].mxu0
      %v1316 = vadd.f32 0.0, %v1315
      %v1317 = vpop.f32.mrb[0].mxu0
      %1318 = vmatprep.mubr.f32.mxu0 0.0
      %1319 = vmatmul.mubr.f32.gmra.mrb[0].mxu0 %v635
      %v1320 = vpop.f32.mrb[0].mxu0
      %v1321 = vadd.f32 0.0, %v1320
      %v1322 = vpop.f32.mrb[0].mxu0
      %1323 = vmatprep.mubr.f32.mxu0 0.0
      %1324 = vmatmul.mubr.f32.gmra.mrb[0].mxu0 %v638
      %v1325 = vpop.f32.mrb[0].mxu0
      %v1326 = vadd.f32 0.0, %v1325
      %v1327 = vpop.f32.mrb[0].mxu0
      %1328 = vmatprep.mubr.f32.mxu0 0.0
      %1329 = vmatmul.mubr.f32.gmra.mrb[0].mxu0 %v641
      %v1330 = vpop.f32.mrb[0].mxu0
      %v1331 = vadd.f32 0.0, %v1330
      %v1332 = vpop.f32.mrb[0].mxu0
      %1333 = vmatprep.mubr.f32.mxu0 0.0
      %1334 = vmatmul.mubr.f32.gmra.mrb[0].mxu0 %v644
      %v1335 = vpop.f32.mrb[0].mxu0
      %v1336 = vadd.f32 0.0, %v1335
      %v1337 = vpop.f32.mrb[0].mxu0
      %1338 = vmatprep.mubr.f32.mxu0 0.0
      %1339 = vmatmul.mubr.f32.gmra.mrb[0].mxu0 %v647
      %v1340 = vpop.f32.mrb[0].mxu0
      %v1341 = vadd.f32 0.0, %v1340
      %v1342 = vpop.f32.mrb[0].mxu0
      %1343 = vmatprep.mubr.f32.mxu0 0.0
      %1344 = vmatmul.mubr.f32.gmra.mrb[0].mxu0 %v650
      %v1345 = vpop.f32.mrb[0].mxu0
      %v1346 = vadd.f32 0.0, %v1345
      %v1347 = vpop.f32.mrb[0].mxu0
      %1348 = vmatprep.mubr.f32.mxu0 0.0
      %1349 = vmatmul.mubr.f32.gmra.mrb[0].mxu0 %v653
      %v1350 = vpop.f32.mrb[0].mxu0
      %v1351 = vadd.f32 0.0, %v1350
      %v1352 = vpop.f32.mrb[0].mxu0
      %1353 = vmatprep.mubr.f32.mxu0 0.0
      %1354 = vmatmul.mubr.f32.gmra.mrb[0].mxu0 %v656
      %v1355 = vpop.f32.mrb[0].mxu0
      %v1356 = vadd.f32 0.0, %v1355
      %v1357 = vpop.f32.mrb[0].mxu0
      %1358 = vmatprep.mubr.f32.mxu0 0.0
      %1359 = vmatmul.mubr.f32.gmra.mrb[0].mxu0 %v659
      %v1360 = vpop.f32.mrb[0].mxu0
      %v1361 = vadd.f32 0.0, %v1360
      %v1362 = vpop.f32.mrb[0].mxu0
      %1363 = vmatprep.mubr.f32.mxu0 0.0
      %1364 = vmatmul.mubr.f32.gmra.mrb[0].mxu0 %v662
      %v1365 = vpop.f32.mrb[0].mxu0
      %v1366 = vadd.f32 0.0, %v1365
      %v1367 = vpop.f32.mrb[0].mxu0
      %1368 = vdwg.mxu0
      %v1369 = vsel %vm279, %v147, 0.0
      %v1370 = vrot.slane %v1369, 4
      %v1371 = vadd.f32 %v1369, %v1370
      %v1372 = vrot.slane %v1371, 2
      %v1373 = vadd.f32 %v1371, %v1372
      %v1374 = vrot.slane %v1373, 1
      %v1375 = vadd.f32 %v1373, %v1374
      %v1376 = vsel %vm279, %v148, 0.0
      %v1377 = vrot.slane %v1376, 4
      %v1378 = vadd.f32 %v1376, %v1377
      %v1379 = vrot.slane %v1378, 2
      %v1380 = vadd.f32 %v1378, %v1379
      %v1381 = vrot.slane %v1380, 1
      %v1382 = vadd.f32 %v1380, %v1381
      %v1383 = vsel %vm279, %v149, 0.0
      %v1384 = vrot.slane %v1383, 4
      %v1385 = vadd.f32 %v1383, %v1384
      %v1386 = vrot.slane %v1385, 2
      %v1387 = vadd.f32 %v1385, %v1386
      %v1388 = vrot.slane %v1387, 1
      %v1389 = vadd.f32 %v1387, %v1388
      %v1390 = vsel %vm279, %v150, 0.0
      %v1391 = vrot.slane %v1390, 4
      %v1392 = vadd.f32 %v1390, %v1391
      %v1393 = vrot.slane %v1392, 2
      %v1394 = vadd.f32 %v1392, %v1393
      %v1395 = vrot.slane %v1394, 1
      %v1396 = vadd.f32 %v1394, %v1395
      %v1397 = vsel %vm279, %v151, 0.0
      %v1398 = vrot.slane %v1397, 4
      %v1399 = vadd.f32 %v1397, %v1398
      %v1400 = vrot.slane %v1399, 2
      %v1401 = vadd.f32 %v1399, %v1400
      %v1402 = vrot.slane %v1401, 1
      %v1403 = vadd.f32 %v1401, %v1402
      %v1404 = vsel %vm279, %v152, 0.0
      %v1405 = vrot.slane %v1404, 4
      %v1406 = vadd.f32 %v1404, %v1405
      %v1407 = vrot.slane %v1406, 2
      %v1408 = vadd.f32 %v1406, %v1407
      %v1409 = vrot.slane %v1408, 1
      %v1410 = vadd.f32 %v1408, %v1409
      %v1411 = vsel %vm279, %v153, 0.0
      %v1412 = vrot.slane %v1411, 4
      %v1413 = vadd.f32 %v1411, %v1412
      %v1414 = vrot.slane %v1413, 2
      %v1415 = vadd.f32 %v1413, %v1414
      %v1416 = vrot.slane %v1415, 1
      %v1417 = vadd.f32 %v1415, %v1416
      %v1418 = vsel %vm279, %v154, 0.0
      %v1419 = vrot.slane %v1418, 4
      %v1420 = vadd.f32 %v1418, %v1419
      %v1421 = vrot.slane %v1420, 2
      %v1422 = vadd.f32 %v1420, %v1421
      %v1423 = vrot.slane %v1422, 1
      %v1424 = vadd.f32 %v1422, %v1423
      %v1425 = vsel %vm279, %v155, 0.0
      %v1426 = vrot.slane %v1425, 4
      %v1427 = vadd.f32 %v1425, %v1426
      %v1428 = vrot.slane %v1427, 2
      %v1429 = vadd.f32 %v1427, %v1428
      %v1430 = vrot.slane %v1429, 1
      %v1431 = vadd.f32 %v1429, %v1430
      %v1432 = vsel %vm279, %v156, 0.0
      %v1433 = vrot.slane %v1432, 4
      %v1434 = vadd.f32 %v1432, %v1433
      %v1435 = vrot.slane %v1434, 2
      %v1436 = vadd.f32 %v1434, %v1435
      %v1437 = vrot.slane %v1436, 1
      %v1438 = vadd.f32 %v1436, %v1437
      %v1439 = vsel %vm279, %v157, 0.0
      %v1440 = vrot.slane %v1439, 4
      %v1441 = vadd.f32 %v1439, %v1440
      %v1442 = vrot.slane %v1441, 2
      %v1443 = vadd.f32 %v1441, %v1442
      %v1444 = vrot.slane %v1443, 1
      %v1445 = vadd.f32 %v1443, %v1444
      %v1446 = vsel %vm279, %v158, 0.0
      %v1447 = vrot.slane %v1446, 4
      %v1448 = vadd.f32 %v1446, %v1447
      %v1449 = vrot.slane %v1448, 2
      %v1450 = vadd.f32 %v1448, %v1449
      %v1451 = vrot.slane %v1450, 1
      %v1452 = vadd.f32 %v1450, %v1451
      %v1453 = vsel %vm279, %v159, 0.0
      %v1454 = vrot.slane %v1453, 4
      %v1455 = vadd.f32 %v1453, %v1454
      %v1456 = vrot.slane %v1455, 2
      %v1457 = vadd.f32 %v1455, %v1456
      %v1458 = vrot.slane %v1457, 1
      %v1459 = vadd.f32 %v1457, %v1458
      %v1460 = vsel %vm279, %v160, 0.0
      %v1461 = vrot.slane %v1460, 4
      %v1462 = vadd.f32 %v1460, %v1461
      %v1463 = vrot.slane %v1462, 2
      %v1464 = vadd.f32 %v1462, %v1463
      %v1465 = vrot.slane %v1464, 1
      %v1466 = vadd.f32 %v1464, %v1465
      %v1467 = vsel %vm279, %v161, 0.0
      %v1468 = vrot.slane %v1467, 4
      %v1469 = vadd.f32 %v1467, %v1468
      %v1470 = vrot.slane %v1469, 2
      %v1471 = vadd.f32 %v1469, %v1470
      %v1472 = vrot.slane %v1471, 1
      %v1473 = vadd.f32 %v1471, %v1472
      %v1474 = vsel %vm279, %v162, 0.0
      %v1475 = vrot.slane %v1474, 4
      %v1476 = vadd.f32 %v1474, %v1475
      %v1477 = vrot.slane %v1476, 2
      %v1478 = vadd.f32 %v1476, %v1477
      %v1479 = vrot.slane %v1478, 1
      %v1480 = vadd.f32 %v1478, %v1479
      %v1481 = vsel %vm279, %v163, 0.0
      %v1482 = vrot.slane %v1481, 4
      %v1483 = vadd.f32 %v1481, %v1482
      %v1484 = vrot.slane %v1483, 2
      %v1485 = vadd.f32 %v1483, %v1484
      %v1486 = vrot.slane %v1485, 1
      %v1487 = vadd.f32 %v1485, %v1486
      %v1488 = vsel %vm279, %v164, 0.0
      %v1489 = vrot.slane %v1488, 4
      %v1490 = vadd.f32 %v1488, %v1489
      %v1491 = vrot.slane %v1490, 2
      %v1492 = vadd.f32 %v1490, %v1491
      %v1493 = vrot.slane %v1492, 1
      %v1494 = vadd.f32 %v1492, %v1493
      %v1495 = vsel %vm279, %v165, 0.0
      %v1496 = vrot.slane %v1495, 4
      %v1497 = vadd.f32 %v1495, %v1496
      %v1498 = vrot.slane %v1497, 2
      %v1499 = vadd.f32 %v1497, %v1498
      %v1500 = vrot.slane %v1499, 1
      %v1501 = vadd.f32 %v1499, %v1500
      %v1502 = vsel %vm279, %v166, 0.0
      %v1503 = vrot.slane %v1502, 4
      %v1504 = vadd.f32 %v1502, %v1503
      %v1505 = vrot.slane %v1504, 2
      %v1506 = vadd.f32 %v1504, %v1505
      %v1507 = vrot.slane %v1506, 1
      %v1508 = vadd.f32 %v1506, %v1507
      %v1509 = vsel %vm279, %v167, 0.0
      %v1510 = vrot.slane %v1509, 4
      %v1511 = vadd.f32 %v1509, %v1510
      %v1512 = vrot.slane %v1511, 2
      %v1513 = vadd.f32 %v1511, %v1512
      %v1514 = vrot.slane %v1513, 1
      %v1515 = vadd.f32 %v1513, %v1514
      %v1516 = vsel %vm279, %v168, 0.0
      %v1517 = vrot.slane %v1516, 4
      %v1518 = vadd.f32 %v1516, %v1517
      %v1519 = vrot.slane %v1518, 2
      %v1520 = vadd.f32 %v1518, %v1519
      %v1521 = vrot.slane %v1520, 1
      %v1522 = vadd.f32 %v1520, %v1521
      %v1523 = vsel %vm279, %v169, 0.0
      %v1524 = vrot.slane %v1523, 4
      %v1525 = vadd.f32 %v1523, %v1524
      %v1526 = vrot.slane %v1525, 2
      %v1527 = vadd.f32 %v1525, %v1526
      %v1528 = vrot.slane %v1527, 1
      %v1529 = vadd.f32 %v1527, %v1528
      %v1530 = vsel %vm279, %v170, 0.0
      %v1531 = vrot.slane %v1530, 4
      %v1532 = vadd.f32 %v1530, %v1531
      %v1533 = vrot.slane %v1532, 2
      %v1534 = vadd.f32 %v1532, %v1533
      %v1535 = vrot.slane %v1534, 1
      %v1536 = vadd.f32 %v1534, %v1535
      %v1537 = vsel %vm279, %v171, 0.0
      %v1538 = vrot.slane %v1537, 4
      %v1539 = vadd.f32 %v1537, %v1538
      %v1540 = vrot.slane %v1539, 2
      %v1541 = vadd.f32 %v1539, %v1540
      %v1542 = vrot.slane %v1541, 1
      %v1543 = vadd.f32 %v1541, %v1542
      %v1544 = vsel %vm279, %v172, 0.0
      %v1545 = vrot.slane %v1544, 4
      %v1546 = vadd.f32 %v1544, %v1545
      %v1547 = vrot.slane %v1546, 2
      %v1548 = vadd.f32 %v1546, %v1547
      %v1549 = vrot.slane %v1548, 1
      %v1550 = vadd.f32 %v1548, %v1549
      %v1551 = vsel %vm279, %v173, 0.0
      %v1552 = vrot.slane %v1551, 4
      %v1553 = vadd.f32 %v1551, %v1552
      %v1554 = vrot.slane %v1553, 2
      %v1555 = vadd.f32 %v1553, %v1554
      %v1556 = vrot.slane %v1555, 1
      %v1557 = vadd.f32 %v1555, %v1556
      %v1558 = vsel %vm279, %v174, 0.0
      %v1559 = vrot.slane %v1558, 4
      %v1560 = vadd.f32 %v1558, %v1559
      %v1561 = vrot.slane %v1560, 2
      %v1562 = vadd.f32 %v1560, %v1561
      %v1563 = vrot.slane %v1562, 1
      %v1564 = vadd.f32 %v1562, %v1563
      %v1565 = vsel %vm279, %v175, 0.0
      %v1566 = vrot.slane %v1565, 4
      %v1567 = vadd.f32 %v1565, %v1566
      %v1568 = vrot.slane %v1567, 2
      %v1569 = vadd.f32 %v1567, %v1568
      %v1570 = vrot.slane %v1569, 1
      %v1571 = vadd.f32 %v1569, %v1570
      %v1572 = vsel %vm279, %v176, 0.0
      %v1573 = vrot.slane %v1572, 4
      %v1574 = vadd.f32 %v1572, %v1573
      %v1575 = vrot.slane %v1574, 2
      %v1576 = vadd.f32 %v1574, %v1575
      %v1577 = vrot.slane %v1576, 1
      %v1578 = vadd.f32 %v1576, %v1577
      %v1579 = vsel %vm279, %v177, 0.0
      %v1580 = vrot.slane %v1579, 4
      %v1581 = vadd.f32 %v1579, %v1580
      %v1582 = vrot.slane %v1581, 2
      %v1583 = vadd.f32 %v1581, %v1582
      %v1584 = vrot.slane %v1583, 1
      %v1585 = vadd.f32 %v1583, %v1584
      %v1586 = vsel %vm279, %v178, 0.0
      %v1587 = vrot.slane %v1586, 4
      %v1588 = vadd.f32 %v1586, %v1587
      %v1589 = vrot.slane %v1588, 2
      %v1590 = vadd.f32 %v1588, %v1589
      %v1591 = vrot.slane %v1590, 1
      %v1592 = vadd.f32 %v1590, %v1591
      %v1593 = vsel %vm279, %v179, 0.0
      %v1594 = vrot.slane %v1593, 4
      %v1595 = vadd.f32 %v1593, %v1594
      %v1596 = vrot.slane %v1595, 2
      %v1597 = vadd.f32 %v1595, %v1596
      %v1598 = vrot.slane %v1597, 1
      %v1599 = vadd.f32 %v1597, %v1598
      %v1600 = vsel %vm279, %v180, 0.0
      %v1601 = vrot.slane %v1600, 4
      %v1602 = vadd.f32 %v1600, %v1601
      %v1603 = vrot.slane %v1602, 2
      %v1604 = vadd.f32 %v1602, %v1603
      %v1605 = vrot.slane %v1604, 1
      %v1606 = vadd.f32 %v1604, %v1605
      %v1607 = vsel %vm279, %v181, 0.0
      %v1608 = vrot.slane %v1607, 4
      %v1609 = vadd.f32 %v1607, %v1608
      %v1610 = vrot.slane %v1609, 2
      %v1611 = vadd.f32 %v1609, %v1610
      %v1612 = vrot.slane %v1611, 1
      %v1613 = vadd.f32 %v1611, %v1612
      %v1614 = vsel %vm279, %v182, 0.0
      %v1615 = vrot.slane %v1614, 4
      %v1616 = vadd.f32 %v1614, %v1615
      %v1617 = vrot.slane %v1616, 2
      %v1618 = vadd.f32 %v1616, %v1617
      %v1619 = vrot.slane %v1618, 1
      %v1620 = vadd.f32 %v1618, %v1619
      %v1621 = vsel %vm279, %v183, 0.0
      %v1622 = vrot.slane %v1621, 4
      %v1623 = vadd.f32 %v1621, %v1622
      %v1624 = vrot.slane %v1623, 2
      %v1625 = vadd.f32 %v1623, %v1624
      %v1626 = vrot.slane %v1625, 1
      %v1627 = vadd.f32 %v1625, %v1626
      %v1628 = vsel %vm279, %v184, 0.0
      %v1629 = vrot.slane %v1628, 4
      %v1630 = vadd.f32 %v1628, %v1629
      %v1631 = vrot.slane %v1630, 2
      %v1632 = vadd.f32 %v1630, %v1631
      %v1633 = vrot.slane %v1632, 1
      %v1634 = vadd.f32 %v1632, %v1633
      %v1635 = vsel %vm279, %v185, 0.0
      %v1636 = vrot.slane %v1635, 4
      %v1637 = vadd.f32 %v1635, %v1636
      %v1638 = vrot.slane %v1637, 2
      %v1639 = vadd.f32 %v1637, %v1638
      %v1640 = vrot.slane %v1639, 1
      %v1641 = vadd.f32 %v1639, %v1640
      %v1642 = vsel %vm279, %v186, 0.0
      %v1643 = vrot.slane %v1642, 4
      %v1644 = vadd.f32 %v1642, %v1643
      %v1645 = vrot.slane %v1644, 2
      %v1646 = vadd.f32 %v1644, %v1645
      %v1647 = vrot.slane %v1646, 1
      %v1648 = vadd.f32 %v1646, %v1647
      %v1649 = vsel %vm279, %v187, 0.0
      %v1650 = vrot.slane %v1649, 4
      %v1651 = vadd.f32 %v1649, %v1650
      %v1652 = vrot.slane %v1651, 2
      %v1653 = vadd.f32 %v1651, %v1652
      %v1654 = vrot.slane %v1653, 1
      %v1655 = vadd.f32 %v1653, %v1654
      %v1656 = vsel %vm279, %v188, 0.0
      %v1657 = vrot.slane %v1656, 4
      %v1658 = vadd.f32 %v1656, %v1657
      %v1659 = vrot.slane %v1658, 2
      %v1660 = vadd.f32 %v1658, %v1659
      %v1661 = vrot.slane %v1660, 1
      %v1662 = vadd.f32 %v1660, %v1661
      %v1663 = vsel %vm279, %v189, 0.0
      %v1664 = vrot.slane %v1663, 4
      %v1665 = vadd.f32 %v1663, %v1664
      %v1666 = vrot.slane %v1665, 2
      %v1667 = vadd.f32 %v1665, %v1666
      %v1668 = vrot.slane %v1667, 1
      %v1669 = vadd.f32 %v1667, %v1668
      %v1670 = vsel %vm279, %v190, 0.0
      %v1671 = vrot.slane %v1670, 4
      %v1672 = vadd.f32 %v1670, %v1671
      %v1673 = vrot.slane %v1672, 2
      %v1674 = vadd.f32 %v1672, %v1673
      %v1675 = vrot.slane %v1674, 1
      %v1676 = vadd.f32 %v1674, %v1675
      %v1677 = vsel %vm279, %v191, 0.0
      %v1678 = vrot.slane %v1677, 4
      %v1679 = vadd.f32 %v1677, %v1678
      %v1680 = vrot.slane %v1679, 2
      %v1681 = vadd.f32 %v1679, %v1680
      %v1682 = vrot.slane %v1681, 1
      %v1683 = vadd.f32 %v1681, %v1682
      %v1684 = vsel %vm279, %v192, 0.0
      %v1685 = vrot.slane %v1684, 4
      %v1686 = vadd.f32 %v1684, %v1685
      %v1687 = vrot.slane %v1686, 2
      %v1688 = vadd.f32 %v1686, %v1687
      %v1689 = vrot.slane %v1688, 1
      %v1690 = vadd.f32 %v1688, %v1689
      %v1691 = vsel %vm279, %v193, 0.0
      %v1692 = vrot.slane %v1691, 4
      %v1693 = vadd.f32 %v1691, %v1692
      %v1694 = vrot.slane %v1693, 2
      %v1695 = vadd.f32 %v1693, %v1694
      %v1696 = vrot.slane %v1695, 1
      %v1697 = vadd.f32 %v1695, %v1696
      %v1698 = vsel %vm279, %v194, 0.0
      %v1699 = vrot.slane %v1698, 4
      %v1700 = vadd.f32 %v1698, %v1699
      %v1701 = vrot.slane %v1700, 2
      %v1702 = vadd.f32 %v1700, %v1701
      %v1703 = vrot.slane %v1702, 1
      %v1704 = vadd.f32 %v1702, %v1703
      %v1705 = vsel %vm279, %v195, 0.0
      %v1706 = vrot.slane %v1705, 4
      %v1707 = vadd.f32 %v1705, %v1706
      %v1708 = vrot.slane %v1707, 2
      %v1709 = vadd.f32 %v1707, %v1708
      %v1710 = vrot.slane %v1709, 1
      %v1711 = vadd.f32 %v1709, %v1710
      %v1712 = vsel %vm279, %v196, 0.0
      %v1713 = vrot.slane %v1712, 4
      %v1714 = vadd.f32 %v1712, %v1713
      %v1715 = vrot.slane %v1714, 2
      %v1716 = vadd.f32 %v1714, %v1715
      %v1717 = vrot.slane %v1716, 1
      %v1718 = vadd.f32 %v1716, %v1717
      %v1719 = vsel %vm279, %v197, 0.0
      %v1720 = vrot.slane %v1719, 4
      %v1721 = vadd.f32 %v1719, %v1720
      %v1722 = vrot.slane %v1721, 2
      %v1723 = vadd.f32 %v1721, %v1722
      %v1724 = vrot.slane %v1723, 1
      %v1725 = vadd.f32 %v1723, %v1724
      %v1726 = vsel %vm279, %v198, 0.0
      %v1727 = vrot.slane %v1726, 4
      %v1728 = vadd.f32 %v1726, %v1727
      %v1729 = vrot.slane %v1728, 2
      %v1730 = vadd.f32 %v1728, %v1729
      %v1731 = vrot.slane %v1730, 1
      %v1732 = vadd.f32 %v1730, %v1731
      %v1733 = vsel %vm279, %v199, 0.0
      %v1734 = vrot.slane %v1733, 4
      %v1735 = vadd.f32 %v1733, %v1734
      %v1736 = vrot.slane %v1735, 2
      %v1737 = vadd.f32 %v1735, %v1736
      %v1738 = vrot.slane %v1737, 1
      %v1739 = vadd.f32 %v1737, %v1738
      %v1740 = vsel %vm279, %v200, 0.0
      %v1741 = vrot.slane %v1740, 4
      %v1742 = vadd.f32 %v1740, %v1741
      %v1743 = vrot.slane %v1742, 2
      %v1744 = vadd.f32 %v1742, %v1743
      %v1745 = vrot.slane %v1744, 1
      %v1746 = vadd.f32 %v1744, %v1745
      %v1747 = vsel %vm279, %v201, 0.0
      %v1748 = vrot.slane %v1747, 4
      %v1749 = vadd.f32 %v1747, %v1748
      %v1750 = vrot.slane %v1749, 2
      %v1751 = vadd.f32 %v1749, %v1750
      %v1752 = vrot.slane %v1751, 1
      %v1753 = vadd.f32 %v1751, %v1752
      %v1754 = vsel %vm279, %v202, 0.0
      %v1755 = vrot.slane %v1754, 4
      %v1756 = vadd.f32 %v1754, %v1755
      %v1757 = vrot.slane %v1756, 2
      %v1758 = vadd.f32 %v1756, %v1757
      %v1759 = vrot.slane %v1758, 1
      %v1760 = vadd.f32 %v1758, %v1759
      %v1761 = vsel %vm279, %v203, 0.0
      %v1762 = vrot.slane %v1761, 4
      %v1763 = vadd.f32 %v1761, %v1762
      %v1764 = vrot.slane %v1763, 2
      %v1765 = vadd.f32 %v1763, %v1764
      %v1766 = vrot.slane %v1765, 1
      %v1767 = vadd.f32 %v1765, %v1766
      %v1768 = vsel %vm279, %v204, 0.0
      %v1769 = vrot.slane %v1768, 4
      %v1770 = vadd.f32 %v1768, %v1769
      %v1771 = vrot.slane %v1770, 2
      %v1772 = vadd.f32 %v1770, %v1771
      %v1773 = vrot.slane %v1772, 1
      %v1774 = vadd.f32 %v1772, %v1773
      %v1775 = vsel %vm279, %v205, 0.0
      %v1776 = vrot.slane %v1775, 4
      %v1777 = vadd.f32 %v1775, %v1776
      %v1778 = vrot.slane %v1777, 2
      %v1779 = vadd.f32 %v1777, %v1778
      %v1780 = vrot.slane %v1779, 1
      %v1781 = vadd.f32 %v1779, %v1780
      %v1782 = vsel %vm279, %v206, 0.0
      %v1783 = vrot.slane %v1782, 4
      %v1784 = vadd.f32 %v1782, %v1783
      %v1785 = vrot.slane %v1784, 2
      %v1786 = vadd.f32 %v1784, %v1785
      %v1787 = vrot.slane %v1786, 1
      %v1788 = vadd.f32 %v1786, %v1787
      %v1789 = vsel %vm279, %v207, 0.0
      %v1790 = vrot.slane %v1789, 4
      %v1791 = vadd.f32 %v1789, %v1790
      %v1792 = vrot.slane %v1791, 2
      %v1793 = vadd.f32 %v1791, %v1792
      %v1794 = vrot.slane %v1793, 1
      %v1795 = vadd.f32 %v1793, %v1794
      %v1796 = vsel %vm279, %v208, 0.0
      %v1797 = vrot.slane %v1796, 4
      %v1798 = vadd.f32 %v1796, %v1797
      %v1799 = vrot.slane %v1798, 2
      %v1800 = vadd.f32 %v1798, %v1799
      %v1801 = vrot.slane %v1800, 1
      %v1802 = vadd.f32 %v1800, %v1801
      %v1803 = vsel %vm279, %v209, 0.0
      %v1804 = vrot.slane %v1803, 4
      %v1805 = vadd.f32 %v1803, %v1804
      %v1806 = vrot.slane %v1805, 2
      %v1807 = vadd.f32 %v1805, %v1806
      %v1808 = vrot.slane %v1807, 1
      %v1809 = vadd.f32 %v1807, %v1808
      %v1810 = vsel %vm279, %v210, 0.0
      %v1811 = vrot.slane %v1810, 4
      %v1812 = vadd.f32 %v1810, %v1811
      %v1813 = vrot.slane %v1812, 2
      %v1814 = vadd.f32 %v1812, %v1813
      %v1815 = vrot.slane %v1814, 1
      %v1816 = vadd.f32 %v1814, %v1815
      %v1817 = vsel %vm279, %v211, 0.0
      %v1818 = vrot.slane %v1817, 4
      %v1819 = vadd.f32 %v1817, %v1818
      %v1820 = vrot.slane %v1819, 2
      %v1821 = vadd.f32 %v1819, %v1820
      %v1822 = vrot.slane %v1821, 1
      %v1823 = vadd.f32 %v1821, %v1822
      %v1824 = vsel %vm279, %v212, 0.0
      %v1825 = vrot.slane %v1824, 4
      %v1826 = vadd.f32 %v1824, %v1825
      %v1827 = vrot.slane %v1826, 2
      %v1828 = vadd.f32 %v1826, %v1827
      %v1829 = vrot.slane %v1828, 1
      %v1830 = vadd.f32 %v1828, %v1829
      %v1831 = vsel %vm279, %v213, 0.0
      %v1832 = vrot.slane %v1831, 4
      %v1833 = vadd.f32 %v1831, %v1832
      %v1834 = vrot.slane %v1833, 2
      %v1835 = vadd.f32 %v1833, %v1834
      %v1836 = vrot.slane %v1835, 1
      %v1837 = vadd.f32 %v1835, %v1836
      %v1838 = vsel %vm279, %v214, 0.0
      %v1839 = vrot.slane %v1838, 4
      %v1840 = vadd.f32 %v1838, %v1839
      %v1841 = vrot.slane %v1840, 2
      %v1842 = vadd.f32 %v1840, %v1841
      %v1843 = vrot.slane %v1842, 1
      %v1844 = vadd.f32 %v1842, %v1843
      %v1845 = vsel %vm279, %v215, 0.0
      %v1846 = vrot.slane %v1845, 4
      %v1847 = vadd.f32 %v1845, %v1846
      %v1848 = vrot.slane %v1847, 2
      %v1849 = vadd.f32 %v1847, %v1848
      %v1850 = vrot.slane %v1849, 1
      %v1851 = vadd.f32 %v1849, %v1850
      %v1852 = vsel %vm279, %v216, 0.0
      %v1853 = vrot.slane %v1852, 4
      %v1854 = vadd.f32 %v1852, %v1853
      %v1855 = vrot.slane %v1854, 2
      %v1856 = vadd.f32 %v1854, %v1855
      %v1857 = vrot.slane %v1856, 1
      %v1858 = vadd.f32 %v1856, %v1857
      %v1859 = vsel %vm279, %v217, 0.0
      %v1860 = vrot.slane %v1859, 4
      %v1861 = vadd.f32 %v1859, %v1860
      %v1862 = vrot.slane %v1861, 2
      %v1863 = vadd.f32 %v1861, %v1862
      %v1864 = vrot.slane %v1863, 1
      %v1865 = vadd.f32 %v1863, %v1864
      %v1866 = vsel %vm279, %v218, 0.0
      %v1867 = vrot.slane %v1866, 4
      %v1868 = vadd.f32 %v1866, %v1867
      %v1869 = vrot.slane %v1868, 2
      %v1870 = vadd.f32 %v1868, %v1869
      %v1871 = vrot.slane %v1870, 1
      %v1872 = vadd.f32 %v1870, %v1871
      %v1873 = vsel %vm279, %v219, 0.0
      %v1874 = vrot.slane %v1873, 4
      %v1875 = vadd.f32 %v1873, %v1874
      %v1876 = vrot.slane %v1875, 2
      %v1877 = vadd.f32 %v1875, %v1876
      %v1878 = vrot.slane %v1877, 1
      %v1879 = vadd.f32 %v1877, %v1878
      %v1880 = vsel %vm279, %v220, 0.0
      %v1881 = vrot.slane %v1880, 4
      %v1882 = vadd.f32 %v1880, %v1881
      %v1883 = vrot.slane %v1882, 2
      %v1884 = vadd.f32 %v1882, %v1883
      %v1885 = vrot.slane %v1884, 1
      %v1886 = vadd.f32 %v1884, %v1885
      %v1887 = vsel %vm279, %v221, 0.0
      %v1888 = vrot.slane %v1887, 4
      %v1889 = vadd.f32 %v1887, %v1888
      %v1890 = vrot.slane %v1889, 2
      %v1891 = vadd.f32 %v1889, %v1890
      %v1892 = vrot.slane %v1891, 1
      %v1893 = vadd.f32 %v1891, %v1892
      %v1894 = vsel %vm279, %v222, 0.0
      %v1895 = vrot.slane %v1894, 4
      %v1896 = vadd.f32 %v1894, %v1895
      %v1897 = vrot.slane %v1896, 2
      %v1898 = vadd.f32 %v1896, %v1897
      %v1899 = vrot.slane %v1898, 1
      %v1900 = vadd.f32 %v1898, %v1899
      %v1901 = vsel %vm279, %v223, 0.0
      %v1902 = vrot.slane %v1901, 4
      %v1903 = vadd.f32 %v1901, %v1902
      %v1904 = vrot.slane %v1903, 2
      %v1905 = vadd.f32 %v1903, %v1904
      %v1906 = vrot.slane %v1905, 1
      %v1907 = vadd.f32 %v1905, %v1906
      %v1908 = vsel %vm279, %v224, 0.0
      %v1909 = vrot.slane %v1908, 4
      %v1910 = vadd.f32 %v1908, %v1909
      %v1911 = vrot.slane %v1910, 2
      %v1912 = vadd.f32 %v1910, %v1911
      %v1913 = vrot.slane %v1912, 1
      %v1914 = vadd.f32 %v1912, %v1913
      %v1915 = vsel %vm279, %v225, 0.0
      %v1916 = vrot.slane %v1915, 4
      %v1917 = vadd.f32 %v1915, %v1916
      %v1918 = vrot.slane %v1917, 2
      %v1919 = vadd.f32 %v1917, %v1918
      %v1920 = vrot.slane %v1919, 1
      %v1921 = vadd.f32 %v1919, %v1920
      %v1922 = vsel %vm279, %v226, 0.0
      %v1923 = vrot.slane %v1922, 4
      %v1924 = vadd.f32 %v1922, %v1923
      %v1925 = vrot.slane %v1924, 2
      %v1926 = vadd.f32 %v1924, %v1925
      %v1927 = vrot.slane %v1926, 1
      %v1928 = vadd.f32 %v1926, %v1927
      %v1929 = vsel %vm279, %v227, 0.0
      %v1930 = vrot.slane %v1929, 4
      %v1931 = vadd.f32 %v1929, %v1930
      %v1932 = vrot.slane %v1931, 2
      %v1933 = vadd.f32 %v1931, %v1932
      %v1934 = vrot.slane %v1933, 1
      %v1935 = vadd.f32 %v1933, %v1934
      %v1936 = vsel %vm279, %v228, 0.0
      %v1937 = vrot.slane %v1936, 4
      %v1938 = vadd.f32 %v1936, %v1937
      %v1939 = vrot.slane %v1938, 2
      %v1940 = vadd.f32 %v1938, %v1939
      %v1941 = vrot.slane %v1940, 1
      %v1942 = vadd.f32 %v1940, %v1941
      %v1943 = vsel %vm279, %v229, 0.0
      %v1944 = vrot.slane %v1943, 4
      %v1945 = vadd.f32 %v1943, %v1944
      %v1946 = vrot.slane %v1945, 2
      %v1947 = vadd.f32 %v1945, %v1946
      %v1948 = vrot.slane %v1947, 1
      %v1949 = vadd.f32 %v1947, %v1948
      %v1950 = vsel %vm279, %v230, 0.0
      %v1951 = vrot.slane %v1950, 4
      %v1952 = vadd.f32 %v1950, %v1951
      %v1953 = vrot.slane %v1952, 2
      %v1954 = vadd.f32 %v1952, %v1953
      %v1955 = vrot.slane %v1954, 1
      %v1956 = vadd.f32 %v1954, %v1955
      %v1957 = vsel %vm279, %v231, 0.0
      %v1958 = vrot.slane %v1957, 4
      %v1959 = vadd.f32 %v1957, %v1958
      %v1960 = vrot.slane %v1959, 2
      %v1961 = vadd.f32 %v1959, %v1960
      %v1962 = vrot.slane %v1961, 1
      %v1963 = vadd.f32 %v1961, %v1962
      %v1964 = vsel %vm279, %v232, 0.0
      %v1965 = vrot.slane %v1964, 4
      %v1966 = vadd.f32 %v1964, %v1965
      %v1967 = vrot.slane %v1966, 2
      %v1968 = vadd.f32 %v1966, %v1967
      %v1969 = vrot.slane %v1968, 1
      %v1970 = vadd.f32 %v1968, %v1969
      %v1971 = vsel %vm279, %v233, 0.0
      %v1972 = vrot.slane %v1971, 4
      %v1973 = vadd.f32 %v1971, %v1972
      %v1974 = vrot.slane %v1973, 2
      %v1975 = vadd.f32 %v1973, %v1974
      %v1976 = vrot.slane %v1975, 1
      %v1977 = vadd.f32 %v1975, %v1976
      %v1978 = vsel %vm279, %v234, 0.0
      %v1979 = vrot.slane %v1978, 4
      %v1980 = vadd.f32 %v1978, %v1979
      %v1981 = vrot.slane %v1980, 2
      %v1982 = vadd.f32 %v1980, %v1981
      %v1983 = vrot.slane %v1982, 1
      %v1984 = vadd.f32 %v1982, %v1983
      %v1985 = vsel %vm279, %v235, 0.0
      %v1986 = vrot.slane %v1985, 4
      %v1987 = vadd.f32 %v1985, %v1986
      %v1988 = vrot.slane %v1987, 2
      %v1989 = vadd.f32 %v1987, %v1988
      %v1990 = vrot.slane %v1989, 1
      %v1991 = vadd.f32 %v1989, %v1990
      %v1992 = vsel %vm279, %v236, 0.0
      %v1993 = vrot.slane %v1992, 4
      %v1994 = vadd.f32 %v1992, %v1993
      %v1995 = vrot.slane %v1994, 2
      %v1996 = vadd.f32 %v1994, %v1995
      %v1997 = vrot.slane %v1996, 1
      %v1998 = vadd.f32 %v1996, %v1997
      %v1999 = vsel %vm279, %v237, 0.0
      %v2000 = vrot.slane %v1999, 4
      %v2001 = vadd.f32 %v1999, %v2000
      %v2002 = vrot.slane %v2001, 2
      %v2003 = vadd.f32 %v2001, %v2002
      %v2004 = vrot.slane %v2003, 1
      %v2005 = vadd.f32 %v2003, %v2004
      %v2006 = vsel %vm279, %v238, 0.0
      %v2007 = vrot.slane %v2006, 4
      %v2008 = vadd.f32 %v2006, %v2007
      %v2009 = vrot.slane %v2008, 2
      %v2010 = vadd.f32 %v2008, %v2009
      %v2011 = vrot.slane %v2010, 1
      %v2012 = vadd.f32 %v2010, %v2011
      %v2013 = vsel %vm279, %v239, 0.0
      %v2014 = vrot.slane %v2013, 4
      %v2015 = vadd.f32 %v2013, %v2014
      %v2016 = vrot.slane %v2015, 2
      %v2017 = vadd.f32 %v2015, %v2016
      %v2018 = vrot.slane %v2017, 1
      %v2019 = vadd.f32 %v2017, %v2018
      %v2020 = vsel %vm279, %v240, 0.0
      %v2021 = vrot.slane %v2020, 4
      %v2022 = vadd.f32 %v2020, %v2021
      %v2023 = vrot.slane %v2022, 2
      %v2024 = vadd.f32 %v2022, %v2023
      %v2025 = vrot.slane %v2024, 1
      %v2026 = vadd.f32 %v2024, %v2025
      %v2027 = vsel %vm279, %v241, 0.0
      %v2028 = vrot.slane %v2027, 4
      %v2029 = vadd.f32 %v2027, %v2028
      %v2030 = vrot.slane %v2029, 2
      %v2031 = vadd.f32 %v2029, %v2030
      %v2032 = vrot.slane %v2031, 1
      %v2033 = vadd.f32 %v2031, %v2032
      %v2034 = vsel %vm279, %v242, 0.0
      %v2035 = vrot.slane %v2034, 4
      %v2036 = vadd.f32 %v2034, %v2035
      %v2037 = vrot.slane %v2036, 2
      %v2038 = vadd.f32 %v2036, %v2037
      %v2039 = vrot.slane %v2038, 1
      %v2040 = vadd.f32 %v2038, %v2039
      %v2041 = vsel %vm279, %v243, 0.0
      %v2042 = vrot.slane %v2041, 4
      %v2043 = vadd.f32 %v2041, %v2042
      %v2044 = vrot.slane %v2043, 2
      %v2045 = vadd.f32 %v2043, %v2044
      %v2046 = vrot.slane %v2045, 1
      %v2047 = vadd.f32 %v2045, %v2046
      %v2048 = vsel %vm279, %v244, 0.0
      %v2049 = vrot.slane %v2048, 4
      %v2050 = vadd.f32 %v2048, %v2049
      %v2051 = vrot.slane %v2050, 2
      %v2052 = vadd.f32 %v2050, %v2051
      %v2053 = vrot.slane %v2052, 1
      %v2054 = vadd.f32 %v2052, %v2053
      %v2055 = vsel %vm279, %v245, 0.0
      %v2056 = vrot.slane %v2055, 4
      %v2057 = vadd.f32 %v2055, %v2056
      %v2058 = vrot.slane %v2057, 2
      %v2059 = vadd.f32 %v2057, %v2058
      %v2060 = vrot.slane %v2059, 1
      %v2061 = vadd.f32 %v2059, %v2060
      %v2062 = vsel %vm279, %v246, 0.0
      %v2063 = vrot.slane %v2062, 4
      %v2064 = vadd.f32 %v2062, %v2063
      %v2065 = vrot.slane %v2064, 2
      %v2066 = vadd.f32 %v2064, %v2065
      %v2067 = vrot.slane %v2066, 1
      %v2068 = vadd.f32 %v2066, %v2067
      %v2069 = vsel %vm279, %v247, 0.0
      %v2070 = vrot.slane %v2069, 4
      %v2071 = vadd.f32 %v2069, %v2070
      %v2072 = vrot.slane %v2071, 2
      %v2073 = vadd.f32 %v2071, %v2072
      %v2074 = vrot.slane %v2073, 1
      %v2075 = vadd.f32 %v2073, %v2074
      %v2076 = vsel %vm279, %v248, 0.0
      %v2077 = vrot.slane %v2076, 4
      %v2078 = vadd.f32 %v2076, %v2077
      %v2079 = vrot.slane %v2078, 2
      %v2080 = vadd.f32 %v2078, %v2079
      %v2081 = vrot.slane %v2080, 1
      %v2082 = vadd.f32 %v2080, %v2081
      %v2083 = vsel %vm279, %v249, 0.0
      %v2084 = vrot.slane %v2083, 4
      %v2085 = vadd.f32 %v2083, %v2084
      %v2086 = vrot.slane %v2085, 2
      %v2087 = vadd.f32 %v2085, %v2086
      %v2088 = vrot.slane %v2087, 1
      %v2089 = vadd.f32 %v2087, %v2088
      %v2090 = vsel %vm279, %v250, 0.0
      %v2091 = vrot.slane %v2090, 4
      %v2092 = vadd.f32 %v2090, %v2091
      %v2093 = vrot.slane %v2092, 2
      %v2094 = vadd.f32 %v2092, %v2093
      %v2095 = vrot.slane %v2094, 1
      %v2096 = vadd.f32 %v2094, %v2095
      %v2097 = vsel %vm279, %v251, 0.0
      %v2098 = vrot.slane %v2097, 4
      %v2099 = vadd.f32 %v2097, %v2098
      %v2100 = vrot.slane %v2099, 2
      %v2101 = vadd.f32 %v2099, %v2100
      %v2102 = vrot.slane %v2101, 1
      %v2103 = vadd.f32 %v2101, %v2102
      %v2104 = vsel %vm279, %v252, 0.0
      %v2105 = vrot.slane %v2104, 4
      %v2106 = vadd.f32 %v2104, %v2105
      %v2107 = vrot.slane %v2106, 2
      %v2108 = vadd.f32 %v2106, %v2107
      %v2109 = vrot.slane %v2108, 1
      %v2110 = vadd.f32 %v2108, %v2109
      %v2111 = vsel %vm279, %v253, 0.0
      %v2112 = vrot.slane %v2111, 4
      %v2113 = vadd.f32 %v2111, %v2112
      %v2114 = vrot.slane %v2113, 2
      %v2115 = vadd.f32 %v2113, %v2114
      %v2116 = vrot.slane %v2115, 1
      %v2117 = vadd.f32 %v2115, %v2116
      %v2118 = vsel %vm279, %v254, 0.0
      %v2119 = vrot.slane %v2118, 4
      %v2120 = vadd.f32 %v2118, %v2119
      %v2121 = vrot.slane %v2120, 2
      %v2122 = vadd.f32 %v2120, %v2121
      %v2123 = vrot.slane %v2122, 1
      %v2124 = vadd.f32 %v2122, %v2123
      %v2125 = vsel %vm279, %v255, 0.0
      %v2126 = vrot.slane %v2125, 4
      %v2127 = vadd.f32 %v2125, %v2126
      %v2128 = vrot.slane %v2127, 2
      %v2129 = vadd.f32 %v2127, %v2128
      %v2130 = vrot.slane %v2129, 1
      %v2131 = vadd.f32 %v2129, %v2130
      %v2132 = vsel %vm279, %v256, 0.0
      %v2133 = vrot.slane %v2132, 4
      %v2134 = vadd.f32 %v2132, %v2133
      %v2135 = vrot.slane %v2134, 2
      %v2136 = vadd.f32 %v2134, %v2135
      %v2137 = vrot.slane %v2136, 1
      %v2138 = vadd.f32 %v2136, %v2137
      %v2139 = vsel %vm279, %v257, 0.0
      %v2140 = vrot.slane %v2139, 4
      %v2141 = vadd.f32 %v2139, %v2140
      %v2142 = vrot.slane %v2141, 2
      %v2143 = vadd.f32 %v2141, %v2142
      %v2144 = vrot.slane %v2143, 1
      %v2145 = vadd.f32 %v2143, %v2144
      %v2146 = vsel %vm279, %v258, 0.0
      %v2147 = vrot.slane %v2146, 4
      %v2148 = vadd.f32 %v2146, %v2147
      %v2149 = vrot.slane %v2148, 2
      %v2150 = vadd.f32 %v2148, %v2149
      %v2151 = vrot.slane %v2150, 1
      %v2152 = vadd.f32 %v2150, %v2151
      %v2153 = vsel %vm279, %v259, 0.0
      %v2154 = vrot.slane %v2153, 4
      %v2155 = vadd.f32 %v2153, %v2154
      %v2156 = vrot.slane %v2155, 2
      %v2157 = vadd.f32 %v2155, %v2156
      %v2158 = vrot.slane %v2157, 1
      %v2159 = vadd.f32 %v2157, %v2158
      %v2160 = vsel %vm279, %v260, 0.0
      %v2161 = vrot.slane %v2160, 4
      %v2162 = vadd.f32 %v2160, %v2161
      %v2163 = vrot.slane %v2162, 2
      %v2164 = vadd.f32 %v2162, %v2163
      %v2165 = vrot.slane %v2164, 1
      %v2166 = vadd.f32 %v2164, %v2165
      %v2167 = vsel %vm279, %v261, 0.0
      %v2168 = vrot.slane %v2167, 4
      %v2169 = vadd.f32 %v2167, %v2168
      %v2170 = vrot.slane %v2169, 2
      %v2171 = vadd.f32 %v2169, %v2170
      %v2172 = vrot.slane %v2171, 1
      %v2173 = vadd.f32 %v2171, %v2172
      %v2174 = vsel %vm279, %v262, 0.0
      %v2175 = vrot.slane %v2174, 4
      %v2176 = vadd.f32 %v2174, %v2175
      %v2177 = vrot.slane %v2176, 2
      %v2178 = vadd.f32 %v2176, %v2177
      %v2179 = vrot.slane %v2178, 1
      %v2180 = vadd.f32 %v2178, %v2179
      %v2181 = vsel %vm279, %v263, 0.0
      %v2182 = vrot.slane %v2181, 4
      %v2183 = vadd.f32 %v2181, %v2182
      %v2184 = vrot.slane %v2183, 2
      %v2185 = vadd.f32 %v2183, %v2184
      %v2186 = vrot.slane %v2185, 1
      %v2187 = vadd.f32 %v2185, %v2186
      %v2188 = vsel %vm279, %v264, 0.0
      %v2189 = vrot.slane %v2188, 4
      %v2190 = vadd.f32 %v2188, %v2189
      %v2191 = vrot.slane %v2190, 2
      %v2192 = vadd.f32 %v2190, %v2191
      %v2193 = vrot.slane %v2192, 1
      %v2194 = vadd.f32 %v2192, %v2193
      %v2195 = vsel %vm279, %v265, 0.0
      %v2196 = vrot.slane %v2195, 4
      %v2197 = vadd.f32 %v2195, %v2196
      %v2198 = vrot.slane %v2197, 2
      %v2199 = vadd.f32 %v2197, %v2198
      %v2200 = vrot.slane %v2199, 1
      %v2201 = vadd.f32 %v2199, %v2200
      %v2202 = vsel %vm279, %v266, 0.0
      %v2203 = vrot.slane %v2202, 4
      %v2204 = vadd.f32 %v2202, %v2203
      %v2205 = vrot.slane %v2204, 2
      %v2206 = vadd.f32 %v2204, %v2205
      %v2207 = vrot.slane %v2206, 1
      %v2208 = vadd.f32 %v2206, %v2207
      %v2209 = vsel %vm279, %v267, 0.0
      %v2210 = vrot.slane %v2209, 4
      %v2211 = vadd.f32 %v2209, %v2210
      %v2212 = vrot.slane %v2211, 2
      %v2213 = vadd.f32 %v2211, %v2212
      %v2214 = vrot.slane %v2213, 1
      %v2215 = vadd.f32 %v2213, %v2214
      %v2216 = vsel %vm279, %v268, 0.0
      %v2217 = vrot.slane %v2216, 4
      %v2218 = vadd.f32 %v2216, %v2217
      %v2219 = vrot.slane %v2218, 2
      %v2220 = vadd.f32 %v2218, %v2219
      %v2221 = vrot.slane %v2220, 1
      %v2222 = vadd.f32 %v2220, %v2221
      %v2223 = vsel %vm279, %v269, 0.0
      %v2224 = vrot.slane %v2223, 4
      %v2225 = vadd.f32 %v2223, %v2224
      %v2226 = vrot.slane %v2225, 2
      %v2227 = vadd.f32 %v2225, %v2226
      %v2228 = vrot.slane %v2227, 1
      %v2229 = vadd.f32 %v2227, %v2228
      %v2230 = vsel %vm279, %v270, 0.0
      %v2231 = vrot.slane %v2230, 4
      %v2232 = vadd.f32 %v2230, %v2231
      %v2233 = vrot.slane %v2232, 2
      %v2234 = vadd.f32 %v2232, %v2233
      %v2235 = vrot.slane %v2234, 1
      %v2236 = vadd.f32 %v2234, %v2235
      %v2237 = vsel %vm279, %v271, 0.0
      %v2238 = vrot.slane %v2237, 4
      %v2239 = vadd.f32 %v2237, %v2238
      %v2240 = vrot.slane %v2239, 2
      %v2241 = vadd.f32 %v2239, %v2240
      %v2242 = vrot.slane %v2241, 1
      %v2243 = vadd.f32 %v2241, %v2242
      %v2244 = vsel %vm279, %v272, 0.0
      %v2245 = vrot.slane %v2244, 4
      %v2246 = vadd.f32 %v2244, %v2245
      %v2247 = vrot.slane %v2246, 2
      %v2248 = vadd.f32 %v2246, %v2247
      %v2249 = vrot.slane %v2248, 1
      %v2250 = vadd.f32 %v2248, %v2249
      %v2251 = vsel %vm279, %v273, 0.0
      %v2252 = vrot.slane %v2251, 4
      %v2253 = vadd.f32 %v2251, %v2252
      %v2254 = vrot.slane %v2253, 2
      %v2255 = vadd.f32 %v2253, %v2254
      %v2256 = vrot.slane %v2255, 1
      %v2257 = vadd.f32 %v2255, %v2256
      %v2258 = vsel %vm279, %v274, 0.0
      %v2259 = vrot.slane %v2258, 4
      %v2260 = vadd.f32 %v2258, %v2259
      %v2261 = vrot.slane %v2260, 2
      %v2262 = vadd.f32 %v2260, %v2261
      %v2263 = vrot.slane %v2262, 1
      %v2264 = vadd.f32 %v2262, %v2263
      %v2265 = vrcp.pop 8.0
      %v2266 = vmul.f32 %v1375, %v2265
      %v2267 = vmul.f32 %v1382, %v2265
      %v2268 = vmul.f32 %v1389, %v2265
      %v2269 = vmul.f32 %v1396, %v2265
      %v2270 = vmul.f32 %v1403, %v2265
      %v2271 = vmul.f32 %v1410, %v2265
      %v2272 = vmul.f32 %v1417, %v2265
      %v2273 = vmul.f32 %v1424, %v2265
      %v2274 = vmul.f32 %v1431, %v2265
      %v2275 = vmul.f32 %v1438, %v2265
      %v2276 = vmul.f32 %v1445, %v2265
      %v2277 = vmul.f32 %v1452, %v2265
      %v2278 = vmul.f32 %v1459, %v2265
      %v2279 = vmul.f32 %v1466, %v2265
      %v2280 = vmul.f32 %v1473, %v2265
      %v2281 = vmul.f32 %v1480, %v2265
      %v2282 = vmul.f32 %v1487, %v2265
      %v2283 = vmul.f32 %v1494, %v2265
      %v2284 = vmul.f32 %v1501, %v2265
      %v2285 = vmul.f32 %v1508, %v2265
      %v2286 = vmul.f32 %v1515, %v2265
      %v2287 = vmul.f32 %v1522, %v2265
      %v2288 = vmul.f32 %v1529, %v2265
      %v2289 = vmul.f32 %v1536, %v2265
      %v2290 = vmul.f32 %v1543, %v2265
      %v2291 = vmul.f32 %v1550, %v2265
      %v2292 = vmul.f32 %v1557, %v2265
      %v2293 = vmul.f32 %v1564, %v2265
      %v2294 = vmul.f32 %v1571, %v2265
      %v2295 = vmul.f32 %v1578, %v2265
      %v2296 = vmul.f32 %v1585, %v2265
      %v2297 = vmul.f32 %v1592, %v2265
      %v2298 = vmul.f32 %v1599, %v2265
      %v2299 = vmul.f32 %v1606, %v2265
      %v2300 = vmul.f32 %v1613, %v2265
      %v2301 = vmul.f32 %v1620, %v2265
      %v2302 = vmul.f32 %v1627, %v2265
      %v2303 = vmul.f32 %v1634, %v2265
      %v2304 = vmul.f32 %v1641, %v2265
      %v2305 = vmul.f32 %v1648, %v2265
      %v2306 = vmul.f32 %v1655, %v2265
      %v2307 = vmul.f32 %v1662, %v2265
      %v2308 = vmul.f32 %v1669, %v2265
      %v2309 = vmul.f32 %v1676, %v2265
      %v2310 = vmul.f32 %v1683, %v2265
      %v2311 = vmul.f32 %v1690, %v2265
      %v2312 = vmul.f32 %v1697, %v2265
      %v2313 = vmul.f32 %v1704, %v2265
      %v2314 = vmul.f32 %v1711, %v2265
      %v2315 = vmul.f32 %v1718, %v2265
      %v2316 = vmul.f32 %v1725, %v2265
      %v2317 = vmul.f32 %v1732, %v2265
      %v2318 = vmul.f32 %v1739, %v2265
      %v2319 = vmul.f32 %v1746, %v2265
      %v2320 = vmul.f32 %v1753, %v2265
      %v2321 = vmul.f32 %v1760, %v2265
      %v2322 = vmul.f32 %v1767, %v2265
      %v2323 = vmul.f32 %v1774, %v2265
      %v2324 = vmul.f32 %v1781, %v2265
      %v2325 = vmul.f32 %v1788, %v2265
      %v2326 = vmul.f32 %v1795, %v2265
      %v2327 = vmul.f32 %v1802, %v2265
      %v2328 = vmul.f32 %v1809, %v2265
      %v2329 = vmul.f32 %v1816, %v2265
      %v2330 = vmul.f32 %v1823, %v2265
      %v2331 = vmul.f32 %v1830, %v2265
      %v2332 = vmul.f32 %v1837, %v2265
      %v2333 = vmul.f32 %v1844, %v2265
      %v2334 = vmul.f32 %v1851, %v2265
      %v2335 = vmul.f32 %v1858, %v2265
      %v2336 = vmul.f32 %v1865, %v2265
      %v2337 = vmul.f32 %v1872, %v2265
      %v2338 = vmul.f32 %v1879, %v2265
      %v2339 = vmul.f32 %v1886, %v2265
      %v2340 = vmul.f32 %v1893, %v2265
      %v2341 = vmul.f32 %v1900, %v2265
      %v2342 = vmul.f32 %v1907, %v2265
      %v2343 = vmul.f32 %v1914, %v2265
      %v2344 = vmul.f32 %v1921, %v2265
      %v2345 = vmul.f32 %v1928, %v2265
      %v2346 = vmul.f32 %v1935, %v2265
      %v2347 = vmul.f32 %v1942, %v2265
      %v2348 = vmul.f32 %v1949, %v2265
      %v2349 = vmul.f32 %v1956, %v2265
      %v2350 = vmul.f32 %v1963, %v2265
      %v2351 = vmul.f32 %v1970, %v2265
      %v2352 = vmul.f32 %v1977, %v2265
      %v2353 = vmul.f32 %v1984, %v2265
      %v2354 = vmul.f32 %v1991, %v2265
      %v2355 = vmul.f32 %v1998, %v2265
      %v2356 = vmul.f32 %v2005, %v2265
      %v2357 = vmul.f32 %v2012, %v2265
      %v2358 = vmul.f32 %v2019, %v2265
      %v2359 = vmul.f32 %v2026, %v2265
      %v2360 = vmul.f32 %v2033, %v2265
      %v2361 = vmul.f32 %v2040, %v2265
      %v2362 = vmul.f32 %v2047, %v2265
      %v2363 = vmul.f32 %v2054, %v2265
      %v2364 = vmul.f32 %v2061, %v2265
      %v2365 = vmul.f32 %v2068, %v2265
      %v2366 = vmul.f32 %v2075, %v2265
      %v2367 = vmul.f32 %v2082, %v2265
      %v2368 = vmul.f32 %v2089, %v2265
      %v2369 = vmul.f32 %v2096, %v2265
      %v2370 = vmul.f32 %v2103, %v2265
      %v2371 = vmul.f32 %v2110, %v2265
      %v2372 = vmul.f32 %v2117, %v2265
      %v2373 = vmul.f32 %v2124, %v2265
      %v2374 = vmul.f32 %v2131, %v2265
      %v2375 = vmul.f32 %v2138, %v2265
      %v2376 = vmul.f32 %v2145, %v2265
      %v2377 = vmul.f32 %v2152, %v2265
      %v2378 = vmul.f32 %v2159, %v2265
      %v2379 = vmul.f32 %v2166, %v2265
      %v2380 = vmul.f32 %v2173, %v2265
      %v2381 = vmul.f32 %v2180, %v2265
      %v2382 = vmul.f32 %v2187, %v2265
      %v2383 = vmul.f32 %v2194, %v2265
      %v2384 = vmul.f32 %v2201, %v2265
      %v2385 = vmul.f32 %v2208, %v2265
      %v2386 = vmul.f32 %v2215, %v2265
      %v2387 = vmul.f32 %v2222, %v2265
      %v2388 = vmul.f32 %v2229, %v2265
      %v2389 = vmul.f32 %v2236, %v2265
      %v2390 = vmul.f32 %v2243, %v2265
      %v2391 = vmul.f32 %v2250, %v2265
      %v2392 = vmul.f32 %v2257, %v2265
      %v2393 = vmul.f32 %v2264, %v2265
      %v2394 = vmul.f32 %v731, %v2266
      %v2395 = vmul.f32 %v736, %v2267
      %v2396 = vmul.f32 %v741, %v2268
      %v2397 = vmul.f32 %v746, %v2269
      %v2398 = vmul.f32 %v751, %v2270
      %v2399 = vmul.f32 %v756, %v2271
      %v2400 = vmul.f32 %v761, %v2272
      %v2401 = vmul.f32 %v766, %v2273
      %v2402 = vmul.f32 %v771, %v2274
      %v2403 = vmul.f32 %v776, %v2275
      %v2404 = vmul.f32 %v781, %v2276
      %v2405 = vmul.f32 %v786, %v2277
      %v2406 = vmul.f32 %v791, %v2278
      %v2407 = vmul.f32 %v796, %v2279
      %v2408 = vmul.f32 %v801, %v2280
      %v2409 = vmul.f32 %v806, %v2281
      %v2410 = vmul.f32 %v811, %v2282
      %v2411 = vmul.f32 %v816, %v2283
      %v2412 = vmul.f32 %v821, %v2284
      %v2413 = vmul.f32 %v826, %v2285
      %v2414 = vmul.f32 %v831, %v2286
      %v2415 = vmul.f32 %v836, %v2287
      %v2416 = vmul.f32 %v841, %v2288
      %v2417 = vmul.f32 %v846, %v2289
      %v2418 = vmul.f32 %v851, %v2290
      %v2419 = vmul.f32 %v856, %v2291
      %v2420 = vmul.f32 %v861, %v2292
      %v2421 = vmul.f32 %v866, %v2293
      %v2422 = vmul.f32 %v871, %v2294
      %v2423 = vmul.f32 %v876, %v2295
      %v2424 = vmul.f32 %v881, %v2296
      %v2425 = vmul.f32 %v886, %v2297
      %v2426 = vmul.f32 %v891, %v2298
      %v2427 = vmul.f32 %v896, %v2299
      %v2428 = vmul.f32 %v901, %v2300
      %v2429 = vmul.f32 %v906, %v2301
      %v2430 = vmul.f32 %v911, %v2302
      %v2431 = vmul.f32 %v916, %v2303
      %v2432 = vmul.f32 %v921, %v2304
      %v2433 = vmul.f32 %v926, %v2305
      %v2434 = vmul.f32 %v931, %v2306
      %v2435 = vmul.f32 %v936, %v2307
      %v2436 = vmul.f32 %v941, %v2308
      %v2437 = vmul.f32 %v946, %v2309
      %v2438 = vmul.f32 %v951, %v2310
      %v2439 = vmul.f32 %v956, %v2311
      %v2440 = vmul.f32 %v961, %v2312
      %v2441 = vmul.f32 %v966, %v2313
      %v2442 = vmul.f32 %v971, %v2314
      %v2443 = vmul.f32 %v976, %v2315
      %v2444 = vmul.f32 %v981, %v2316
      %v2445 = vmul.f32 %v986, %v2317
      %v2446 = vmul.f32 %v991, %v2318
      %v2447 = vmul.f32 %v996, %v2319
      %v2448 = vmul.f32 %v1001, %v2320
      %v2449 = vmul.f32 %v1006, %v2321
      %v2450 = vmul.f32 %v1011, %v2322
      %v2451 = vmul.f32 %v1016, %v2323
      %v2452 = vmul.f32 %v1021, %v2324
      %v2453 = vmul.f32 %v1026, %v2325
      %v2454 = vmul.f32 %v1031, %v2326
      %v2455 = vmul.f32 %v1036, %v2327
      %v2456 = vmul.f32 %v1041, %v2328
      %v2457 = vmul.f32 %v1046, %v2329
      %v2458 = vmul.f32 %v1051, %v2330
      %v2459 = vmul.f32 %v1056, %v2331
      %v2460 = vmul.f32 %v1061, %v2332
      %v2461 = vmul.f32 %v1066, %v2333
      %v2462 = vmul.f32 %v1071, %v2334
      %v2463 = vmul.f32 %v1076, %v2335
      %v2464 = vmul.f32 %v1081, %v2336
      %v2465 = vmul.f32 %v1086, %v2337
      %v2466 = vmul.f32 %v1091, %v2338
      %v2467 = vmul.f32 %v1096, %v2339
      %v2468 = vmul.f32 %v1101, %v2340
      %v2469 = vmul.f32 %v1106, %v2341
      %v2470 = vmul.f32 %v1111, %v2342
      %v2471 = vmul.f32 %v1116, %v2343
      %v2472 = vmul.f32 %v1121, %v2344
      %v2473 = vmul.f32 %v1126, %v2345
      %v2474 = vmul.f32 %v1131, %v2346
      %v2475 = vmul.f32 %v1136, %v2347
      %v2476 = vmul.f32 %v1141, %v2348
      %v2477 = vmul.f32 %v1146, %v2349
      %v2478 = vmul.f32 %v1151, %v2350
      %v2479 = vmul.f32 %v1156, %v2351
      %v2480 = vmul.f32 %v1161, %v2352
      %v2481 = vmul.f32 %v1166, %v2353
      %v2482 = vmul.f32 %v1171, %v2354
      %v2483 = vmul.f32 %v1176, %v2355
      %v2484 = vmul.f32 %v1181, %v2356
      %v2485 = vmul.f32 %v1186, %v2357
      %v2486 = vmul.f32 %v1191, %v2358
      %v2487 = vmul.f32 %v1196, %v2359
      %v2488 = vmul.f32 %v1201, %v2360
      %v2489 = vmul.f32 %v1206, %v2361
      %v2490 = vmul.f32 %v1211, %v2362
      %v2491 = vmul.f32 %v1216, %v2363
      %v2492 = vmul.f32 %v1221, %v2364
      %v2493 = vmul.f32 %v1226, %v2365
      %v2494 = vmul.f32 %v1231, %v2366
      %v2495 = vmul.f32 %v1236, %v2367
      %v2496 = vmul.f32 %v1241, %v2368
      %v2497 = vmul.f32 %v1246, %v2369
      %v2498 = vmul.f32 %v1251, %v2370
      %v2499 = vmul.f32 %v1256, %v2371
      %v2500 = vmul.f32 %v1261, %v2372
      %v2501 = vmul.f32 %v1266, %v2373
      %v2502 = vmul.f32 %v1271, %v2374
      %v2503 = vmul.f32 %v1276, %v2375
      %v2504 = vmul.f32 %v1281, %v2376
      %v2505 = vmul.f32 %v1286, %v2377
      %v2506 = vmul.f32 %v1291, %v2378
      %v2507 = vmul.f32 %v1296, %v2379
      %v2508 = vmul.f32 %v1301, %v2380
      %v2509 = vmul.f32 %v1306, %v2381
      %v2510 = vmul.f32 %v1311, %v2382
      %v2511 = vmul.f32 %v1316, %v2383
      %v2512 = vmul.f32 %v1321, %v2384
      %v2513 = vmul.f32 %v1326, %v2385
      %v2514 = vmul.f32 %v1331, %v2386
      %v2515 = vmul.f32 %v1336, %v2387
      %v2516 = vmul.f32 %v1341, %v2388
      %v2517 = vmul.f32 %v1346, %v2389
      %v2518 = vmul.f32 %v1351, %v2390
      %v2519 = vmul.f32 %v1356, %v2391
      %v2520 = vmul.f32 %v1361, %v2392
      %v2521 = vmul.f32 %v1366, %v2393
      %v2522 = vsel %vm279, %v2394, 0.0
      %2523 = vadd.xlane.f32.xlu0 %v2522
      %v2524 = vpop.xlane.xlu0 %2523
      %v2525 = vsel %vm279, %v2395, 0.0
      %2526 = vadd.xlane.f32.xlu0 %v2525
      %v2527 = vpop.xlane.xlu0 %2526
      %v2528 = vsel %vm279, %v2396, 0.0
      %2529 = vadd.xlane.f32.xlu0 %v2528
      %v2530 = vpop.xlane.xlu0 %2529
      %v2531 = vsel %vm279, %v2397, 0.0
      %2532 = vadd.xlane.f32.xlu0 %v2531
      %v2533 = vpop.xlane.xlu0 %2532
      %v2534 = vsel %vm279, %v2398, 0.0
      %2535 = vadd.xlane.f32.xlu0 %v2534
      %v2536 = vpop.xlane.xlu0 %2535
      %v2537 = vsel %vm279, %v2399, 0.0
      %2538 = vadd.xlane.f32.xlu0 %v2537
      %v2539 = vpop.xlane.xlu0 %2538
      %v2540 = vsel %vm279, %v2400, 0.0
      %2541 = vadd.xlane.f32.xlu0 %v2540
      %v2542 = vpop.xlane.xlu0 %2541
      %v2543 = vsel %vm279, %v2401, 0.0
      %2544 = vadd.xlane.f32.xlu0 %v2543
      %v2545 = vpop.xlane.xlu0 %2544
      %v2546 = vsel %vm279, %v2402, 0.0
      %2547 = vadd.xlane.f32.xlu0 %v2546
      %v2548 = vpop.xlane.xlu0 %2547
      %v2549 = vsel %vm279, %v2403, 0.0
      %2550 = vadd.xlane.f32.xlu0 %v2549
      %v2551 = vpop.xlane.xlu0 %2550
      %v2552 = vsel %vm279, %v2404, 0.0
      %2553 = vadd.xlane.f32.xlu0 %v2552
      %v2554 = vpop.xlane.xlu0 %2553
      %v2555 = vsel %vm279, %v2405, 0.0
      %2556 = vadd.xlane.f32.xlu0 %v2555
      %v2557 = vpop.xlane.xlu0 %2556
      %v2558 = vsel %vm279, %v2406, 0.0
      %2559 = vadd.xlane.f32.xlu0 %v2558
      %v2560 = vpop.xlane.xlu0 %2559
      %v2561 = vsel %vm279, %v2407, 0.0
      %2562 = vadd.xlane.f32.xlu0 %v2561
      %v2563 = vpop.xlane.xlu0 %2562
      %v2564 = vsel %vm279, %v2408, 0.0
      %2565 = vadd.xlane.f32.xlu0 %v2564
      %v2566 = vpop.xlane.xlu0 %2565
      %v2567 = vsel %vm279, %v2409, 0.0
      %2568 = vadd.xlane.f32.xlu0 %v2567
      %v2569 = vpop.xlane.xlu0 %2568
      %v2570 = vsel %vm279, %v2410, 0.0
      %2571 = vadd.xlane.f32.xlu0 %v2570
      %v2572 = vpop.xlane.xlu0 %2571
      %v2573 = vsel %vm279, %v2411, 0.0
      %2574 = vadd.xlane.f32.xlu0 %v2573
      %v2575 = vpop.xlane.xlu0 %2574
      %v2576 = vsel %vm279, %v2412, 0.0
      %2577 = vadd.xlane.f32.xlu0 %v2576
      %v2578 = vpop.xlane.xlu0 %2577
      %v2579 = vsel %vm279, %v2413, 0.0
      %2580 = vadd.xlane.f32.xlu0 %v2579
      %v2581 = vpop.xlane.xlu0 %2580
      %v2582 = vsel %vm279, %v2414, 0.0
      %2583 = vadd.xlane.f32.xlu0 %v2582
      %v2584 = vpop.xlane.xlu0 %2583
      %v2585 = vsel %vm279, %v2415, 0.0
      %2586 = vadd.xlane.f32.xlu0 %v2585
      %v2587 = vpop.xlane.xlu0 %2586
      %v2588 = vsel %vm279, %v2416, 0.0
      %2589 = vadd.xlane.f32.xlu0 %v2588
      %v2590 = vpop.xlane.xlu0 %2589
      %v2591 = vsel %vm279, %v2417, 0.0
      %2592 = vadd.xlane.f32.xlu0 %v2591
      %v2593 = vpop.xlane.xlu0 %2592
      %v2594 = vsel %vm279, %v2418, 0.0
      %2595 = vadd.xlane.f32.xlu0 %v2594
      %v2596 = vpop.xlane.xlu0 %2595
      %v2597 = vsel %vm279, %v2419, 0.0
      %2598 = vadd.xlane.f32.xlu0 %v2597
      %v2599 = vpop.xlane.xlu0 %2598
      %v2600 = vsel %vm279, %v2420, 0.0
      %2601 = vadd.xlane.f32.xlu0 %v2600
      %v2602 = vpop.xlane.xlu0 %2601
      %v2603 = vsel %vm279, %v2421, 0.0
      %2604 = vadd.xlane.f32.xlu0 %v2603
      %v2605 = vpop.xlane.xlu0 %2604
      %v2606 = vsel %vm279, %v2422, 0.0
      %2607 = vadd.xlane.f32.xlu0 %v2606
      %v2608 = vpop.xlane.xlu0 %2607
      %v2609 = vsel %vm279, %v2423, 0.0
      %2610 = vadd.xlane.f32.xlu0 %v2609
      %v2611 = vpop.xlane.xlu0 %2610
      %v2612 = vsel %vm279, %v2424, 0.0
      %2613 = vadd.xlane.f32.xlu0 %v2612
      %v2614 = vpop.xlane.xlu0 %2613
      %v2615 = vsel %vm279, %v2425, 0.0
      %2616 = vadd.xlane.f32.xlu0 %v2615
      %v2617 = vpop.xlane.xlu0 %2616
      %v2618 = vsel %vm279, %v2426, 0.0
      %2619 = vadd.xlane.f32.xlu0 %v2618
      %v2620 = vpop.xlane.xlu0 %2619
      %v2621 = vsel %vm279, %v2427, 0.0
      %2622 = vadd.xlane.f32.xlu0 %v2621
      %v2623 = vpop.xlane.xlu0 %2622
      %v2624 = vsel %vm279, %v2428, 0.0
      %2625 = vadd.xlane.f32.xlu0 %v2624
      %v2626 = vpop.xlane.xlu0 %2625
      %v2627 = vsel %vm279, %v2429, 0.0
      %2628 = vadd.xlane.f32.xlu0 %v2627
      %v2629 = vpop.xlane.xlu0 %2628
      %v2630 = vsel %vm279, %v2430, 0.0
      %2631 = vadd.xlane.f32.xlu0 %v2630
      %v2632 = vpop.xlane.xlu0 %2631
      %v2633 = vsel %vm279, %v2431, 0.0
      %2634 = vadd.xlane.f32.xlu0 %v2633
      %v2635 = vpop.xlane.xlu0 %2634
      %v2636 = vsel %vm279, %v2432, 0.0
      %2637 = vadd.xlane.f32.xlu0 %v2636
      %v2638 = vpop.xlane.xlu0 %2637
      %v2639 = vsel %vm279, %v2433, 0.0
      %2640 = vadd.xlane.f32.xlu0 %v2639
      %v2641 = vpop.xlane.xlu0 %2640
      %v2642 = vsel %vm279, %v2434, 0.0
      %2643 = vadd.xlane.f32.xlu0 %v2642
      %v2644 = vpop.xlane.xlu0 %2643
      %v2645 = vsel %vm279, %v2435, 0.0
      %2646 = vadd.xlane.f32.xlu0 %v2645
      %v2647 = vpop.xlane.xlu0 %2646
      %v2648 = vsel %vm279, %v2436, 0.0
      %2649 = vadd.xlane.f32.xlu0 %v2648
      %v2650 = vpop.xlane.xlu0 %2649
      %v2651 = vsel %vm279, %v2437, 0.0
      %2652 = vadd.xlane.f32.xlu0 %v2651
      %v2653 = vpop.xlane.xlu0 %2652
      %v2654 = vsel %vm279, %v2438, 0.0
      %2655 = vadd.xlane.f32.xlu0 %v2654
      %v2656 = vpop.xlane.xlu0 %2655
      %v2657 = vsel %vm279, %v2439, 0.0
      %2658 = vadd.xlane.f32.xlu0 %v2657
      %v2659 = vpop.xlane.xlu0 %2658
      %v2660 = vsel %vm279, %v2440, 0.0
      %2661 = vadd.xlane.f32.xlu0 %v2660
      %v2662 = vpop.xlane.xlu0 %2661
      %v2663 = vsel %vm279, %v2441, 0.0
      %2664 = vadd.xlane.f32.xlu0 %v2663
      %v2665 = vpop.xlane.xlu0 %2664
      %v2666 = vsel %vm279, %v2442, 0.0
      %2667 = vadd.xlane.f32.xlu0 %v2666
      %v2668 = vpop.xlane.xlu0 %2667
      %v2669 = vsel %vm279, %v2443, 0.0
      %2670 = vadd.xlane.f32.xlu0 %v2669
      %v2671 = vpop.xlane.xlu0 %2670
      %v2672 = vsel %vm279, %v2444, 0.0
      %2673 = vadd.xlane.f32.xlu0 %v2672
      %v2674 = vpop.xlane.xlu0 %2673
      %v2675 = vsel %vm279, %v2445, 0.0
      %2676 = vadd.xlane.f32.xlu0 %v2675
      %v2677 = vpop.xlane.xlu0 %2676
      %v2678 = vsel %vm279, %v2446, 0.0
      %2679 = vadd.xlane.f32.xlu0 %v2678
      %v2680 = vpop.xlane.xlu0 %2679
      %v2681 = vsel %vm279, %v2447, 0.0
      %2682 = vadd.xlane.f32.xlu0 %v2681
      %v2683 = vpop.xlane.xlu0 %2682
      %v2684 = vsel %vm279, %v2448, 0.0
      %2685 = vadd.xlane.f32.xlu0 %v2684
      %v2686 = vpop.xlane.xlu0 %2685
      %v2687 = vsel %vm279, %v2449, 0.0
      %2688 = vadd.xlane.f32.xlu0 %v2687
      %v2689 = vpop.xlane.xlu0 %2688
      %v2690 = vsel %vm279, %v2450, 0.0
      %2691 = vadd.xlane.f32.xlu0 %v2690
      %v2692 = vpop.xlane.xlu0 %2691
      %v2693 = vsel %vm279, %v2451, 0.0
      %2694 = vadd.xlane.f32.xlu0 %v2693
      %v2695 = vpop.xlane.xlu0 %2694
      %v2696 = vsel %vm279, %v2452, 0.0
      %2697 = vadd.xlane.f32.xlu0 %v2696
      %v2698 = vpop.xlane.xlu0 %2697
      %v2699 = vsel %vm279, %v2453, 0.0
      %2700 = vadd.xlane.f32.xlu0 %v2699
      %v2701 = vpop.xlane.xlu0 %2700
      %v2702 = vsel %vm279, %v2454, 0.0
      %2703 = vadd.xlane.f32.xlu0 %v2702
      %v2704 = vpop.xlane.xlu0 %2703
      %v2705 = vsel %vm279, %v2455, 0.0
      %2706 = vadd.xlane.f32.xlu0 %v2705
      %v2707 = vpop.xlane.xlu0 %2706
      %v2708 = vsel %vm279, %v2456, 0.0
      %2709 = vadd.xlane.f32.xlu0 %v2708
      %v2710 = vpop.xlane.xlu0 %2709
      %v2711 = vsel %vm279, %v2457, 0.0
      %2712 = vadd.xlane.f32.xlu0 %v2711
      %v2713 = vpop.xlane.xlu0 %2712
      %v2714 = vsel %vm279, %v2458, 0.0
      %2715 = vadd.xlane.f32.xlu0 %v2714
      %v2716 = vpop.xlane.xlu0 %2715
      %v2717 = vsel %vm279, %v2459, 0.0
      %2718 = vadd.xlane.f32.xlu0 %v2717
      %v2719 = vpop.xlane.xlu0 %2718
      %v2720 = vsel %vm279, %v2460, 0.0
      %2721 = vadd.xlane.f32.xlu0 %v2720
      %v2722 = vpop.xlane.xlu0 %2721
      %v2723 = vsel %vm279, %v2461, 0.0
      %2724 = vadd.xlane.f32.xlu0 %v2723
      %v2725 = vpop.xlane.xlu0 %2724
      %v2726 = vsel %vm279, %v2462, 0.0
      %2727 = vadd.xlane.f32.xlu0 %v2726
      %v2728 = vpop.xlane.xlu0 %2727
      %v2729 = vsel %vm279, %v2463, 0.0
      %2730 = vadd.xlane.f32.xlu0 %v2729
      %v2731 = vpop.xlane.xlu0 %2730
      %v2732 = vsel %vm279, %v2464, 0.0
      %2733 = vadd.xlane.f32.xlu0 %v2732
      %v2734 = vpop.xlane.xlu0 %2733
      %v2735 = vsel %vm279, %v2465, 0.0
      %2736 = vadd.xlane.f32.xlu0 %v2735
      %v2737 = vpop.xlane.xlu0 %2736
      %v2738 = vsel %vm279, %v2466, 0.0
      %2739 = vadd.xlane.f32.xlu0 %v2738
      %v2740 = vpop.xlane.xlu0 %2739
      %v2741 = vsel %vm279, %v2467, 0.0
      %2742 = vadd.xlane.f32.xlu0 %v2741
      %v2743 = vpop.xlane.xlu0 %2742
      %v2744 = vsel %vm279, %v2468, 0.0
      %2745 = vadd.xlane.f32.xlu0 %v2744
      %v2746 = vpop.xlane.xlu0 %2745
      %v2747 = vsel %vm279, %v2469, 0.0
      %2748 = vadd.xlane.f32.xlu0 %v2747
      %v2749 = vpop.xlane.xlu0 %2748
      %v2750 = vsel %vm279, %v2470, 0.0
      %2751 = vadd.xlane.f32.xlu0 %v2750
      %v2752 = vpop.xlane.xlu0 %2751
      %v2753 = vsel %vm279, %v2471, 0.0
      %2754 = vadd.xlane.f32.xlu0 %v2753
      %v2755 = vpop.xlane.xlu0 %2754
      %v2756 = vsel %vm279, %v2472, 0.0
      %2757 = vadd.xlane.f32.xlu0 %v2756
      %v2758 = vpop.xlane.xlu0 %2757
      %v2759 = vsel %vm279, %v2473, 0.0
      %2760 = vadd.xlane.f32.xlu0 %v2759
      %v2761 = vpop.xlane.xlu0 %2760
      %v2762 = vsel %vm279, %v2474, 0.0
      %2763 = vadd.xlane.f32.xlu0 %v2762
      %v2764 = vpop.xlane.xlu0 %2763
      %v2765 = vsel %vm279, %v2475, 0.0
      %2766 = vadd.xlane.f32.xlu0 %v2765
      %v2767 = vpop.xlane.xlu0 %2766
      %v2768 = vsel %vm279, %v2476, 0.0
      %2769 = vadd.xlane.f32.xlu0 %v2768
      %v2770 = vpop.xlane.xlu0 %2769
      %v2771 = vsel %vm279, %v2477, 0.0
      %2772 = vadd.xlane.f32.xlu0 %v2771
      %v2773 = vpop.xlane.xlu0 %2772
      %v2774 = vsel %vm279, %v2478, 0.0
      %2775 = vadd.xlane.f32.xlu0 %v2774
      %v2776 = vpop.xlane.xlu0 %2775
      %v2777 = vsel %vm279, %v2479, 0.0
      %2778 = vadd.xlane.f32.xlu0 %v2777
      %v2779 = vpop.xlane.xlu0 %2778
      %v2780 = vsel %vm279, %v2480, 0.0
      %2781 = vadd.xlane.f32.xlu0 %v2780
      %v2782 = vpop.xlane.xlu0 %2781
      %v2783 = vsel %vm279, %v2481, 0.0
      %2784 = vadd.xlane.f32.xlu0 %v2783
      %v2785 = vpop.xlane.xlu0 %2784
      %v2786 = vsel %vm279, %v2482, 0.0
      %2787 = vadd.xlane.f32.xlu0 %v2786
      %v2788 = vpop.xlane.xlu0 %2787
      %v2789 = vsel %vm279, %v2483, 0.0
      %2790 = vadd.xlane.f32.xlu0 %v2789
      %v2791 = vpop.xlane.xlu0 %2790
      %v2792 = vsel %vm279, %v2484, 0.0
      %2793 = vadd.xlane.f32.xlu0 %v2792
      %v2794 = vpop.xlane.xlu0 %2793
      %v2795 = vsel %vm279, %v2485, 0.0
      %2796 = vadd.xlane.f32.xlu0 %v2795
      %v2797 = vpop.xlane.xlu0 %2796
      %v2798 = vsel %vm279, %v2486, 0.0
      %2799 = vadd.xlane.f32.xlu0 %v2798
      %v2800 = vpop.xlane.xlu0 %2799
      %v2801 = vsel %vm279, %v2487, 0.0
      %2802 = vadd.xlane.f32.xlu0 %v2801
      %v2803 = vpop.xlane.xlu0 %2802
      %v2804 = vsel %vm279, %v2488, 0.0
      %2805 = vadd.xlane.f32.xlu0 %v2804
      %v2806 = vpop.xlane.xlu0 %2805
      %v2807 = vsel %vm279, %v2489, 0.0
      %2808 = vadd.xlane.f32.xlu0 %v2807
      %v2809 = vpop.xlane.xlu0 %2808
      %v2810 = vsel %vm279, %v2490, 0.0
      %2811 = vadd.xlane.f32.xlu0 %v2810
      %v2812 = vpop.xlane.xlu0 %2811
      %v2813 = vsel %vm279, %v2491, 0.0
      %2814 = vadd.xlane.f32.xlu0 %v2813
      %v2815 = vpop.xlane.xlu0 %2814
      %v2816 = vsel %vm279, %v2492, 0.0
      %2817 = vadd.xlane.f32.xlu0 %v2816
      %v2818 = vpop.xlane.xlu0 %2817
      %v2819 = vsel %vm279, %v2493, 0.0
      %2820 = vadd.xlane.f32.xlu0 %v2819
      %v2821 = vpop.xlane.xlu0 %2820
      %v2822 = vsel %vm279, %v2494, 0.0
      %2823 = vadd.xlane.f32.xlu0 %v2822
      %v2824 = vpop.xlane.xlu0 %2823
      %v2825 = vsel %vm279, %v2495, 0.0
      %2826 = vadd.xlane.f32.xlu0 %v2825
      %v2827 = vpop.xlane.xlu0 %2826
      %v2828 = vsel %vm279, %v2496, 0.0
      %2829 = vadd.xlane.f32.xlu0 %v2828
      %v2830 = vpop.xlane.xlu0 %2829
      %v2831 = vsel %vm279, %v2497, 0.0
      %2832 = vadd.xlane.f32.xlu0 %v2831
      %v2833 = vpop.xlane.xlu0 %2832
      %v2834 = vsel %vm279, %v2498, 0.0
      %2835 = vadd.xlane.f32.xlu0 %v2834
      %v2836 = vpop.xlane.xlu0 %2835
      %v2837 = vsel %vm279, %v2499, 0.0
      %2838 = vadd.xlane.f32.xlu0 %v2837
      %v2839 = vpop.xlane.xlu0 %2838
      %v2840 = vsel %vm279, %v2500, 0.0
      %2841 = vadd.xlane.f32.xlu0 %v2840
      %v2842 = vpop.xlane.xlu0 %2841
      %v2843 = vsel %vm279, %v2501, 0.0
      %2844 = vadd.xlane.f32.xlu0 %v2843
      %v2845 = vpop.xlane.xlu0 %2844
      %v2846 = vsel %vm279, %v2502, 0.0
      %2847 = vadd.xlane.f32.xlu0 %v2846
      %v2848 = vpop.xlane.xlu0 %2847
      %v2849 = vsel %vm279, %v2503, 0.0
      %2850 = vadd.xlane.f32.xlu0 %v2849
      %v2851 = vpop.xlane.xlu0 %2850
      %v2852 = vsel %vm279, %v2504, 0.0
      %2853 = vadd.xlane.f32.xlu0 %v2852
      %v2854 = vpop.xlane.xlu0 %2853
      %v2855 = vsel %vm279, %v2505, 0.0
      %2856 = vadd.xlane.f32.xlu0 %v2855
      %v2857 = vpop.xlane.xlu0 %2856
      %v2858 = vsel %vm279, %v2506, 0.0
      %2859 = vadd.xlane.f32.xlu0 %v2858
      %v2860 = vpop.xlane.xlu0 %2859
      %v2861 = vsel %vm279, %v2507, 0.0
      %2862 = vadd.xlane.f32.xlu0 %v2861
      %v2863 = vpop.xlane.xlu0 %2862
      %v2864 = vsel %vm279, %v2508, 0.0
      %2865 = vadd.xlane.f32.xlu0 %v2864
      %v2866 = vpop.xlane.xlu0 %2865
      %v2867 = vsel %vm279, %v2509, 0.0
      %2868 = vadd.xlane.f32.xlu0 %v2867
      %v2869 = vpop.xlane.xlu0 %2868
      %v2870 = vsel %vm279, %v2510, 0.0
      %2871 = vadd.xlane.f32.xlu0 %v2870
      %v2872 = vpop.xlane.xlu0 %2871
      %v2873 = vsel %vm279, %v2511, 0.0
      %2874 = vadd.xlane.f32.xlu0 %v2873
      %v2875 = vpop.xlane.xlu0 %2874
      %v2876 = vsel %vm279, %v2512, 0.0
      %2877 = vadd.xlane.f32.xlu0 %v2876
      %v2878 = vpop.xlane.xlu0 %2877
      %v2879 = vsel %vm279, %v2513, 0.0
      %2880 = vadd.xlane.f32.xlu0 %v2879
      %v2881 = vpop.xlane.xlu0 %2880
      %v2882 = vsel %vm279, %v2514, 0.0
      %2883 = vadd.xlane.f32.xlu0 %v2882
      %v2884 = vpop.xlane.xlu0 %2883
      %v2885 = vsel %vm279, %v2515, 0.0
      %2886 = vadd.xlane.f32.xlu0 %v2885
      %v2887 = vpop.xlane.xlu0 %2886
      %v2888 = vsel %vm279, %v2516, 0.0
      %2889 = vadd.xlane.f32.xlu0 %v2888
      %v2890 = vpop.xlane.xlu0 %2889
      %v2891 = vsel %vm279, %v2517, 0.0
      %2892 = vadd.xlane.f32.xlu0 %v2891
      %v2893 = vpop.xlane.xlu0 %2892
      %v2894 = vsel %vm279, %v2518, 0.0
      %2895 = vadd.xlane.f32.xlu0 %v2894
      %v2896 = vpop.xlane.xlu0 %2895
      %v2897 = vsel %vm279, %v2519, 0.0
      %2898 = vadd.xlane.f32.xlu0 %v2897
      %v2899 = vpop.xlane.xlu0 %2898
      %v2900 = vsel %vm279, %v2520, 0.0
      %2901 = vadd.xlane.f32.xlu0 %v2900
      %v2902 = vpop.xlane.xlu0 %2901
      %v2903 = vsel %vm279, %v2521, 0.0
      %2904 = vadd.xlane.f32.xlu0 %v2903
      %v2905 = vpop.xlane.xlu0 %2904
      %v2906 = vxor.u32 %v2524, 2147483648
      %v2907 = vxor.u32 %v2527, 2147483648
      %v2908 = vxor.u32 %v2530, 2147483648
      %v2909 = vxor.u32 %v2533, 2147483648
      %v2910 = vxor.u32 %v2536, 2147483648
      %v2911 = vxor.u32 %v2539, 2147483648
      %v2912 = vxor.u32 %v2542, 2147483648
      %v2913 = vxor.u32 %v2545, 2147483648
      %v2914 = vxor.u32 %v2548, 2147483648
      %v2915 = vxor.u32 %v2551, 2147483648
      %v2916 = vxor.u32 %v2554, 2147483648
      %v2917 = vxor.u32 %v2557, 2147483648
      %v2918 = vxor.u32 %v2560, 2147483648
      %v2919 = vxor.u32 %v2563, 2147483648
      %v2920 = vxor.u32 %v2566, 2147483648
      %v2921 = vxor.u32 %v2569, 2147483648
      %v2922 = vxor.u32 %v2572, 2147483648
      %v2923 = vxor.u32 %v2575, 2147483648
      %v2924 = vxor.u32 %v2578, 2147483648
      %v2925 = vxor.u32 %v2581, 2147483648
      %v2926 = vxor.u32 %v2584, 2147483648
      %v2927 = vxor.u32 %v2587, 2147483648
      %v2928 = vxor.u32 %v2590, 2147483648
      %v2929 = vxor.u32 %v2593, 2147483648
      %v2930 = vxor.u32 %v2596, 2147483648
      %v2931 = vxor.u32 %v2599, 2147483648
      %v2932 = vxor.u32 %v2602, 2147483648
      %v2933 = vxor.u32 %v2605, 2147483648
      %v2934 = vxor.u32 %v2608, 2147483648
      %v2935 = vxor.u32 %v2611, 2147483648
      %v2936 = vxor.u32 %v2614, 2147483648
      %v2937 = vxor.u32 %v2617, 2147483648
      %v2938 = vxor.u32 %v2620, 2147483648
      %v2939 = vxor.u32 %v2623, 2147483648
      %v2940 = vxor.u32 %v2626, 2147483648
      %v2941 = vxor.u32 %v2629, 2147483648
      %v2942 = vxor.u32 %v2632, 2147483648
      %v2943 = vxor.u32 %v2635, 2147483648
      %v2944 = vxor.u32 %v2638, 2147483648
      %v2945 = vxor.u32 %v2641, 2147483648
      %v2946 = vxor.u32 %v2644, 2147483648
      %v2947 = vxor.u32 %v2647, 2147483648
      %v2948 = vxor.u32 %v2650, 2147483648
      %v2949 = vxor.u32 %v2653, 2147483648
      %v2950 = vxor.u32 %v2656, 2147483648
      %v2951 = vxor.u32 %v2659, 2147483648
      %v2952 = vxor.u32 %v2662, 2147483648
      %v2953 = vxor.u32 %v2665, 2147483648
      %v2954 = vxor.u32 %v2668, 2147483648
      %v2955 = vxor.u32 %v2671, 2147483648
      %v2956 = vxor.u32 %v2674, 2147483648
      %v2957 = vxor.u32 %v2677, 2147483648
      %v2958 = vxor.u32 %v2680, 2147483648
      %v2959 = vxor.u32 %v2683, 2147483648
      %v2960 = vxor.u32 %v2686, 2147483648
      %v2961 = vxor.u32 %v2689, 2147483648
      %v2962 = vxor.u32 %v2692, 2147483648
      %v2963 = vxor.u32 %v2695, 2147483648
      %v2964 = vxor.u32 %v2698, 2147483648
      %v2965 = vxor.u32 %v2701, 2147483648
      %v2966 = vxor.u32 %v2704, 2147483648
      %v2967 = vxor.u32 %v2707, 2147483648
      %v2968 = vxor.u32 %v2710, 2147483648
      %v2969 = vxor.u32 %v2713, 2147483648
      %v2970 = vxor.u32 %v2716, 2147483648
      %v2971 = vxor.u32 %v2719, 2147483648
      %v2972 = vxor.u32 %v2722, 2147483648
      %v2973 = vxor.u32 %v2725, 2147483648
      %v2974 = vxor.u32 %v2728, 2147483648
      %v2975 = vxor.u32 %v2731, 2147483648
      %v2976 = vxor.u32 %v2734, 2147483648
      %v2977 = vxor.u32 %v2737, 2147483648
      %v2978 = vxor.u32 %v2740, 2147483648
      %v2979 = vxor.u32 %v2743, 2147483648
      %v2980 = vxor.u32 %v2746, 2147483648
      %v2981 = vxor.u32 %v2749, 2147483648
      %v2982 = vxor.u32 %v2752, 2147483648
      %v2983 = vxor.u32 %v2755, 2147483648
      %v2984 = vxor.u32 %v2758, 2147483648
      %v2985 = vxor.u32 %v2761, 2147483648
      %v2986 = vxor.u32 %v2764, 2147483648
      %v2987 = vxor.u32 %v2767, 2147483648
      %v2988 = vxor.u32 %v2770, 2147483648
      %v2989 = vxor.u32 %v2773, 2147483648
      %v2990 = vxor.u32 %v2776, 2147483648
      %v2991 = vxor.u32 %v2779, 2147483648
      %v2992 = vxor.u32 %v2782, 2147483648
      %v2993 = vxor.u32 %v2785, 2147483648
      %v2994 = vxor.u32 %v2788, 2147483648
      %v2995 = vxor.u32 %v2791, 2147483648
      %v2996 = vxor.u32 %v2794, 2147483648
      %v2997 = vxor.u32 %v2797, 2147483648
      %v2998 = vxor.u32 %v2800, 2147483648
      %v2999 = vxor.u32 %v2803, 2147483648
      %v3000 = vxor.u32 %v2806, 2147483648
      %v3001 = vxor.u32 %v2809, 2147483648
      %v3002 = vxor.u32 %v2812, 2147483648
      %v3003 = vxor.u32 %v2815, 2147483648
      %v3004 = vxor.u32 %v2818, 2147483648
      %v3005 = vxor.u32 %v2821, 2147483648
      %v3006 = vxor.u32 %v2824, 2147483648
      %v3007 = vxor.u32 %v2827, 2147483648
      %v3008 = vxor.u32 %v2830, 2147483648
      %v3009 = vxor.u32 %v2833, 2147483648
      %v3010 = vxor.u32 %v2836, 2147483648
      %v3011 = vxor.u32 %v2839, 2147483648
      %v3012 = vxor.u32 %v2842, 2147483648
      %v3013 = vxor.u32 %v2845, 2147483648
      %v3014 = vxor.u32 %v2848, 2147483648
      %v3015 = vxor.u32 %v2851, 2147483648
      %v3016 = vxor.u32 %v2854, 2147483648
      %v3017 = vxor.u32 %v2857, 2147483648
      %v3018 = vxor.u32 %v2860, 2147483648
      %v3019 = vxor.u32 %v2863, 2147483648
      %v3020 = vxor.u32 %v2866, 2147483648
      %v3021 = vxor.u32 %v2869, 2147483648
      %v3022 = vxor.u32 %v2872, 2147483648
      %v3023 = vxor.u32 %v2875, 2147483648
      %v3024 = vxor.u32 %v2878, 2147483648
      %v3025 = vxor.u32 %v2881, 2147483648
      %v3026 = vxor.u32 %v2884, 2147483648
      %v3027 = vxor.u32 %v2887, 2147483648
      %v3028 = vxor.u32 %v2890, 2147483648
      %v3029 = vxor.u32 %v2893, 2147483648
      %v3030 = vxor.u32 %v2896, 2147483648
      %v3031 = vxor.u32 %v2899, 2147483648
      %v3032 = vxor.u32 %v2902, 2147483648
      %v3033 = vxor.u32 %v2905, 2147483648
      %v3034 = vmul.f32 %v2906, 1.442695
      %v3035 = vpow.pop %v3034
      %v3036 = vmul.f32 %v2907, 1.442695
      %v3037 = vpow.pop %v3036
      %v3038 = vmul.f32 %v2908, 1.442695
      %v3039 = vpow.pop %v3038
      %v3040 = vmul.f32 %v2909, 1.442695
      %v3041 = vpow.pop %v3040
      %v3042 = vmul.f32 %v2910, 1.442695
      %v3043 = vpow.pop %v3042
      %v3044 = vmul.f32 %v2911, 1.442695
      %v3045 = vpow.pop %v3044
      %v3046 = vmul.f32 %v2912, 1.442695
      %v3047 = vpow.pop %v3046
      %v3048 = vmul.f32 %v2913, 1.442695
      %v3049 = vpow.pop %v3048
      %v3050 = vmul.f32 %v2914, 1.442695
      %v3051 = vpow.pop %v3050
      %v3052 = vmul.f32 %v2915, 1.442695
      %v3053 = vpow.pop %v3052
      %v3054 = vmul.f32 %v2916, 1.442695
      %v3055 = vpow.pop %v3054
      %v3056 = vmul.f32 %v2917, 1.442695
      %v3057 = vpow.pop %v3056
      %v3058 = vmul.f32 %v2918, 1.442695
      %v3059 = vpow.pop %v3058
      %v3060 = vmul.f32 %v2919, 1.442695
      %v3061 = vpow.pop %v3060
      %v3062 = vmul.f32 %v2920, 1.442695
      %v3063 = vpow.pop %v3062
      %v3064 = vmul.f32 %v2921, 1.442695
      %v3065 = vpow.pop %v3064
      %v3066 = vmul.f32 %v2922, 1.442695
      %v3067 = vpow.pop %v3066
      %v3068 = vmul.f32 %v2923, 1.442695
      %v3069 = vpow.pop %v3068
      %v3070 = vmul.f32 %v2924, 1.442695
      %v3071 = vpow.pop %v3070
      %v3072 = vmul.f32 %v2925, 1.442695
      %v3073 = vpow.pop %v3072
      %v3074 = vmul.f32 %v2926, 1.442695
      %v3075 = vpow.pop %v3074
      %v3076 = vmul.f32 %v2927, 1.442695
      %v3077 = vpow.pop %v3076
      %v3078 = vmul.f32 %v2928, 1.442695
      %v3079 = vpow.pop %v3078
      %v3080 = vmul.f32 %v2929, 1.442695
      %v3081 = vpow.pop %v3080
      %v3082 = vmul.f32 %v2930, 1.442695
      %v3083 = vpow.pop %v3082
      %v3084 = vmul.f32 %v2931, 1.442695
      %v3085 = vpow.pop %v3084
      %v3086 = vmul.f32 %v2932, 1.442695
      %v3087 = vpow.pop %v3086
      %v3088 = vmul.f32 %v2933, 1.442695
      %v3089 = vpow.pop %v3088
      %v3090 = vmul.f32 %v2934, 1.442695
      %v3091 = vpow.pop %v3090
      %v3092 = vmul.f32 %v2935, 1.442695
      %v3093 = vpow.pop %v3092
      %v3094 = vmul.f32 %v2936, 1.442695
      %v3095 = vpow.pop %v3094
      %v3096 = vmul.f32 %v2937, 1.442695
      %v3097 = vpow.pop %v3096
      %v3098 = vmul.f32 %v2938, 1.442695
      %v3099 = vpow.pop %v3098
      %v3100 = vmul.f32 %v2939, 1.442695
      %v3101 = vpow.pop %v3100
      %v3102 = vmul.f32 %v2940, 1.442695
      %v3103 = vpow.pop %v3102
      %v3104 = vmul.f32 %v2941, 1.442695
      %v3105 = vpow.pop %v3104
      %v3106 = vmul.f32 %v2942, 1.442695
      %v3107 = vpow.pop %v3106
      %v3108 = vmul.f32 %v2943, 1.442695
      %v3109 = vpow.pop %v3108
      %v3110 = vmul.f32 %v2944, 1.442695
      %v3111 = vpow.pop %v3110
      %v3112 = vmul.f32 %v2945, 1.442695
      %v3113 = vpow.pop %v3112
      %v3114 = vmul.f32 %v2946, 1.442695
      %v3115 = vpow.pop %v3114
      %v3116 = vmul.f32 %v2947, 1.442695
      %v3117 = vpow.pop %v3116
      %v3118 = vmul.f32 %v2948, 1.442695
      %v3119 = vpow.pop %v3118
      %v3120 = vmul.f32 %v2949, 1.442695
      %v3121 = vpow.pop %v3120
      %v3122 = vmul.f32 %v2950, 1.442695
      %v3123 = vpow.pop %v3122
      %v3124 = vmul.f32 %v2951, 1.442695
      %v3125 = vpow.pop %v3124
      %v3126 = vmul.f32 %v2952, 1.442695
      %v3127 = vpow.pop %v3126
      %v3128 = vmul.f32 %v2953, 1.442695
      %v3129 = vpow.pop %v3128
      %v3130 = vmul.f32 %v2954, 1.442695
      %v3131 = vpow.pop %v3130
      %v3132 = vmul.f32 %v2955, 1.442695
      %v3133 = vpow.pop %v3132
      %v3134 = vmul.f32 %v2956, 1.442695
      %v3135 = vpow.pop %v3134
      %v3136 = vmul.f32 %v2957, 1.442695
      %v3137 = vpow.pop %v3136
      %v3138 = vmul.f32 %v2958, 1.442695
      %v3139 = vpow.pop %v3138
      %v3140 = vmul.f32 %v2959, 1.442695
      %v3141 = vpow.pop %v3140
      %v3142 = vmul.f32 %v2960, 1.442695
      %v3143 = vpow.pop %v3142
      %v3144 = vmul.f32 %v2961, 1.442695
      %v3145 = vpow.pop %v3144
      %v3146 = vmul.f32 %v2962, 1.442695
      %v3147 = vpow.pop %v3146
      %v3148 = vmul.f32 %v2963, 1.442695
      %v3149 = vpow.pop %v3148
      %v3150 = vmul.f32 %v2964, 1.442695
      %v3151 = vpow.pop %v3150
      %v3152 = vmul.f32 %v2965, 1.442695
      %v3153 = vpow.pop %v3152
      %v3154 = vmul.f32 %v2966, 1.442695
      %v3155 = vpow.pop %v3154
      %v3156 = vmul.f32 %v2967, 1.442695
      %v3157 = vpow.pop %v3156
      %v3158 = vmul.f32 %v2968, 1.442695
      %v3159 = vpow.pop %v3158
      %v3160 = vmul.f32 %v2969, 1.442695
      %v3161 = vpow.pop %v3160
      %v3162 = vmul.f32 %v2970, 1.442695
      %v3163 = vpow.pop %v3162
      %v3164 = vmul.f32 %v2971, 1.442695
      %v3165 = vpow.pop %v3164
      %v3166 = vmul.f32 %v2972, 1.442695
      %v3167 = vpow.pop %v3166
      %v3168 = vmul.f32 %v2973, 1.442695
      %v3169 = vpow.pop %v3168
      %v3170 = vmul.f32 %v2974, 1.442695
      %v3171 = vpow.pop %v3170
      %v3172 = vmul.f32 %v2975, 1.442695
      %v3173 = vpow.pop %v3172
      %v3174 = vmul.f32 %v2976, 1.442695
      %v3175 = vpow.pop %v3174
      %v3176 = vmul.f32 %v2977, 1.442695
      %v3177 = vpow.pop %v3176
      %v3178 = vmul.f32 %v2978, 1.442695
      %v3179 = vpow.pop %v3178
      %v3180 = vmul.f32 %v2979, 1.442695
      %v3181 = vpow.pop %v3180
      %v3182 = vmul.f32 %v2980, 1.442695
      %v3183 = vpow.pop %v3182
      %v3184 = vmul.f32 %v2981, 1.442695
      %v3185 = vpow.pop %v3184
      %v3186 = vmul.f32 %v2982, 1.442695
      %v3187 = vpow.pop %v3186
      %v3188 = vmul.f32 %v2983, 1.442695
      %v3189 = vpow.pop %v3188
      %v3190 = vmul.f32 %v2984, 1.442695
      %v3191 = vpow.pop %v3190
      %v3192 = vmul.f32 %v2985, 1.442695
      %v3193 = vpow.pop %v3192
      %v3194 = vmul.f32 %v2986, 1.442695
      %v3195 = vpow.pop %v3194
      %v3196 = vmul.f32 %v2987, 1.442695
      %v3197 = vpow.pop %v3196
      %v3198 = vmul.f32 %v2988, 1.442695
      %v3199 = vpow.pop %v3198
      %v3200 = vmul.f32 %v2989, 1.442695
      %v3201 = vpow.pop %v3200
      %v3202 = vmul.f32 %v2990, 1.442695
      %v3203 = vpow.pop %v3202
      %v3204 = vmul.f32 %v2991, 1.442695
      %v3205 = vpow.pop %v3204
      %v3206 = vmul.f32 %v2992, 1.442695
      %v3207 = vpow.pop %v3206
      %v3208 = vmul.f32 %v2993, 1.442695
      %v3209 = vpow.pop %v3208
      %v3210 = vmul.f32 %v2994, 1.442695
      %v3211 = vpow.pop %v3210
      %v3212 = vmul.f32 %v2995, 1.442695
      %v3213 = vpow.pop %v3212
      %v3214 = vmul.f32 %v2996, 1.442695
      %v3215 = vpow.pop %v3214
      %v3216 = vmul.f32 %v2997, 1.442695
      %v3217 = vpow.pop %v3216
      %v3218 = vmul.f32 %v2998, 1.442695
      %v3219 = vpow.pop %v3218
      %v3220 = vmul.f32 %v2999, 1.442695
      %v3221 = vpow.pop %v3220
      %v3222 = vmul.f32 %v3000, 1.442695
      %v3223 = vpow.pop %v3222
      %v3224 = vmul.f32 %v3001, 1.442695
      %v3225 = vpow.pop %v3224
      %v3226 = vmul.f32 %v3002, 1.442695
      %v3227 = vpow.pop %v3226
      %v3228 = vmul.f32 %v3003, 1.442695
      %v3229 = vpow.pop %v3228
      %v3230 = vmul.f32 %v3004, 1.442695
      %v3231 = vpow.pop %v3230
      %v3232 = vmul.f32 %v3005, 1.442695
      %v3233 = vpow.pop %v3232
      %v3234 = vmul.f32 %v3006, 1.442695
      %v3235 = vpow.pop %v3234
      %v3236 = vmul.f32 %v3007, 1.442695
      %v3237 = vpow.pop %v3236
      %v3238 = vmul.f32 %v3008, 1.442695
      %v3239 = vpow.pop %v3238
      %v3240 = vmul.f32 %v3009, 1.442695
      %v3241 = vpow.pop %v3240
      %v3242 = vmul.f32 %v3010, 1.442695
      %v3243 = vpow.pop %v3242
      %v3244 = vmul.f32 %v3011, 1.442695
      %v3245 = vpow.pop %v3244
      %v3246 = vmul.f32 %v3012, 1.442695
      %v3247 = vpow.pop %v3246
      %v3248 = vmul.f32 %v3013, 1.442695
      %v3249 = vpow.pop %v3248
      %v3250 = vmul.f32 %v3014, 1.442695
      %v3251 = vpow.pop %v3250
      %v3252 = vmul.f32 %v3015, 1.442695
      %v3253 = vpow.pop %v3252
      %v3254 = vmul.f32 %v3016, 1.442695
      %v3255 = vpow.pop %v3254
      %v3256 = vmul.f32 %v3017, 1.442695
      %v3257 = vpow.pop %v3256
      %v3258 = vmul.f32 %v3018, 1.442695
      %v3259 = vpow.pop %v3258
      %v3260 = vmul.f32 %v3019, 1.442695
      %v3261 = vpow.pop %v3260
      %v3262 = vmul.f32 %v3020, 1.442695
      %v3263 = vpow.pop %v3262
      %v3264 = vmul.f32 %v3021, 1.442695
      %v3265 = vpow.pop %v3264
      %v3266 = vmul.f32 %v3022, 1.442695
      %v3267 = vpow.pop %v3266
      %v3268 = vmul.f32 %v3023, 1.442695
      %v3269 = vpow.pop %v3268
      %v3270 = vmul.f32 %v3024, 1.442695
      %v3271 = vpow.pop %v3270
      %v3272 = vmul.f32 %v3025, 1.442695
      %v3273 = vpow.pop %v3272
      %v3274 = vmul.f32 %v3026, 1.442695
      %v3275 = vpow.pop %v3274
      %v3276 = vmul.f32 %v3027, 1.442695
      %v3277 = vpow.pop %v3276
      %v3278 = vmul.f32 %v3028, 1.442695
      %v3279 = vpow.pop %v3278
      %v3280 = vmul.f32 %v3029, 1.442695
      %v3281 = vpow.pop %v3280
      %v3282 = vmul.f32 %v3030, 1.442695
      %v3283 = vpow.pop %v3282
      %v3284 = vmul.f32 %v3031, 1.442695
      %v3285 = vpow.pop %v3284
      %v3286 = vmul.f32 %v3032, 1.442695
      %v3287 = vpow.pop %v3286
      %v3288 = vmul.f32 %v3033, 1.442695
      %v3289 = vpow.pop %v3288
      %v3290 = vadd.f32 %v3035, 1.0
      %v3291 = vadd.f32 %v3037, 1.0
      %v3292 = vadd.f32 %v3039, 1.0
      %v3293 = vadd.f32 %v3041, 1.0
      %v3294 = vadd.f32 %v3043, 1.0
      %v3295 = vadd.f32 %v3045, 1.0
      %v3296 = vadd.f32 %v3047, 1.0
      %v3297 = vadd.f32 %v3049, 1.0
      %v3298 = vadd.f32 %v3051, 1.0
      %v3299 = vadd.f32 %v3053, 1.0
      %v3300 = vadd.f32 %v3055, 1.0
      %v3301 = vadd.f32 %v3057, 1.0
      %v3302 = vadd.f32 %v3059, 1.0
      %v3303 = vadd.f32 %v3061, 1.0
      %v3304 = vadd.f32 %v3063, 1.0
      %v3305 = vadd.f32 %v3065, 1.0
      %v3306 = vadd.f32 %v3067, 1.0
      %v3307 = vadd.f32 %v3069, 1.0
      %v3308 = vadd.f32 %v3071, 1.0
      %v3309 = vadd.f32 %v3073, 1.0
      %v3310 = vadd.f32 %v3075, 1.0
      %v3311 = vadd.f32 %v3077, 1.0
      %v3312 = vadd.f32 %v3079, 1.0
      %v3313 = vadd.f32 %v3081, 1.0
      %v3314 = vadd.f32 %v3083, 1.0
      %v3315 = vadd.f32 %v3085, 1.0
      %v3316 = vadd.f32 %v3087, 1.0
      %v3317 = vadd.f32 %v3089, 1.0
      %v3318 = vadd.f32 %v3091, 1.0
      %v3319 = vadd.f32 %v3093, 1.0
      %v3320 = vadd.f32 %v3095, 1.0
      %v3321 = vadd.f32 %v3097, 1.0
      %v3322 = vadd.f32 %v3099, 1.0
      %v3323 = vadd.f32 %v3101, 1.0
      %v3324 = vadd.f32 %v3103, 1.0
      %v3325 = vadd.f32 %v3105, 1.0
      %v3326 = vadd.f32 %v3107, 1.0
      %v3327 = vadd.f32 %v3109, 1.0
      %v3328 = vadd.f32 %v3111, 1.0
      %v3329 = vadd.f32 %v3113, 1.0
      %v3330 = vadd.f32 %v3115, 1.0
      %v3331 = vadd.f32 %v3117, 1.0
      %v3332 = vadd.f32 %v3119, 1.0
      %v3333 = vadd.f32 %v3121, 1.0
      %v3334 = vadd.f32 %v3123, 1.0
      %v3335 = vadd.f32 %v3125, 1.0
      %v3336 = vadd.f32 %v3127, 1.0
      %v3337 = vadd.f32 %v3129, 1.0
      %v3338 = vadd.f32 %v3131, 1.0
      %v3339 = vadd.f32 %v3133, 1.0
      %v3340 = vadd.f32 %v3135, 1.0
      %v3341 = vadd.f32 %v3137, 1.0
      %v3342 = vadd.f32 %v3139, 1.0
      %v3343 = vadd.f32 %v3141, 1.0
      %v3344 = vadd.f32 %v3143, 1.0
      %v3345 = vadd.f32 %v3145, 1.0
      %v3346 = vadd.f32 %v3147, 1.0
      %v3347 = vadd.f32 %v3149, 1.0
      %v3348 = vadd.f32 %v3151, 1.0
      %v3349 = vadd.f32 %v3153, 1.0
      %v3350 = vadd.f32 %v3155, 1.0
      %v3351 = vadd.f32 %v3157, 1.0
      %v3352 = vadd.f32 %v3159, 1.0
      %v3353 = vadd.f32 %v3161, 1.0
      %v3354 = vadd.f32 %v3163, 1.0
      %v3355 = vadd.f32 %v3165, 1.0
      %v3356 = vadd.f32 %v3167, 1.0
      %v3357 = vadd.f32 %v3169, 1.0
      %v3358 = vadd.f32 %v3171, 1.0
      %v3359 = vadd.f32 %v3173, 1.0
      %v3360 = vadd.f32 %v3175, 1.0
      %v3361 = vadd.f32 %v3177, 1.0
      %v3362 = vadd.f32 %v3179, 1.0
      %v3363 = vadd.f32 %v3181, 1.0
      %v3364 = vadd.f32 %v3183, 1.0
      %v3365 = vadd.f32 %v3185, 1.0
      %v3366 = vadd.f32 %v3187, 1.0
      %v3367 = vadd.f32 %v3189, 1.0
      %v3368 = vadd.f32 %v3191, 1.0
      %v3369 = vadd.f32 %v3193, 1.0
      %v3370 = vadd.f32 %v3195, 1.0
      %v3371 = vadd.f32 %v3197, 1.0
      %v3372 = vadd.f32 %v3199, 1.0
      %v3373 = vadd.f32 %v3201, 1.0
      %v3374 = vadd.f32 %v3203, 1.0
      %v3375 = vadd.f32 %v3205, 1.0
      %v3376 = vadd.f32 %v3207, 1.0
      %v3377 = vadd.f32 %v3209, 1.0
      %v3378 = vadd.f32 %v3211, 1.0
      %v3379 = vadd.f32 %v3213, 1.0
      %v3380 = vadd.f32 %v3215, 1.0
      %v3381 = vadd.f32 %v3217, 1.0
      %v3382 = vadd.f32 %v3219, 1.0
      %v3383 = vadd.f32 %v3221, 1.0
      %v3384 = vadd.f32 %v3223, 1.0
      %v3385 = vadd.f32 %v3225, 1.0
      %v3386 = vadd.f32 %v3227, 1.0
      %v3387 = vadd.f32 %v3229, 1.0
      %v3388 = vadd.f32 %v3231, 1.0
      %v3389 = vadd.f32 %v3233, 1.0
      %v3390 = vadd.f32 %v3235, 1.0
      %v3391 = vadd.f32 %v3237, 1.0
      %v3392 = vadd.f32 %v3239, 1.0
      %v3393 = vadd.f32 %v3241, 1.0
      %v3394 = vadd.f32 %v3243, 1.0
      %v3395 = vadd.f32 %v3245, 1.0
      %v3396 = vadd.f32 %v3247, 1.0
      %v3397 = vadd.f32 %v3249, 1.0
      %v3398 = vadd.f32 %v3251, 1.0
      %v3399 = vadd.f32 %v3253, 1.0
      %v3400 = vadd.f32 %v3255, 1.0
      %v3401 = vadd.f32 %v3257, 1.0
      %v3402 = vadd.f32 %v3259, 1.0
      %v3403 = vadd.f32 %v3261, 1.0
      %v3404 = vadd.f32 %v3263, 1.0
      %v3405 = vadd.f32 %v3265, 1.0
      %v3406 = vadd.f32 %v3267, 1.0
      %v3407 = vadd.f32 %v3269, 1.0
      %v3408 = vadd.f32 %v3271, 1.0
      %v3409 = vadd.f32 %v3273, 1.0
      %v3410 = vadd.f32 %v3275, 1.0
      %v3411 = vadd.f32 %v3277, 1.0
      %v3412 = vadd.f32 %v3279, 1.0
      %v3413 = vadd.f32 %v3281, 1.0
      %v3414 = vadd.f32 %v3283, 1.0
      %v3415 = vadd.f32 %v3285, 1.0
      %v3416 = vadd.f32 %v3287, 1.0
      %v3417 = vadd.f32 %v3289, 1.0
      %v3418 = vrcp.pop %v3290
      %v3419 = vmul.f32 1.0, %v3418
      %v3420 = vrcp.pop %v3291
      %v3421 = vmul.f32 1.0, %v3420
      %v3422 = vrcp.pop %v3292
      %v3423 = vmul.f32 1.0, %v3422
      %v3424 = vrcp.pop %v3293
      %v3425 = vmul.f32 1.0, %v3424
      %v3426 = vrcp.pop %v3294
      %v3427 = vmul.f32 1.0, %v3426
      %v3428 = vrcp.pop %v3295
      %v3429 = vmul.f32 1.0, %v3428
      %v3430 = vrcp.pop %v3296
      %v3431 = vmul.f32 1.0, %v3430
      %v3432 = vrcp.pop %v3297
      %v3433 = vmul.f32 1.0, %v3432
      %v3434 = vrcp.pop %v3298
      %v3435 = vmul.f32 1.0, %v3434
      %v3436 = vrcp.pop %v3299
      %v3437 = vmul.f32 1.0, %v3436
      %v3438 = vrcp.pop %v3300
      %v3439 = vmul.f32 1.0, %v3438
      %v3440 = vrcp.pop %v3301
      %v3441 = vmul.f32 1.0, %v3440
      %v3442 = vrcp.pop %v3302
      %v3443 = vmul.f32 1.0, %v3442
      %v3444 = vrcp.pop %v3303
      %v3445 = vmul.f32 1.0, %v3444
      %v3446 = vrcp.pop %v3304
      %v3447 = vmul.f32 1.0, %v3446
      %v3448 = vrcp.pop %v3305
      %v3449 = vmul.f32 1.0, %v3448
      %v3450 = vrcp.pop %v3306
      %v3451 = vmul.f32 1.0, %v3450
      %v3452 = vrcp.pop %v3307
      %v3453 = vmul.f32 1.0, %v3452
      %v3454 = vrcp.pop %v3308
      %v3455 = vmul.f32 1.0, %v3454
      %v3456 = vrcp.pop %v3309
      %v3457 = vmul.f32 1.0, %v3456
      %v3458 = vrcp.pop %v3310
      %v3459 = vmul.f32 1.0, %v3458
      %v3460 = vrcp.pop %v3311
      %v3461 = vmul.f32 1.0, %v3460
      %v3462 = vrcp.pop %v3312
      %v3463 = vmul.f32 1.0, %v3462
      %v3464 = vrcp.pop %v3313
      %v3465 = vmul.f32 1.0, %v3464
      %v3466 = vrcp.pop %v3314
      %v3467 = vmul.f32 1.0, %v3466
      %v3468 = vrcp.pop %v3315
      %v3469 = vmul.f32 1.0, %v3468
      %v3470 = vrcp.pop %v3316
      %v3471 = vmul.f32 1.0, %v3470
      %v3472 = vrcp.pop %v3317
      %v3473 = vmul.f32 1.0, %v3472
      %v3474 = vrcp.pop %v3318
      %v3475 = vmul.f32 1.0, %v3474
      %v3476 = vrcp.pop %v3319
      %v3477 = vmul.f32 1.0, %v3476
      %v3478 = vrcp.pop %v3320
      %v3479 = vmul.f32 1.0, %v3478
      %v3480 = vrcp.pop %v3321
      %v3481 = vmul.f32 1.0, %v3480
      %v3482 = vrcp.pop %v3322
      %v3483 = vmul.f32 1.0, %v3482
      %v3484 = vrcp.pop %v3323
      %v3485 = vmul.f32 1.0, %v3484
      %v3486 = vrcp.pop %v3324
      %v3487 = vmul.f32 1.0, %v3486
      %v3488 = vrcp.pop %v3325
      %v3489 = vmul.f32 1.0, %v3488
      %v3490 = vrcp.pop %v3326
      %v3491 = vmul.f32 1.0, %v3490
      %v3492 = vrcp.pop %v3327
      %v3493 = vmul.f32 1.0, %v3492
      %v3494 = vrcp.pop %v3328
      %v3495 = vmul.f32 1.0, %v3494
      %v3496 = vrcp.pop %v3329
      %v3497 = vmul.f32 1.0, %v3496
      %v3498 = vrcp.pop %v3330
      %v3499 = vmul.f32 1.0, %v3498
      %v3500 = vrcp.pop %v3331
      %v3501 = vmul.f32 1.0, %v3500
      %v3502 = vrcp.pop %v3332
      %v3503 = vmul.f32 1.0, %v3502
      %v3504 = vrcp.pop %v3333
      %v3505 = vmul.f32 1.0, %v3504
      %v3506 = vrcp.pop %v3334
      %v3507 = vmul.f32 1.0, %v3506
      %v3508 = vrcp.pop %v3335
      %v3509 = vmul.f32 1.0, %v3508
      %v3510 = vrcp.pop %v3336
      %v3511 = vmul.f32 1.0, %v3510
      %v3512 = vrcp.pop %v3337
      %v3513 = vmul.f32 1.0, %v3512
      %v3514 = vrcp.pop %v3338
      %v3515 = vmul.f32 1.0, %v3514
      %v3516 = vrcp.pop %v3339
      %v3517 = vmul.f32 1.0, %v3516
      %v3518 = vrcp.pop %v3340
      %v3519 = vmul.f32 1.0, %v3518
      %v3520 = vrcp.pop %v3341
      %v3521 = vmul.f32 1.0, %v3520
      %v3522 = vrcp.pop %v3342
      %v3523 = vmul.f32 1.0, %v3522
      %v3524 = vrcp.pop %v3343
      %v3525 = vmul.f32 1.0, %v3524
      %v3526 = vrcp.pop %v3344
      %v3527 = vmul.f32 1.0, %v3526
      %v3528 = vrcp.pop %v3345
      %v3529 = vmul.f32 1.0, %v3528
      %v3530 = vrcp.pop %v3346
      %v3531 = vmul.f32 1.0, %v3530
      %v3532 = vrcp.pop %v3347
      %v3533 = vmul.f32 1.0, %v3532
      %v3534 = vrcp.pop %v3348
      %v3535 = vmul.f32 1.0, %v3534
      %v3536 = vrcp.pop %v3349
      %v3537 = vmul.f32 1.0, %v3536
      %v3538 = vrcp.pop %v3350
      %v3539 = vmul.f32 1.0, %v3538
      %v3540 = vrcp.pop %v3351
      %v3541 = vmul.f32 1.0, %v3540
      %v3542 = vrcp.pop %v3352
      %v3543 = vmul.f32 1.0, %v3542
      %v3544 = vrcp.pop %v3353
      %v3545 = vmul.f32 1.0, %v3544
      %v3546 = vrcp.pop %v3354
      %v3547 = vmul.f32 1.0, %v3546
      %v3548 = vrcp.pop %v3355
      %v3549 = vmul.f32 1.0, %v3548
      %v3550 = vrcp.pop %v3356
      %v3551 = vmul.f32 1.0, %v3550
      %v3552 = vrcp.pop %v3357
      %v3553 = vmul.f32 1.0, %v3552
      %v3554 = vrcp.pop %v3358
      %v3555 = vmul.f32 1.0, %v3554
      %v3556 = vrcp.pop %v3359
      %v3557 = vmul.f32 1.0, %v3556
      %v3558 = vrcp.pop %v3360
      %v3559 = vmul.f32 1.0, %v3558
      %v3560 = vrcp.pop %v3361
      %v3561 = vmul.f32 1.0, %v3560
      %v3562 = vrcp.pop %v3362
      %v3563 = vmul.f32 1.0, %v3562
      %v3564 = vrcp.pop %v3363
      %v3565 = vmul.f32 1.0, %v3564
      %v3566 = vrcp.pop %v3364
      %v3567 = vmul.f32 1.0, %v3566
      %v3568 = vrcp.pop %v3365
      %v3569 = vmul.f32 1.0, %v3568
      %v3570 = vrcp.pop %v3366
      %v3571 = vmul.f32 1.0, %v3570
      %v3572 = vrcp.pop %v3367
      %v3573 = vmul.f32 1.0, %v3572
      %v3574 = vrcp.pop %v3368
      %v3575 = vmul.f32 1.0, %v3574
      %v3576 = vrcp.pop %v3369
      %v3577 = vmul.f32 1.0, %v3576
      %v3578 = vrcp.pop %v3370
      %v3579 = vmul.f32 1.0, %v3578
      %v3580 = vrcp.pop %v3371
      %v3581 = vmul.f32 1.0, %v3580
      %v3582 = vrcp.pop %v3372
      %v3583 = vmul.f32 1.0, %v3582
      %v3584 = vrcp.pop %v3373
      %v3585 = vmul.f32 1.0, %v3584
      %v3586 = vrcp.pop %v3374
      %v3587 = vmul.f32 1.0, %v3586
      %v3588 = vrcp.pop %v3375
      %v3589 = vmul.f32 1.0, %v3588
      %v3590 = vrcp.pop %v3376
      %v3591 = vmul.f32 1.0, %v3590
      %v3592 = vrcp.pop %v3377
      %v3593 = vmul.f32 1.0, %v3592
      %v3594 = vrcp.pop %v3378
      %v3595 = vmul.f32 1.0, %v3594
      %v3596 = vrcp.pop %v3379
      %v3597 = vmul.f32 1.0, %v3596
      %v3598 = vrcp.pop %v3380
      %v3599 = vmul.f32 1.0, %v3598
      %v3600 = vrcp.pop %v3381
      %v3601 = vmul.f32 1.0, %v3600
      %v3602 = vrcp.pop %v3382
      %v3603 = vmul.f32 1.0, %v3602
      %v3604 = vrcp.pop %v3383
      %v3605 = vmul.f32 1.0, %v3604
      %v3606 = vrcp.pop %v3384
      %v3607 = vmul.f32 1.0, %v3606
      %v3608 = vrcp.pop %v3385
      %v3609 = vmul.f32 1.0, %v3608
      %v3610 = vrcp.pop %v3386
      %v3611 = vmul.f32 1.0, %v3610
      %v3612 = vrcp.pop %v3387
      %v3613 = vmul.f32 1.0, %v3612
      %v3614 = vrcp.pop %v3388
      %v3615 = vmul.f32 1.0, %v3614
      %v3616 = vrcp.pop %v3389
      %v3617 = vmul.f32 1.0, %v3616
      %v3618 = vrcp.pop %v3390
      %v3619 = vmul.f32 1.0, %v3618
      %v3620 = vrcp.pop %v3391
      %v3621 = vmul.f32 1.0, %v3620
      %v3622 = vrcp.pop %v3392
      %v3623 = vmul.f32 1.0, %v3622
      %v3624 = vrcp.pop %v3393
      %v3625 = vmul.f32 1.0, %v3624
      %v3626 = vrcp.pop %v3394
      %v3627 = vmul.f32 1.0, %v3626
      %v3628 = vrcp.pop %v3395
      %v3629 = vmul.f32 1.0, %v3628
      %v3630 = vrcp.pop %v3396
      %v3631 = vmul.f32 1.0, %v3630
      %v3632 = vrcp.pop %v3397
      %v3633 = vmul.f32 1.0, %v3632
      %v3634 = vrcp.pop %v3398
      %v3635 = vmul.f32 1.0, %v3634
      %v3636 = vrcp.pop %v3399
      %v3637 = vmul.f32 1.0, %v3636
      %v3638 = vrcp.pop %v3400
      %v3639 = vmul.f32 1.0, %v3638
      %v3640 = vrcp.pop %v3401
      %v3641 = vmul.f32 1.0, %v3640
      %v3642 = vrcp.pop %v3402
      %v3643 = vmul.f32 1.0, %v3642
      %v3644 = vrcp.pop %v3403
      %v3645 = vmul.f32 1.0, %v3644
      %v3646 = vrcp.pop %v3404
      %v3647 = vmul.f32 1.0, %v3646
      %v3648 = vrcp.pop %v3405
      %v3649 = vmul.f32 1.0, %v3648
      %v3650 = vrcp.pop %v3406
      %v3651 = vmul.f32 1.0, %v3650
      %v3652 = vrcp.pop %v3407
      %v3653 = vmul.f32 1.0, %v3652
      %v3654 = vrcp.pop %v3408
      %v3655 = vmul.f32 1.0, %v3654
      %v3656 = vrcp.pop %v3409
      %v3657 = vmul.f32 1.0, %v3656
      %v3658 = vrcp.pop %v3410
      %v3659 = vmul.f32 1.0, %v3658
      %v3660 = vrcp.pop %v3411
      %v3661 = vmul.f32 1.0, %v3660
      %v3662 = vrcp.pop %v3412
      %v3663 = vmul.f32 1.0, %v3662
      %v3664 = vrcp.pop %v3413
      %v3665 = vmul.f32 1.0, %v3664
      %v3666 = vrcp.pop %v3414
      %v3667 = vmul.f32 1.0, %v3666
      %v3668 = vrcp.pop %v3415
      %v3669 = vmul.f32 1.0, %v3668
      %v3670 = vrcp.pop %v3416
      %v3671 = vmul.f32 1.0, %v3670
      %v3672 = vrcp.pop %v3417
      %v3673 = vmul.f32 1.0, %v3672
      %v3802 = vlaneseq
      %v3803 = vand.u32 %v3802, 127
      %v3804 = vlaneseq
      %v3805 = vshrl.u32 %v3804, 7
      %v3806 = vsub.s32 %v3803, %v3805
      %v3807 = vrot.slane %v3419, %v3806
      %v3808 = vlaneseq
      %v3809 = vshrl.u32 %v3808, 7
      %v3810 = vsub.s32 %v3803, %v3809
      %v3811 = vrot.slane %v3421, %v3810
      %v3812 = vlaneseq
      %v3813 = vshrl.u32 %v3812, 7
      %v3814 = vsub.s32 %v3803, %v3813
      %v3815 = vrot.slane %v3423, %v3814
      %v3816 = vlaneseq
      %v3817 = vshrl.u32 %v3816, 7
      %v3818 = vsub.s32 %v3803, %v3817
      %v3819 = vrot.slane %v3425, %v3818
      %v3820 = vlaneseq
      %v3821 = vshrl.u32 %v3820, 7
      %v3822 = vsub.s32 %v3803, %v3821
      %v3823 = vrot.slane %v3427, %v3822
      %v3824 = vlaneseq
      %v3825 = vshrl.u32 %v3824, 7
      %v3826 = vsub.s32 %v3803, %v3825
      %v3827 = vrot.slane %v3429, %v3826
      %v3828 = vlaneseq
      %v3829 = vshrl.u32 %v3828, 7
      %v3830 = vsub.s32 %v3803, %v3829
      %v3831 = vrot.slane %v3431, %v3830
      %v3832 = vlaneseq
      %v3833 = vshrl.u32 %v3832, 7
      %v3834 = vsub.s32 %v3803, %v3833
      %v3835 = vrot.slane %v3433, %v3834
      %v3836 = vlaneseq
      %v3837 = vshrl.u32 %v3836, 7
      %v3838 = vsub.s32 %v3803, %v3837
      %v3839 = vrot.slane %v3435, %v3838
      %v3840 = vlaneseq
      %v3841 = vshrl.u32 %v3840, 7
      %v3842 = vsub.s32 %v3803, %v3841
      %v3843 = vrot.slane %v3437, %v3842
      %v3844 = vlaneseq
      %v3845 = vshrl.u32 %v3844, 7
      %v3846 = vsub.s32 %v3803, %v3845
      %v3847 = vrot.slane %v3439, %v3846
      %v3848 = vlaneseq
      %v3849 = vshrl.u32 %v3848, 7
      %v3850 = vsub.s32 %v3803, %v3849
      %v3851 = vrot.slane %v3441, %v3850
      %v3852 = vlaneseq
      %v3853 = vshrl.u32 %v3852, 7
      %v3854 = vsub.s32 %v3803, %v3853
      %v3855 = vrot.slane %v3443, %v3854
      %v3856 = vlaneseq
      %v3857 = vshrl.u32 %v3856, 7
      %v3858 = vsub.s32 %v3803, %v3857
      %v3859 = vrot.slane %v3445, %v3858
      %v3860 = vlaneseq
      %v3861 = vshrl.u32 %v3860, 7
      %v3862 = vsub.s32 %v3803, %v3861
      %v3863 = vrot.slane %v3447, %v3862
      %v3864 = vlaneseq
      %v3865 = vshrl.u32 %v3864, 7
      %v3866 = vsub.s32 %v3803, %v3865
      %v3867 = vrot.slane %v3449, %v3866
      %v3868 = vlaneseq
      %v3869 = vshrl.u32 %v3868, 7
      %v3870 = vsub.s32 %v3803, %v3869
      %v3871 = vrot.slane %v3451, %v3870
      %v3872 = vlaneseq
      %v3873 = vshrl.u32 %v3872, 7
      %v3874 = vsub.s32 %v3803, %v3873
      %v3875 = vrot.slane %v3453, %v3874
      %v3876 = vlaneseq
      %v3877 = vshrl.u32 %v3876, 7
      %v3878 = vsub.s32 %v3803, %v3877
      %v3879 = vrot.slane %v3455, %v3878
      %v3880 = vlaneseq
      %v3881 = vshrl.u32 %v3880, 7
      %v3882 = vsub.s32 %v3803, %v3881
      %v3883 = vrot.slane %v3457, %v3882
      %v3884 = vlaneseq
      %v3885 = vshrl.u32 %v3884, 7
      %v3886 = vsub.s32 %v3803, %v3885
      %v3887 = vrot.slane %v3459, %v3886
      %v3888 = vlaneseq
      %v3889 = vshrl.u32 %v3888, 7
      %v3890 = vsub.s32 %v3803, %v3889
      %v3891 = vrot.slane %v3461, %v3890
      %v3892 = vlaneseq
      %v3893 = vshrl.u32 %v3892, 7
      %v3894 = vsub.s32 %v3803, %v3893
      %v3895 = vrot.slane %v3463, %v3894
      %v3896 = vlaneseq
      %v3897 = vshrl.u32 %v3896, 7
      %v3898 = vsub.s32 %v3803, %v3897
      %v3899 = vrot.slane %v3465, %v3898
      %v3900 = vlaneseq
      %v3901 = vshrl.u32 %v3900, 7
      %v3902 = vsub.s32 %v3803, %v3901
      %v3903 = vrot.slane %v3467, %v3902
      %v3904 = vlaneseq
      %v3905 = vshrl.u32 %v3904, 7
      %v3906 = vsub.s32 %v3803, %v3905
      %v3907 = vrot.slane %v3469, %v3906
      %v3908 = vlaneseq
      %v3909 = vshrl.u32 %v3908, 7
      %v3910 = vsub.s32 %v3803, %v3909
      %v3911 = vrot.slane %v3471, %v3910
      %v3912 = vlaneseq
      %v3913 = vshrl.u32 %v3912, 7
      %v3914 = vsub.s32 %v3803, %v3913
      %v3915 = vrot.slane %v3473, %v3914
      %v3916 = vlaneseq
      %v3917 = vshrl.u32 %v3916, 7
      %v3918 = vsub.s32 %v3803, %v3917
      %v3919 = vrot.slane %v3475, %v3918
      %v3920 = vlaneseq
      %v3921 = vshrl.u32 %v3920, 7
      %v3922 = vsub.s32 %v3803, %v3921
      %v3923 = vrot.slane %v3477, %v3922
      %v3924 = vlaneseq
      %v3925 = vshrl.u32 %v3924, 7
      %v3926 = vsub.s32 %v3803, %v3925
      %v3927 = vrot.slane %v3479, %v3926
      %v3928 = vlaneseq
      %v3929 = vshrl.u32 %v3928, 7
      %v3930 = vsub.s32 %v3803, %v3929
      %v3931 = vrot.slane %v3481, %v3930
      %v3932 = vlaneseq
      %v3933 = vshrl.u32 %v3932, 7
      %v3934 = vsub.s32 %v3803, %v3933
      %v3935 = vrot.slane %v3483, %v3934
      %v3936 = vlaneseq
      %v3937 = vshrl.u32 %v3936, 7
      %v3938 = vsub.s32 %v3803, %v3937
      %v3939 = vrot.slane %v3485, %v3938
      %v3940 = vlaneseq
      %v3941 = vshrl.u32 %v3940, 7
      %v3942 = vsub.s32 %v3803, %v3941
      %v3943 = vrot.slane %v3487, %v3942
      %v3944 = vlaneseq
      %v3945 = vshrl.u32 %v3944, 7
      %v3946 = vsub.s32 %v3803, %v3945
      %v3947 = vrot.slane %v3489, %v3946
      %v3948 = vlaneseq
      %v3949 = vshrl.u32 %v3948, 7
      %v3950 = vsub.s32 %v3803, %v3949
      %v3951 = vrot.slane %v3491, %v3950
      %v3952 = vlaneseq
      %v3953 = vshrl.u32 %v3952, 7
      %v3954 = vsub.s32 %v3803, %v3953
      %v3955 = vrot.slane %v3493, %v3954
      %v3956 = vlaneseq
      %v3957 = vshrl.u32 %v3956, 7
      %v3958 = vsub.s32 %v3803, %v3957
      %v3959 = vrot.slane %v3495, %v3958
      %v3960 = vlaneseq
      %v3961 = vshrl.u32 %v3960, 7
      %v3962 = vsub.s32 %v3803, %v3961
      %v3963 = vrot.slane %v3497, %v3962
      %v3964 = vlaneseq
      %v3965 = vshrl.u32 %v3964, 7
      %v3966 = vsub.s32 %v3803, %v3965
      %v3967 = vrot.slane %v3499, %v3966
      %v3968 = vlaneseq
      %v3969 = vshrl.u32 %v3968, 7
      %v3970 = vsub.s32 %v3803, %v3969
      %v3971 = vrot.slane %v3501, %v3970
      %v3972 = vlaneseq
      %v3973 = vshrl.u32 %v3972, 7
      %v3974 = vsub.s32 %v3803, %v3973
      %v3975 = vrot.slane %v3503, %v3974
      %v3976 = vlaneseq
      %v3977 = vshrl.u32 %v3976, 7
      %v3978 = vsub.s32 %v3803, %v3977
      %v3979 = vrot.slane %v3505, %v3978
      %v3980 = vlaneseq
      %v3981 = vshrl.u32 %v3980, 7
      %v3982 = vsub.s32 %v3803, %v3981
      %v3983 = vrot.slane %v3507, %v3982
      %v3984 = vlaneseq
      %v3985 = vshrl.u32 %v3984, 7
      %v3986 = vsub.s32 %v3803, %v3985
      %v3987 = vrot.slane %v3509, %v3986
      %v3988 = vlaneseq
      %v3989 = vshrl.u32 %v3988, 7
      %v3990 = vsub.s32 %v3803, %v3989
      %v3991 = vrot.slane %v3511, %v3990
      %v3992 = vlaneseq
      %v3993 = vshrl.u32 %v3992, 7
      %v3994 = vsub.s32 %v3803, %v3993
      %v3995 = vrot.slane %v3513, %v3994
      %v3996 = vlaneseq
      %v3997 = vshrl.u32 %v3996, 7
      %v3998 = vsub.s32 %v3803, %v3997
      %v3999 = vrot.slane %v3515, %v3998
      %v4000 = vlaneseq
      %v4001 = vshrl.u32 %v4000, 7
      %v4002 = vsub.s32 %v3803, %v4001
      %v4003 = vrot.slane %v3517, %v4002
      %v4004 = vlaneseq
      %v4005 = vshrl.u32 %v4004, 7
      %v4006 = vsub.s32 %v3803, %v4005
      %v4007 = vrot.slane %v3519, %v4006
      %v4008 = vlaneseq
      %v4009 = vshrl.u32 %v4008, 7
      %v4010 = vsub.s32 %v3803, %v4009
      %v4011 = vrot.slane %v3521, %v4010
      %v4012 = vlaneseq
      %v4013 = vshrl.u32 %v4012, 7
      %v4014 = vsub.s32 %v3803, %v4013
      %v4015 = vrot.slane %v3523, %v4014
      %v4016 = vlaneseq
      %v4017 = vshrl.u32 %v4016, 7
      %v4018 = vsub.s32 %v3803, %v4017
      %v4019 = vrot.slane %v3525, %v4018
      %v4020 = vlaneseq
      %v4021 = vshrl.u32 %v4020, 7
      %v4022 = vsub.s32 %v3803, %v4021
      %v4023 = vrot.slane %v3527, %v4022
      %v4024 = vlaneseq
      %v4025 = vshrl.u32 %v4024, 7
      %v4026 = vsub.s32 %v3803, %v4025
      %v4027 = vrot.slane %v3529, %v4026
      %v4028 = vlaneseq
      %v4029 = vshrl.u32 %v4028, 7
      %v4030 = vsub.s32 %v3803, %v4029
      %v4031 = vrot.slane %v3531, %v4030
      %v4032 = vlaneseq
      %v4033 = vshrl.u32 %v4032, 7
      %v4034 = vsub.s32 %v3803, %v4033
      %v4035 = vrot.slane %v3533, %v4034
      %v4036 = vlaneseq
      %v4037 = vshrl.u32 %v4036, 7
      %v4038 = vsub.s32 %v3803, %v4037
      %v4039 = vrot.slane %v3535, %v4038
      %v4040 = vlaneseq
      %v4041 = vshrl.u32 %v4040, 7
      %v4042 = vsub.s32 %v3803, %v4041
      %v4043 = vrot.slane %v3537, %v4042
      %v4044 = vlaneseq
      %v4045 = vshrl.u32 %v4044, 7
      %v4046 = vsub.s32 %v3803, %v4045
      %v4047 = vrot.slane %v3539, %v4046
      %v4048 = vlaneseq
      %v4049 = vshrl.u32 %v4048, 7
      %v4050 = vsub.s32 %v3803, %v4049
      %v4051 = vrot.slane %v3541, %v4050
      %v4052 = vlaneseq
      %v4053 = vshrl.u32 %v4052, 7
      %v4054 = vsub.s32 %v3803, %v4053
      %v4055 = vrot.slane %v3543, %v4054
      %v4056 = vlaneseq
      %v4057 = vshrl.u32 %v4056, 7
      %v4058 = vsub.s32 %v3803, %v4057
      %v4059 = vrot.slane %v3545, %v4058
      %v4060 = vlaneseq
      %v4061 = vshrl.u32 %v4060, 7
      %v4062 = vsub.s32 %v3803, %v4061
      %v4063 = vrot.slane %v3547, %v4062
      %v4064 = vlaneseq
      %v4065 = vshrl.u32 %v4064, 7
      %v4066 = vsub.s32 %v3803, %v4065
      %v4067 = vrot.slane %v3549, %v4066
      %v4068 = vlaneseq
      %v4069 = vshrl.u32 %v4068, 7
      %v4070 = vsub.s32 %v3803, %v4069
      %v4071 = vrot.slane %v3551, %v4070
      %v4072 = vlaneseq
      %v4073 = vshrl.u32 %v4072, 7
      %v4074 = vsub.s32 %v3803, %v4073
      %v4075 = vrot.slane %v3553, %v4074
      %v4076 = vlaneseq
      %v4077 = vshrl.u32 %v4076, 7
      %v4078 = vsub.s32 %v3803, %v4077
      %v4079 = vrot.slane %v3555, %v4078
      %v4080 = vlaneseq
      %v4081 = vshrl.u32 %v4080, 7
      %v4082 = vsub.s32 %v3803, %v4081
      %v4083 = vrot.slane %v3557, %v4082
      %v4084 = vlaneseq
      %v4085 = vshrl.u32 %v4084, 7
      %v4086 = vsub.s32 %v3803, %v4085
      %v4087 = vrot.slane %v3559, %v4086
      %v4088 = vlaneseq
      %v4089 = vshrl.u32 %v4088, 7
      %v4090 = vsub.s32 %v3803, %v4089
      %v4091 = vrot.slane %v3561, %v4090
      %v4092 = vlaneseq
      %v4093 = vshrl.u32 %v4092, 7
      %v4094 = vsub.s32 %v3803, %v4093
      %v4095 = vrot.slane %v3563, %v4094
      %v4096 = vlaneseq
      %v4097 = vshrl.u32 %v4096, 7
      %v4098 = vsub.s32 %v3803, %v4097
      %v4099 = vrot.slane %v3565, %v4098
      %v4100 = vlaneseq
      %v4101 = vshrl.u32 %v4100, 7
      %v4102 = vsub.s32 %v3803, %v4101
      %v4103 = vrot.slane %v3567, %v4102
      %v4104 = vlaneseq
      %v4105 = vshrl.u32 %v4104, 7
      %v4106 = vsub.s32 %v3803, %v4105
      %v4107 = vrot.slane %v3569, %v4106
      %v4108 = vlaneseq
      %v4109 = vshrl.u32 %v4108, 7
      %v4110 = vsub.s32 %v3803, %v4109
      %v4111 = vrot.slane %v3571, %v4110
      %v4112 = vlaneseq
      %v4113 = vshrl.u32 %v4112, 7
      %v4114 = vsub.s32 %v3803, %v4113
      %v4115 = vrot.slane %v3573, %v4114
      %v4116 = vlaneseq
      %v4117 = vshrl.u32 %v4116, 7
      %v4118 = vsub.s32 %v3803, %v4117
      %v4119 = vrot.slane %v3575, %v4118
      %v4120 = vlaneseq
      %v4121 = vshrl.u32 %v4120, 7
      %v4122 = vsub.s32 %v3803, %v4121
      %v4123 = vrot.slane %v3577, %v4122
      %v4124 = vlaneseq
      %v4125 = vshrl.u32 %v4124, 7
      %v4126 = vsub.s32 %v3803, %v4125
      %v4127 = vrot.slane %v3579, %v4126
      %v4128 = vlaneseq
      %v4129 = vshrl.u32 %v4128, 7
      %v4130 = vsub.s32 %v3803, %v4129
      %v4131 = vrot.slane %v3581, %v4130
      %v4132 = vlaneseq
      %v4133 = vshrl.u32 %v4132, 7
      %v4134 = vsub.s32 %v3803, %v4133
      %v4135 = vrot.slane %v3583, %v4134
      %v4136 = vlaneseq
      %v4137 = vshrl.u32 %v4136, 7
      %v4138 = vsub.s32 %v3803, %v4137
      %v4139 = vrot.slane %v3585, %v4138
      %v4140 = vlaneseq
      %v4141 = vshrl.u32 %v4140, 7
      %v4142 = vsub.s32 %v3803, %v4141
      %v4143 = vrot.slane %v3587, %v4142
      %v4144 = vlaneseq
      %v4145 = vshrl.u32 %v4144, 7
      %v4146 = vsub.s32 %v3803, %v4145
      %v4147 = vrot.slane %v3589, %v4146
      %v4148 = vlaneseq
      %v4149 = vshrl.u32 %v4148, 7
      %v4150 = vsub.s32 %v3803, %v4149
      %v4151 = vrot.slane %v3591, %v4150
      %v4152 = vlaneseq
      %v4153 = vshrl.u32 %v4152, 7
      %v4154 = vsub.s32 %v3803, %v4153
      %v4155 = vrot.slane %v3593, %v4154
      %v4156 = vlaneseq
      %v4157 = vshrl.u32 %v4156, 7
      %v4158 = vsub.s32 %v3803, %v4157
      %v4159 = vrot.slane %v3595, %v4158
      %v4160 = vlaneseq
      %v4161 = vshrl.u32 %v4160, 7
      %v4162 = vsub.s32 %v3803, %v4161
      %v4163 = vrot.slane %v3597, %v4162
      %v4164 = vlaneseq
      %v4165 = vshrl.u32 %v4164, 7
      %v4166 = vsub.s32 %v3803, %v4165
      %v4167 = vrot.slane %v3599, %v4166
      %v4168 = vlaneseq
      %v4169 = vshrl.u32 %v4168, 7
      %v4170 = vsub.s32 %v3803, %v4169
      %v4171 = vrot.slane %v3601, %v4170
      %v4172 = vlaneseq
      %v4173 = vshrl.u32 %v4172, 7
      %v4174 = vsub.s32 %v3803, %v4173
      %v4175 = vrot.slane %v3603, %v4174
      %v4176 = vlaneseq
      %v4177 = vshrl.u32 %v4176, 7
      %v4178 = vsub.s32 %v3803, %v4177
      %v4179 = vrot.slane %v3605, %v4178
      %v4180 = vlaneseq
      %v4181 = vshrl.u32 %v4180, 7
      %v4182 = vsub.s32 %v3803, %v4181
      %v4183 = vrot.slane %v3607, %v4182
      %v4184 = vlaneseq
      %v4185 = vshrl.u32 %v4184, 7
      %v4186 = vsub.s32 %v3803, %v4185
      %v4187 = vrot.slane %v3609, %v4186
      %v4188 = vlaneseq
      %v4189 = vshrl.u32 %v4188, 7
      %v4190 = vsub.s32 %v3803, %v4189
      %v4191 = vrot.slane %v3611, %v4190
      %v4192 = vlaneseq
      %v4193 = vshrl.u32 %v4192, 7
      %v4194 = vsub.s32 %v3803, %v4193
      %v4195 = vrot.slane %v3613, %v4194
      %v4196 = vlaneseq
      %v4197 = vshrl.u32 %v4196, 7
      %v4198 = vsub.s32 %v3803, %v4197
      %v4199 = vrot.slane %v3615, %v4198
      %v4200 = vlaneseq
      %v4201 = vshrl.u32 %v4200, 7
      %v4202 = vsub.s32 %v3803, %v4201
      %v4203 = vrot.slane %v3617, %v4202
      %v4204 = vlaneseq
      %v4205 = vshrl.u32 %v4204, 7
      %v4206 = vsub.s32 %v3803, %v4205
      %v4207 = vrot.slane %v3619, %v4206
      %v4208 = vlaneseq
      %v4209 = vshrl.u32 %v4208, 7
      %v4210 = vsub.s32 %v3803, %v4209
      %v4211 = vrot.slane %v3621, %v4210
      %v4212 = vlaneseq
      %v4213 = vshrl.u32 %v4212, 7
      %v4214 = vsub.s32 %v3803, %v4213
      %v4215 = vrot.slane %v3623, %v4214
      %v4216 = vlaneseq
      %v4217 = vshrl.u32 %v4216, 7
      %v4218 = vsub.s32 %v3803, %v4217
      %v4219 = vrot.slane %v3625, %v4218
      %v4220 = vlaneseq
      %v4221 = vshrl.u32 %v4220, 7
      %v4222 = vsub.s32 %v3803, %v4221
      %v4223 = vrot.slane %v3627, %v4222
      %v4224 = vlaneseq
      %v4225 = vshrl.u32 %v4224, 7
      %v4226 = vsub.s32 %v3803, %v4225
      %v4227 = vrot.slane %v3629, %v4226
      %v4228 = vlaneseq
      %v4229 = vshrl.u32 %v4228, 7
      %v4230 = vsub.s32 %v3803, %v4229
      %v4231 = vrot.slane %v3631, %v4230
      %v4232 = vlaneseq
      %v4233 = vshrl.u32 %v4232, 7
      %v4234 = vsub.s32 %v3803, %v4233
      %v4235 = vrot.slane %v3633, %v4234
      %v4236 = vlaneseq
      %v4237 = vshrl.u32 %v4236, 7
      %v4238 = vsub.s32 %v3803, %v4237
      %v4239 = vrot.slane %v3635, %v4238
      %v4240 = vlaneseq
      %v4241 = vshrl.u32 %v4240, 7
      %v4242 = vsub.s32 %v3803, %v4241
      %v4243 = vrot.slane %v3637, %v4242
      %v4244 = vlaneseq
      %v4245 = vshrl.u32 %v4244, 7
      %v4246 = vsub.s32 %v3803, %v4245
      %v4247 = vrot.slane %v3639, %v4246
      %v4248 = vlaneseq
      %v4249 = vshrl.u32 %v4248, 7
      %v4250 = vsub.s32 %v3803, %v4249
      %v4251 = vrot.slane %v3641, %v4250
      %v4252 = vlaneseq
      %v4253 = vshrl.u32 %v4252, 7
      %v4254 = vsub.s32 %v3803, %v4253
      %v4255 = vrot.slane %v3643, %v4254
      %v4256 = vlaneseq
      %v4257 = vshrl.u32 %v4256, 7
      %v4258 = vsub.s32 %v3803, %v4257
      %v4259 = vrot.slane %v3645, %v4258
      %v4260 = vlaneseq
      %v4261 = vshrl.u32 %v4260, 7
      %v4262 = vsub.s32 %v3803, %v4261
      %v4263 = vrot.slane %v3647, %v4262
      %v4264 = vlaneseq
      %v4265 = vshrl.u32 %v4264, 7
      %v4266 = vsub.s32 %v3803, %v4265
      %v4267 = vrot.slane %v3649, %v4266
      %v4268 = vlaneseq
      %v4269 = vshrl.u32 %v4268, 7
      %v4270 = vsub.s32 %v3803, %v4269
      %v4271 = vrot.slane %v3651, %v4270
      %v4272 = vlaneseq
      %v4273 = vshrl.u32 %v4272, 7
      %v4274 = vsub.s32 %v3803, %v4273
      %v4275 = vrot.slane %v3653, %v4274
      %v4276 = vlaneseq
      %v4277 = vshrl.u32 %v4276, 7
      %v4278 = vsub.s32 %v3803, %v4277
      %v4279 = vrot.slane %v3655, %v4278
      %v4280 = vlaneseq
      %v4281 = vshrl.u32 %v4280, 7
      %v4282 = vsub.s32 %v3803, %v4281
      %v4283 = vrot.slane %v3657, %v4282
      %v4284 = vlaneseq
      %v4285 = vshrl.u32 %v4284, 7
      %v4286 = vsub.s32 %v3803, %v4285
      %v4287 = vrot.slane %v3659, %v4286
      %v4288 = vlaneseq
      %v4289 = vshrl.u32 %v4288, 7
      %v4290 = vsub.s32 %v3803, %v4289
      %v4291 = vrot.slane %v3661, %v4290
      %v4292 = vlaneseq
      %v4293 = vshrl.u32 %v4292, 7
      %v4294 = vsub.s32 %v3803, %v4293
      %v4295 = vrot.slane %v3663, %v4294
      %v4296 = vlaneseq
      %v4297 = vshrl.u32 %v4296, 7
      %v4298 = vsub.s32 %v3803, %v4297
      %v4299 = vrot.slane %v3665, %v4298
      %v4300 = vlaneseq
      %v4301 = vshrl.u32 %v4300, 7
      %v4302 = vsub.s32 %v3803, %v4301
      %v4303 = vrot.slane %v3667, %v4302
      %v4304 = vlaneseq
      %v4305 = vshrl.u32 %v4304, 7
      %v4306 = vsub.s32 %v3803, %v4305
      %v4307 = vrot.slane %v3669, %v4306
      %v4308 = vlaneseq
      %v4309 = vshrl.u32 %v4308, 7
      %v4310 = vsub.s32 %v3803, %v4309
      %v4311 = vrot.slane %v3671, %v4310
      %v4312 = vlaneseq
      %v4313 = vshrl.u32 %v4312, 7
      %v4314 = vsub.s32 %v3803, %v4313
      %v4315 = vrot.slane %v3673, %v4314
      %vm4316 = vcmask 1041409
      %v4317 = vsel %vm4316, %v3811, %v3807
      %vm4318 = vcmask 1042434
      %v4319 = vsel %vm4318, %v3815, %v4317
      %vm4320 = vcmask 1043459
      %v4321 = vsel %vm4320, %v3819, %v4319
      %vm4322 = vcmask 1044484
      %v4323 = vsel %vm4322, %v3823, %v4321
      %vm4324 = vcmask 1045509
      %v4325 = vsel %vm4324, %v3827, %v4323
      %vm4326 = vcmask 1046534
      %v4327 = vsel %vm4326, %v3831, %v4325
      %vm4328 = vcmask 1047559
      %v4329 = vsel %vm4328, %v3835, %v4327
      %v4330 = vsel %vm4316, %v3843, %v3839
      %v4331 = vsel %vm4318, %v3847, %v4330
      %v4332 = vsel %vm4320, %v3851, %v4331
      %v4333 = vsel %vm4322, %v3855, %v4332
      %v4334 = vsel %vm4324, %v3859, %v4333
      %v4335 = vsel %vm4326, %v3863, %v4334
      %v4336 = vsel %vm4328, %v3867, %v4335
      %v4337 = vsel %vm4316, %v3875, %v3871
      %v4338 = vsel %vm4318, %v3879, %v4337
      %v4339 = vsel %vm4320, %v3883, %v4338
      %v4340 = vsel %vm4322, %v3887, %v4339
      %v4341 = vsel %vm4324, %v3891, %v4340
      %v4342 = vsel %vm4326, %v3895, %v4341
      %v4343 = vsel %vm4328, %v3899, %v4342
      %v4344 = vsel %vm4316, %v3907, %v3903
      %v4345 = vsel %vm4318, %v3911, %v4344
      %v4346 = vsel %vm4320, %v3915, %v4345
      %v4347 = vsel %vm4322, %v3919, %v4346
      %v4348 = vsel %vm4324, %v3923, %v4347
      %v4349 = vsel %vm4326, %v3927, %v4348
      %v4350 = vsel %vm4328, %v3931, %v4349
      %v4351 = vsel %vm4316, %v3939, %v3935
      %v4352 = vsel %vm4318, %v3943, %v4351
      %v4353 = vsel %vm4320, %v3947, %v4352
      %v4354 = vsel %vm4322, %v3951, %v4353
      %v4355 = vsel %vm4324, %v3955, %v4354
      %v4356 = vsel %vm4326, %v3959, %v4355
      %v4357 = vsel %vm4328, %v3963, %v4356
      %v4358 = vsel %vm4316, %v3971, %v3967
      %v4359 = vsel %vm4318, %v3975, %v4358
      %v4360 = vsel %vm4320, %v3979, %v4359
      %v4361 = vsel %vm4322, %v3983, %v4360
      %v4362 = vsel %vm4324, %v3987, %v4361
      %v4363 = vsel %vm4326, %v3991, %v4362
      %v4364 = vsel %vm4328, %v3995, %v4363
      %v4365 = vsel %vm4316, %v4003, %v3999
      %v4366 = vsel %vm4318, %v4007, %v4365
      %v4367 = vsel %vm4320, %v4011, %v4366
      %v4368 = vsel %vm4322, %v4015, %v4367
      %v4369 = vsel %vm4324, %v4019, %v4368
      %v4370 = vsel %vm4326, %v4023, %v4369
      %v4371 = vsel %vm4328, %v4027, %v4370
      %v4372 = vsel %vm4316, %v4035, %v4031
      %v4373 = vsel %vm4318, %v4039, %v4372
      %v4374 = vsel %vm4320, %v4043, %v4373
      %v4375 = vsel %vm4322, %v4047, %v4374
      %v4376 = vsel %vm4324, %v4051, %v4375
      %v4377 = vsel %vm4326, %v4055, %v4376
      %v4378 = vsel %vm4328, %v4059, %v4377
      %v4379 = vsel %vm4316, %v4067, %v4063
      %v4380 = vsel %vm4318, %v4071, %v4379
      %v4381 = vsel %vm4320, %v4075, %v4380
      %v4382 = vsel %vm4322, %v4079, %v4381
      %v4383 = vsel %vm4324, %v4083, %v4382
      %v4384 = vsel %vm4326, %v4087, %v4383
      %v4385 = vsel %vm4328, %v4091, %v4384
      %v4386 = vsel %vm4316, %v4099, %v4095
      %v4387 = vsel %vm4318, %v4103, %v4386
      %v4388 = vsel %vm4320, %v4107, %v4387
      %v4389 = vsel %vm4322, %v4111, %v4388
      %v4390 = vsel %vm4324, %v4115, %v4389
      %v4391 = vsel %vm4326, %v4119, %v4390
      %v4392 = vsel %vm4328, %v4123, %v4391
      %v4393 = vsel %vm4316, %v4131, %v4127
      %v4394 = vsel %vm4318, %v4135, %v4393
      %v4395 = vsel %vm4320, %v4139, %v4394
      %v4396 = vsel %vm4322, %v4143, %v4395
      %v4397 = vsel %vm4324, %v4147, %v4396
      %v4398 = vsel %vm4326, %v4151, %v4397
      %v4399 = vsel %vm4328, %v4155, %v4398
      %v4400 = vsel %vm4316, %v4163, %v4159
      %v4401 = vsel %vm4318, %v4167, %v4400
      %v4402 = vsel %vm4320, %v4171, %v4401
      %v4403 = vsel %vm4322, %v4175, %v4402
      %v4404 = vsel %vm4324, %v4179, %v4403
      %v4405 = vsel %vm4326, %v4183, %v4404
      %v4406 = vsel %vm4328, %v4187, %v4405
      %v4407 = vsel %vm4316, %v4195, %v4191
      %v4408 = vsel %vm4318, %v4199, %v4407
      %v4409 = vsel %vm4320, %v4203, %v4408
      %v4410 = vsel %vm4322, %v4207, %v4409
      %v4411 = vsel %vm4324, %v4211, %v4410
      %v4412 = vsel %vm4326, %v4215, %v4411
      %v4413 = vsel %vm4328, %v4219, %v4412
      %v4414 = vsel %vm4316, %v4227, %v4223
      %v4415 = vsel %vm4318, %v4231, %v4414
      %v4416 = vsel %vm4320, %v4235, %v4415
      %v4417 = vsel %vm4322, %v4239, %v4416
      %v4418 = vsel %vm4324, %v4243, %v4417
      %v4419 = vsel %vm4326, %v4247, %v4418
      %v4420 = vsel %vm4328, %v4251, %v4419
      %v4421 = vsel %vm4316, %v4259, %v4255
      %v4422 = vsel %vm4318, %v4263, %v4421
      %v4423 = vsel %vm4320, %v4267, %v4422
      %v4424 = vsel %vm4322, %v4271, %v4423
      %v4425 = vsel %vm4324, %v4275, %v4424
      %v4426 = vsel %vm4326, %v4279, %v4425
      %v4427 = vsel %vm4328, %v4283, %v4426
      %v4428 = vsel %vm4316, %v4291, %v4287
      %v4429 = vsel %vm4318, %v4295, %v4428
      %v4430 = vsel %vm4320, %v4299, %v4429
      %v4431 = vsel %vm4322, %v4303, %v4430
      %v4432 = vsel %vm4324, %v4307, %v4431
      %v4433 = vsel %vm4326, %v4311, %v4432
      %v4434 = vsel %vm4328, %v4315, %v4433
      %vm4451 = vcmask 64512
      %4452 = vst.msk [vmem:[%s145] sm:$0xff] %vm4451, %v4329
      %4453 = vst.msk [vmem:[%s145 + $0x8] sm:$0xff] %vm4451, %v4336
      %4454 = vst.msk [vmem:[%s145 + $0x10] sm:$0xff] %vm4451, %v4343
      %4455 = vst.msk [vmem:[%s145 + $0x18] sm:$0xff] %vm4451, %v4350
      %4456 = vst.msk [vmem:[%s145 + $0x20] sm:$0xff] %vm4451, %v4357
      %4457 = vst.msk [vmem:[%s145 + $0x28] sm:$0xff] %vm4451, %v4364
      %4458 = vst.msk [vmem:[%s145 + $0x30] sm:$0xff] %vm4451, %v4371
      %4459 = vst.msk [vmem:[%s145 + $0x38] sm:$0xff] %vm4451, %v4378
      %4460 = vst.msk [vmem:[%s145 + $0x40] sm:$0xff] %vm4451, %v4385
      %4461 = vst.msk [vmem:[%s145 + $0x48] sm:$0xff] %vm4451, %v4392
      %4462 = vst.msk [vmem:[%s145 + $0x50] sm:$0xff] %vm4451, %v4399
      %4463 = vst.msk [vmem:[%s145 + $0x58] sm:$0xff] %vm4451, %v4406
      %4464 = vst.msk [vmem:[%s145 + $0x60] sm:$0xff] %vm4451, %v4413
      %4465 = vst.msk [vmem:[%s145 + $0x68] sm:$0xff] %vm4451, %v4420
      %4466 = vst.msk [vmem:[%s145 + $0x70] sm:$0xff] %vm4451, %v4427
      %4467 = vst.msk [vmem:[%s145 + $0x78] sm:$0xff] %vm4451, %v4434
      %s4468 = smul.u32 16, %s13
      %p4469 = scmp.lt.s32.totalorder %s4468, 31
      %s4470 = scalar_select %p4469, %s4468, 31
      %s4471 = smul.addr %s4470, 8
      %s4472 = scalar_lea.vmem %s2, %s4471
      // Predicated region
      $region29: #{tpu_custom_call.1} parent=27 // pred_check
        %p4473 = pneg %p78
      $region30: #{tpu_custom_call.1} parent=27 // pred_check_branch
        %4475 = sbr.rel (%p4473) target = $region32
      $region31: #{tpu_custom_call.1} parent=27 // pred_region
        %s4476 = smul.u32 16, %s13
      $region32: #{tpu_custom_call.1} parent=27 // pred_fallthru
        _
    $region28: #{tpu_custom_call.1} parent=5 // pred_fallthru
      _
    %p4477 = scmp.le.s32.totalorder 2, %s8
    // Predicated region
    $region33: #{tpu_custom_call.1} parent=5 // pred_check
      %p4478 = pneg %p4477
    $region34: #{tpu_custom_call.1} parent=5 // pred_check_branch
      %4480 = sbr.rel (%p4478) target = $region36
    $region35: #{tpu_custom_call.1} parent=5 // pred_region
      %s4481 = ssub.s32 %s8, 2
      // Predicated region
      $region37: #{tpu_custom_call.1} parent=35 // pred_check
        %p4482 = pneg %p84
      $region38: #{tpu_custom_call.1} parent=35 // pred_check_branch
        %4484 = sbr.rel (%p4482) target = $region40
      $region39: #{tpu_custom_call.1} parent=35 // pred_region
        %s4485 = smul.u32 16, %s14
        %p4486 = scmp.lt.s32.totalorder %s4485, 31
        %s4487 = scalar_select %p4486, %s4485, 31
        %s4488 = smul.addr %s4487, 8
        %s4489 = scalar_lea.vmem %s2, %s4488
      $region40: #{tpu_custom_call.1} parent=35 // pred_fallthru
        _
    $region36: #{tpu_custom_call.1} parent=5 // pred_fallthru
      _
  $region6: #{tpu_custom_call.1} parent=0 // loop_footer
    %s12 = sadd.s32 1, %s8
  $region7: #{tpu_custom_call.1} parent=0 // loop_footer_branch
    %7 = sbr.rel target = $region3
  $region8: #{tpu_custom_call.1} parent=0 // loop_exit
    _

</llo_original>
